<compile_context>
chip_gen: v7x
topology: tpu7x:2x2x1
jax: 0.10.0
libtpu: 0.0.40
codegen_flags: <defaults>
</compile_context>

<pallas_src>
import functools

import numpy as np
import jax
import jax.numpy as jnp
from jax.experimental import pallas as pl
from jax.experimental.pallas import tpu as pltpu

C_OUT = 8            # conv1 output channels
PH, PW_OUT = 8, 10   # AdaptiveAvgPool2d target (8, 10)
PP = PH * PW_OUT     # 80 pooled values per channel
FLAT = C_OUT * PP    # 640
HID = 500
HID_PAD = 512        # fc1 width zero-padded 500 -> 512 for lane alignment
N_CLASSES = 2
MAX_BT = 256         # upper bound on images per grid step


def _round_up(a, m):
    return ((a + m - 1) // m) * m


def _adaptive_pool_matrix(n_in, n_out):
    """Exact torch AdaptiveAvgPool windows as a linear map of shape (n_in, n_out)."""
    m = np.zeros((n_in, n_out), dtype=np.float32)
    for o in range(n_out):
        start = (o * n_in) // n_out
        end = -((-(o + 1) * n_in) // n_out)  # ceil((o+1)*n_in/n_out)
        m[start:end, o] = 1.0 / float(end - start)
    return m


def _choose_bt(B, H, W):
    """Batch-tile size: fill the MXU M dimension but stay inside a VMEM budget
    (v7x has only 64 MiB physical VMEM), keep it a multiple of 8, and prefer at
    least 2 grid steps so the 'parallel' axis can shard across v7x's 2 TCs."""
    cw = C_OUT * W
    per_img = 4 * (2 * H * _round_up(W, 128)        # double-buffered input block
                   + (H + 2) * _round_up(W, 128)    # padded-rows scratch
                   + 2 * H * _round_up(cw, 128)     # conv output (+ bf16 copy headroom)
                   + 2 * H * FLAT                   # width-pool output + reshape
                   + 2 * HID_PAD)                   # MLP activations
    budget = 16 * 1024 * 1024
    bt = max(8, min(MAX_BT, (budget // max(per_img, 1)) // 8 * 8))
    bp8 = _round_up(B, 8)
    if bp8 <= bt:
        bt = _round_up((bp8 + 1) // 2, 8) if bp8 >= 16 else bp8
    return bt


# --------------------- fused conv + pool + MLP kernel -------------------------

def detector_kernel(x_ref, mk_ref, bvec_ref, pwblk_ref, phe_ref,
                    w1_ref, b1_ref, w2_ref, b2_ref, out_ref,
                    xpad_ref, *, H, W, Bt):
    CW = C_OUT * W

    # Height zero-padding (conv padding=1 along H). Width padding is folded into the
    # conv matrices, so only the two border rows need zeroing -- done every step, so
    # correctness never depends on scratch persistence across (possibly core-sharded)
    # grid iterations.
    zrow = jnp.zeros((Bt, 1, W), jnp.float32)
    xpad_ref[:, 0:1, :] = zrow
    xpad_ref[:, H + 1:H + 2, :] = zrow
    xpad_ref[:, 1:H + 1, :] = x_ref[...]

    # ---- conv3x3(1->8) as 3 MXU matmuls (one per kernel row); output channels are
    #      packed along lanes: y2d[b*H + i, c*W + j] = conv(b, c, i, j)
    y2d = None
    for kh in range(3):
        lhs = xpad_ref[:, kh:kh + H, :].reshape(Bt * H, W).astype(jnp.bfloat16)
        part = jnp.dot(lhs, mk_ref[kh], preferred_element_type=jnp.float32)
        y2d = part if y2d is None else y2d + part
    y2d = jnp.maximum(y2d + bvec_ref[...], 0.0)               # bias + ReLU, (Bt*H, 8W)

    # ---- adaptive avg pool, width direction: ONE matmul for all channels
    #      (block-diagonal RHS); output lanes are already in PyTorch .view order (c,p,q)
    z = jnp.dot(y2d.astype(jnp.bfloat16), pwblk_ref[...],
                preferred_element_type=jnp.float32)           # (Bt*H, 640)
    # height direction: weighted sublane reduction over H
    feats = jnp.sum(z.reshape(Bt, H, FLAT) * phe_ref[...], axis=1)   # (Bt, 640)

    # ---- fused MLP: fc1 (640 -> 512 padded) + ReLU + fc2 (512 -> 2)
    h = jnp.dot(feats.astype(jnp.bfloat16), w1_ref[...],
                preferred_element_type=jnp.float32) + b1_ref[...]
    h = jnp.maximum(h, 0.0)
    out_ref[...] = jnp.dot(h.astype(jnp.bfloat16), w2_ref[...],
                           preferred_element_type=jnp.float32) + b2_ref[...]


# --------------------------------- wrapper ------------------------------------

def detector_forward_impl(x, params):
    wconv, bconv, w1, b1, w2, b2 = params
    B, H, W = x.shape
    CW = C_OUT * W

    bt = _choose_bt(B, H, W)
    bp = _round_up(B, bt)
    if bp != B:
        x = jnp.pad(x, ((0, bp - B), (0, 0), (0, 0)))

    # --- conv taps as lane-packed block matrices; width zero-padding folded in.
    #     mk[kh, w_in, c*W + j] = wconv[c, 0, kh, dw]  where  dw = w_in - j + 1 in [0, 3)
    S = np.zeros((3, W, W), np.float32)
    for dw in range(3):
        for j in range(W):
            i = j + dw - 1
            if 0 <= i < W:
                S[dw, i, j] = 1.0
    wc3 = wconv.reshape(C_OUT, 3, 3).astype(jnp.float32)
    mk = jnp.einsum('ckd,diw->kicw', wc3, jnp.asarray(S)).reshape(3, W, CW)
    mk = mk.astype(jnp.bfloat16)
    bvec = jnp.repeat(bconv.astype(jnp.float32), W).reshape(1, CW)   # [0, c*W+j] = bconv[c]

    # --- exact adaptive-pool matrices (static), width pool as a block-diagonal RHS whose
    #     output columns are already in flattened (c, p, q) order.
    pw = _adaptive_pool_matrix(W, PW_OUT)                   # (W, 10)
    ph = _adaptive_pool_matrix(H, PH)                       # (H, 8)
    blk = np.tile(pw, (1, PH))                              # (W, 80): [w, p*10+q] = pw[w, q]
    pwblk = np.zeros((CW, FLAT), np.float32)
    for c in range(C_OUT):
        pwblk[c * W:(c + 1) * W, c * PP:(c + 1) * PP] = blk
    pwblk = jnp.asarray(pwblk, jnp.bfloat16)
    phe = jnp.asarray(np.tile(np.repeat(ph, PW_OUT, axis=1), (1, C_OUT)),
                      jnp.float32)                          # (H, 640): [h, c*80+p*10+q] = ph[h, p]

    # --- fc weights: PyTorch (out, in) -> transposed; hidden 500 zero-padded to 512 (exact).
    w1p = jnp.zeros((FLAT, HID_PAD), jnp.bfloat16).at[:, :HID].set(w1.T.astype(jnp.bfloat16))
    b1p = jnp.zeros((1, HID_PAD), jnp.float32).at[0, :HID].set(b1.astype(jnp.float32))
    w2p = jnp.zeros((HID_PAD, N_CLASSES), jnp.bfloat16).at[:HID, :].set(w2.T.astype(jnp.bfloat16))
    b2p = b2.reshape(1, N_CLASSES).astype(jnp.float32)

    flops_per_img = (2 * 3 * H * W * CW                      # conv matmuls
                     + 2 * H * CW * FLAT                     # width-pool matmul
                     + 3 * H * FLAT                          # height-pool weighted reduce
                     + 2 * (FLAT * HID_PAD + HID_PAD * N_CLASSES))
    bytes_accessed = (4 * (bp * H * W + bp * N_CLASSES)
                      + 2 * (mk.size + pwblk.size + w1p.size + w2p.size)
                      + 4 * (bvec.size + phe.size + b1p.size + b2p.size))

    kernel = functools.partial(detector_kernel, H=H, W=W, Bt=bt)
    out = pl.pallas_call(
        kernel,
        out_shape=jax.ShapeDtypeStruct((bp, N_CLASSES), jnp.float32),
        grid=(bp // bt,),
        in_specs=[
            pl.BlockSpec((bt, H, W), lambda b: (b, 0, 0)),          # batch tile of images
            pl.BlockSpec((3, W, CW), lambda b: (0, 0, 0)),          # conv-tap block matrices
            pl.BlockSpec((1, CW), lambda b: (0, 0)),                # conv bias lane vector
            pl.BlockSpec((CW, FLAT), lambda b: (0, 0)),             # block-diag width-pool RHS
            pl.BlockSpec((H, FLAT), lambda b: (0, 0)),              # height-pool weights
            pl.BlockSpec((FLAT, HID_PAD), lambda b: (0, 0)),        # fc1 weight (VMEM resident)
            pl.BlockSpec((1, HID_PAD), lambda b: (0, 0)),           # fc1 bias
            pl.BlockSpec((HID_PAD, N_CLASSES), lambda b: (0, 0)),   # fc2 weight
            pl.BlockSpec((1, N_CLASSES), lambda b: (0, 0)),         # fc2 bias
        ],
        out_specs=pl.BlockSpec((bt, N_CLASSES), lambda b: (b, 0)),
        scratch_shapes=[
            pltpu.VMEM((bt, H + 2, W), jnp.float32),                # H-padded input rows
        ],
        compiler_params=pltpu.CompilerParams(
            dimension_semantics=("parallel",),
            vmem_limit_bytes=48 * 1024 * 1024),
        cost_estimate=pl.CostEstimate(flops=int(bp * flops_per_img),
                                      transcendentals=0,
                                      bytes_accessed=int(bytes_accessed)),
    )(x, mk, bvec, pwblk, phe, w1p, b1p, w2p, b2p)
    return out[:B]


detector_forward = jax.jit(detector_forward_impl)


# ----------------------------- params & reference -----------------------------

def init_params(key):
    ks = jax.random.split(key, 6)

    def u(k, shape, fan_in):
        bound = 1.0 / np.sqrt(fan_in)
        return jax.random.uniform(k, shape, jnp.float32, -bound, bound)

    wconv = u(ks[0], (C_OUT, 1, 3, 3), 9)       # Conv2d(1, 8, 3, padding=1)
    bconv = u(ks[1], (C_OUT,), 9)
    w1 = u(ks[2], (HID, FLAT), FLAT)            # Linear(640, 500)
    b1 = u(ks[3], (HID,), FLAT)
    w2 = u(ks[4], (N_CLASSES, HID), HID)        # Linear(500, 2)
    b2 = u(ks[5], (N_CLASSES,), HID)
    return wconv, bconv, w1, b1, w2, b2


def reference_forward(x, params):
    """Pure-JAX reference reproducing the PyTorch forward (exact adaptive pooling)."""
    wconv, bconv, w1, b1, w2, b2 = params
    B, H, W = x.shape
    y = jax.lax.conv_general_dilated(
        x[:, None, :, :], wconv, (1, 1), ((1, 1), (1, 1)),
        dimension_numbers=("NCHW", "OIHW", "NCHW"))
    y = jax.nn.relu(y + bconv[None, :, None, None])
    ph = jnp.asarray(_adaptive_pool_matrix(H, PH))
    pw = jnp.asarray(_adaptive_pool_matrix(W, PW_OUT))
    pooled = jnp.einsum('bchw,hp,wq->bcpq', y, ph, pw)
    f = pooled.reshape(B, -1)
    h = jax.nn.relu(f @ w1.T + b1)
    return h @ w2.T + b2


if __name__ == "__main__":
    B, H, W = 2, 16, 20   # small spectrogram-like input
    key = jax.random.PRNGKey(0)
    kx, kp = jax.random.split(key)
    x = jax.random.normal(kx, (B, H, W), jnp.float32)
    params = init_params(kp)

    out = jax.block_until_ready(detector_forward(x, params))
    ref = reference_forward(x, params)

    assert out.shape == (B, N_CLASSES)
    np.testing.assert_allclose(np.asarray(out), np.asarray(ref), rtol=5e-2, atol=5e-2)
    print("KERNEL_OK")
</pallas_src>

<mosaic_0001>
module attributes {stable_mosaic.version = 11 : i64} {
  func.func @detector_kernel(%arg0: i32, %arg1: memref<8x16x20xf32, #tpu.memory_space<vmem>>, %arg2: memref<3x20x160xbf16, #tpu.memory_space<vmem>>, %arg3: memref<1x160xf32, #tpu.memory_space<vmem>>, %arg4: memref<160x640xbf16, #tpu.memory_space<vmem>>, %arg5: memref<16x640xf32, #tpu.memory_space<vmem>>, %arg6: memref<640x512xbf16, #tpu.memory_space<vmem>>, %arg7: memref<1x512xf32, #tpu.memory_space<vmem>>, %arg8: memref<512x2xbf16, #tpu.memory_space<vmem>>, %arg9: memref<1x2xf32, #tpu.memory_space<vmem>>, %arg10: memref<8x2xf32, #tpu.memory_space<vmem>>, %arg11: memref<8x18x20xf32, #tpu.memory_space<vmem>>) attributes {dimension_semantics = [#tpu.dimension_semantics<parallel>], iteration_bounds = array<i64: 1>, scalar_prefetch = 0 : i64, scratch_operands = 1 : i64, tpu.core_type = #tpu.core_type<tc>, window_params = [{transform_indices = @transform_0, window_bounds = array<i64: 8, 16, 20>}, {pipeline_mode = #tpu.pipeline_mode<synchronous>, transform_indices = @transform_1, window_bounds = array<i64: 3, 20, 160>}, {pipeline_mode = #tpu.pipeline_mode<synchronous>, transform_indices = @transform_2, window_bounds = array<i64: 1, 160>}, {pipeline_mode = #tpu.pipeline_mode<synchronous>, transform_indices = @transform_3, window_bounds = array<i64: 160, 640>}, {pipeline_mode = #tpu.pipeline_mode<synchronous>, transform_indices = @transform_4, window_bounds = array<i64: 16, 640>}, {pipeline_mode = #tpu.pipeline_mode<synchronous>, transform_indices = @transform_5, window_bounds = array<i64: 640, 512>}, {pipeline_mode = #tpu.pipeline_mode<synchronous>, transform_indices = @transform_6, window_bounds = array<i64: 1, 512>}, {pipeline_mode = #tpu.pipeline_mode<synchronous>, transform_indices = @transform_7, window_bounds = array<i64: 512, 2>}, {pipeline_mode = #tpu.pipeline_mode<synchronous>, transform_indices = @transform_8, window_bounds = array<i64: 1, 2>}, {transform_indices = @transform_9, window_bounds = array<i64: 8, 2>}]} {
    %cst = arith.constant 0.000000e+00 : f32
    %0 = vector.broadcast %cst : f32 to vector<8x1x20xf32>
    %c0 = arith.constant 0 : index
    %c0_0 = arith.constant 0 : index
    %c0_1 = arith.constant 0 : index
    %1 = vector.load %arg11[%c0, %c0_0, %c0_1] : memref<8x18x20xf32, #tpu.memory_space<vmem>>, vector<8x1x20xf32>
    tpu.vector_store %arg11[%c0, %c0_0, %c0_1], %0 {strides = array<i32>} : memref<8x18x20xf32, #tpu.memory_space<vmem>>, vector<8x1x20xf32>,
    %c0_2 = arith.constant 0 : index
    %c17 = arith.constant 17 : index
    %c0_3 = arith.constant 0 : index
    %2 = vector.load %arg11[%c0_2, %c17, %c0_3] : memref<8x18x20xf32, #tpu.memory_space<vmem>>, vector<8x1x20xf32>
    tpu.vector_store %arg11[%c0_2, %c17, %c0_3], %0 {strides = array<i32>} : memref<8x18x20xf32, #tpu.memory_space<vmem>>, vector<8x1x20xf32>,
    %c0_4 = arith.constant 0 : index
    %c0_5 = arith.constant 0 : index
    %c0_6 = arith.constant 0 : index
    %3 = vector.load %arg1[%c0_4, %c0_5, %c0_6] : memref<8x16x20xf32, #tpu.memory_space<vmem>>, vector<8x16x20xf32>
    %c0_7 = arith.constant 0 : index
    %c1 = arith.constant 1 : index
    %c0_8 = arith.constant 0 : index
    %4 = vector.load %arg11[%c0_7, %c1, %c0_8] : memref<8x18x20xf32, #tpu.memory_space<vmem>>, vector<8x16x20xf32>
    tpu.vector_store %arg11[%c0_7, %c1, %c0_8], %3 {strides = array<i32>} : memref<8x18x20xf32, #tpu.memory_space<vmem>>, vector<8x16x20xf32>,
    %c0_9 = arith.constant 0 : index
    %c0_10 = arith.constant 0 : index
    %c0_11 = arith.constant 0 : index
    %5 = vector.load %arg11[%c0_9, %c0_10, %c0_11] : memref<8x18x20xf32, #tpu.memory_space<vmem>>, vector<8x16x20xf32>
    %6 = vector.shape_cast %5 : vector<8x16x20xf32> to vector<128x20xf32>
    %7 = arith.truncf %6 : vector<128x20xf32> to vector<128x20xbf16>
    %c0_12 = arith.constant 0 : index
    %c0_13 = arith.constant 0 : index
    %c0_14 = arith.constant 0 : index
    %8 = vector.load %arg2[%c0_12, %c0_13, %c0_14] : memref<3x20x160xbf16, #tpu.memory_space<vmem>>, vector<1x20x160xbf16>
    %9 = vector.shape_cast %8 : vector<1x20x160xbf16> to vector<20x160xbf16>
    %cst_15 = arith.constant dense<0.000000e+00> : vector<128x160xf32>
    %10 = tpu.matmul %7, %9, %cst_15 {dimension_numbers = #tpu.dot_dimension_numbers<[1], [0], [0], [1], [0, 0, 1, 1], [], []>} : vector<128x20xbf16>, vector<20x160xbf16>, vector<128x160xf32> -> vector<128x160xf32>
    %c0_16 = arith.constant 0 : index
    %c1_17 = arith.constant 1 : index
    %c0_18 = arith.constant 0 : index
    %11 = vector.load %arg11[%c0_16, %c1_17, %c0_18] : memref<8x18x20xf32, #tpu.memory_space<vmem>>, vector<8x16x20xf32>
    %12 = vector.shape_cast %11 : vector<8x16x20xf32> to vector<128x20xf32>
    %13 = arith.truncf %12 : vector<128x20xf32> to vector<128x20xbf16>
    %c1_19 = arith.constant 1 : index
    %c0_20 = arith.constant 0 : index
    %c0_21 = arith.constant 0 : index
    %14 = vector.load %arg2[%c1_19, %c0_20, %c0_21] : memref<3x20x160xbf16, #tpu.memory_space<vmem>>, vector<1x20x160xbf16>
    %15 = vector.shape_cast %14 : vector<1x20x160xbf16> to vector<20x160xbf16>
    %cst_22 = arith.constant dense<0.000000e+00> : vector<128x160xf32>
    %16 = tpu.matmul %13, %15, %cst_22 {dimension_numbers = #tpu.dot_dimension_numbers<[1], [0], [0], [1], [0, 0, 1, 1], [], []>} : vector<128x20xbf16>, vector<20x160xbf16>, vector<128x160xf32> -> vector<128x160xf32>
    %17 = arith.addf %10, %16 : vector<128x160xf32>
    %c0_23 = arith.constant 0 : index
    %c2 = arith.constant 2 : index
    %c0_24 = arith.constant 0 : index
    %18 = vector.load %arg11[%c0_23, %c2, %c0_24] : memref<8x18x20xf32, #tpu.memory_space<vmem>>, vector<8x16x20xf32>
    %19 = vector.shape_cast %18 : vector<8x16x20xf32> to vector<128x20xf32>
    %20 = arith.truncf %19 : vector<128x20xf32> to vector<128x20xbf16>
    %c2_25 = arith.constant 2 : index
    %c0_26 = arith.constant 0 : index
    %c0_27 = arith.constant 0 : index
    %21 = vector.load %arg2[%c2_25, %c0_26, %c0_27] : memref<3x20x160xbf16, #tpu.memory_space<vmem>>, vector<1x20x160xbf16>
    %22 = vector.shape_cast %21 : vector<1x20x160xbf16> to vector<20x160xbf16>
    %cst_28 = arith.constant dense<0.000000e+00> : vector<128x160xf32>
    %23 = tpu.matmul %20, %22, %cst_28 {dimension_numbers = #tpu.dot_dimension_numbers<[1], [0], [0], [1], [0, 0, 1, 1], [], []>} : vector<128x20xbf16>, vector<20x160xbf16>, vector<128x160xf32> -> vector<128x160xf32>
    %24 = arith.addf %17, %23 : vector<128x160xf32>
    %c0_29 = arith.constant 0 : index
    %c0_30 = arith.constant 0 : index
    %25 = vector.load %arg3[%c0_29, %c0_30] : memref<1x160xf32, #tpu.memory_space<vmem>>, vector<1x160xf32>
    %26 = vector.broadcast %25 : vector<1x160xf32> to vector<128x160xf32>
    %27 = arith.addf %24, %26 : vector<128x160xf32>
    %cst_31 = arith.constant 0.000000e+00 : f32
    %28 = vector.broadcast %cst_31 : f32 to vector<128x160xf32>
    %29 = arith.maximumf %27, %28 : vector<128x160xf32>
    %30 = arith.truncf %29 : vector<128x160xf32> to vector<128x160xbf16>
    %c0_32 = arith.constant 0 : index
    %c0_33 = arith.constant 0 : index
    %31 = vector.load %arg4[%c0_32, %c0_33] : memref<160x640xbf16, #tpu.memory_space<vmem>>, vector<160x640xbf16>
    %cst_34 = arith.constant dense<0.000000e+00> : vector<128x640xf32>
    %32 = tpu.matmul %30, %31, %cst_34 {dimension_numbers = #tpu.dot_dimension_numbers<[1], [0], [0], [1], [0, 0, 1, 1], [], []>} : vector<128x160xbf16>, vector<160x640xbf16>, vector<128x640xf32> -> vector<128x640xf32>
    %33 = vector.shape_cast %32 : vector<128x640xf32> to vector<8x16x640xf32>
    %c0_35 = arith.constant 0 : index
    %c0_36 = arith.constant 0 : index
    %34 = vector.load %arg5[%c0_35, %c0_36] : memref<16x640xf32, #tpu.memory_space<vmem>>, vector<16x640xf32>
    %35 = vector.shape_cast %34 : vector<16x640xf32> to vector<1x16x640xf32>
    %36 = vector.broadcast %35 : vector<1x16x640xf32> to vector<8x16x640xf32>
    %37 = arith.mulf %33, %36 : vector<8x16x640xf32>
    %cst_37 = arith.constant dense<0.000000e+00> : vector<8x640xf32>
    %38 = vector.multi_reduction <add>, %37, %cst_37 [1] : vector<8x16x640xf32> to vector<8x640xf32>
    %39 = arith.truncf %38 : vector<8x640xf32> to vector<8x640xbf16>
    %c0_38 = arith.constant 0 : index
    %c0_39 = arith.constant 0 : index
    %40 = vector.load %arg6[%c0_38, %c0_39] : memref<640x512xbf16, #tpu.memory_space<vmem>>, vector<640x512xbf16>
    %cst_40 = arith.constant dense<0.000000e+00> : vector<8x512xf32>
    %41 = tpu.matmul %39, %40, %cst_40 {dimension_numbers = #tpu.dot_dimension_numbers<[1], [0], [0], [1], [0, 0, 1, 1], [], []>} : vector<8x640xbf16>, vector<640x512xbf16>, vector<8x512xf32> -> vector<8x512xf32>
    %c0_41 = arith.constant 0 : index
    %c0_42 = arith.constant 0 : index
    %42 = vector.load %arg7[%c0_41, %c0_42] : memref<1x512xf32, #tpu.memory_space<vmem>>, vector<1x512xf32>
    %43 = vector.broadcast %42 : vector<1x512xf32> to vector<8x512xf32>
    %44 = arith.addf %41, %43 : vector<8x512xf32>
    %cst_43 = arith.constant 0.000000e+00 : f32
    %45 = vector.broadcast %cst_43 : f32 to vector<8x512xf32>
    %46 = arith.maximumf %44, %45 : vector<8x512xf32>
    %47 = arith.truncf %46 : vector<8x512xf32> to vector<8x512xbf16>
    %c0_44 = arith.constant 0 : index
    %c0_45 = arith.constant 0 : index
    %48 = vector.load %arg8[%c0_44, %c0_45] : memref<512x2xbf16, #tpu.memory_space<vmem>>, vector<512x2xbf16>
    %cst_46 = arith.constant dense<0.000000e+00> : vector<8x2xf32>
    %49 = tpu.matmul %47, %48, %cst_46 {dimension_numbers = #tpu.dot_dimension_numbers<[1], [0], [0], [1], [0, 0, 1, 1], [], []>} : vector<8x512xbf16>, vector<512x2xbf16>, vector<8x2xf32> -> vector<8x2xf32>
    %c0_47 = arith.constant 0 : index
    %c0_48 = arith.constant 0 : index
    %50 = vector.load %arg9[%c0_47, %c0_48] : memref<1x2xf32, #tpu.memory_space<vmem>>, vector<1x2xf32>
    %51 = vector.broadcast %50 : vector<1x2xf32> to vector<8x2xf32>
    %52 = arith.addf %49, %51 : vector<8x2xf32>
    %c0_49 = arith.constant 0 : index
    %c0_50 = arith.constant 0 : index
    %53 = vector.load %arg10[%c0_49, %c0_50] : memref<8x2xf32, #tpu.memory_space<vmem>>, vector<8x2xf32>
    tpu.vector_store %arg10[%c0_49, %c0_50], %52 {strides = array<i32>} : memref<8x2xf32, #tpu.memory_space<vmem>>, vector<8x2xf32>,
    return
  }
  func.func @transform_0(%arg0: i32) -> (i32, i32, i32) {
    %c0_i32 = arith.constant 0 : i32
    %c0_i32_0 = arith.constant 0 : i32
    %c0_i32_1 = arith.constant 0 : i32
    return %arg0, %c0_i32, %c0_i32_0 : i32, i32, i32
  }
  func.func @transform_1(%arg0: i32) -> (i32, i32, i32) {
    %c0_i32 = arith.constant 0 : i32
    %c0_i32_0 = arith.constant 0 : i32
    %c0_i32_1 = arith.constant 0 : i32
    %c0_i32_2 = arith.constant 0 : i32
    return %c0_i32, %c0_i32_0, %c0_i32_1 : i32, i32, i32
  }
  func.func @transform_2(%arg0: i32) -> (i32, i32) {
    %c0_i32 = arith.constant 0 : i32
    %c0_i32_0 = arith.constant 0 : i32
    %c0_i32_1 = arith.constant 0 : i32
    return %c0_i32, %c0_i32_0 : i32, i32
  }
  func.func @transform_3(%arg0: i32) -> (i32, i32) {
    %c0_i32 = arith.constant 0 : i32
    %c0_i32_0 = arith.constant 0 : i32
    %c0_i32_1 = arith.constant 0 : i32
    return %c0_i32, %c0_i32_0 : i32, i32
  }
  func.func @transform_4(%arg0: i32) -> (i32, i32) {
    %c0_i32 = arith.constant 0 : i32
    %c0_i32_0 = arith.constant 0 : i32
    %c0_i32_1 = arith.constant 0 : i32
    return %c0_i32, %c0_i32_0 : i32, i32
  }
  func.func @transform_5(%arg0: i32) -> (i32, i32) {
    %c0_i32 = arith.constant 0 : i32
    %c0_i32_0 = arith.constant 0 : i32
    %c0_i32_1 = arith.constant 0 : i32
    return %c0_i32, %c0_i32_0 : i32, i32
  }
  func.func @transform_6(%arg0: i32) -> (i32, i32) {
    %c0_i32 = arith.constant 0 : i32
    %c0_i32_0 = arith.constant 0 : i32
    %c0_i32_1 = arith.constant 0 : i32
    return %c0_i32, %c0_i32_0 : i32, i32
  }
  func.func @transform_7(%arg0: i32) -> (i32, i32) {
    %c0_i32 = arith.constant 0 : i32
    %c0_i32_0 = arith.constant 0 : i32
    %c0_i32_1 = arith.constant 0 : i32
    return %c0_i32, %c0_i32_0 : i32, i32
  }
  func.func @transform_8(%arg0: i32) -> (i32, i32) {
    %c0_i32 = arith.constant 0 : i32
    %c0_i32_0 = arith.constant 0 : i32
    %c0_i32_1 = arith.constant 0 : i32
    return %c0_i32, %c0_i32_0 : i32, i32
  }
  func.func @transform_9(%arg0: i32) -> (i32, i32) {
    %c0_i32 = arith.constant 0 : i32
    %c0_i32_0 = arith.constant 0 : i32
    return %arg0, %c0_i32 : i32, i32
  }
}

</mosaic_0001>

<llo_original>
// kernel: detector_forward_impl.1
$region0: #{detector_forward_impl.1}
  #allocation0 [shape = 'u32[]', space=smem, size = 0x4, offset = 0x4, fixed_abs, tag = 'smem constant byte address 0x4 - core index']
  #allocation1 [shape = 'u32[144,128]{1,0:T(1,128)}', space=vmem, size = 0x12000, scoped, tag = 'internal scratch']
  #allocation2 [shape = 'f32[8,18,20]{2,1,0:T(8,128)}', space=vmem, size = 0x18000, scoped, tag = 'scratch operand']
  %s0 = inlined_call_operand.vmem [shape: f32[8,16,20], index: 0, kind: input, shape index: {}]
  %s1 = inlined_call_operand.vmem [shape: bf16[3,20,160], index: 1, kind: input, shape index: {}]
  %s2 = inlined_call_operand.vmem [shape: f32[1,160], index: 2, kind: input, shape index: {}]
  %s3 = inlined_call_operand.vmem [shape: bf16[160,640], index: 3, kind: input, shape index: {}]
  %s4 = inlined_call_operand.vmem [shape: f32[16,640], index: 4, kind: input, shape index: {}]
  %s5 = inlined_call_operand.vmem [shape: bf16[640,512], index: 5, kind: input, shape index: {}]
  %s6 = inlined_call_operand.vmem [shape: f32[1,512], index: 6, kind: input, shape index: {}]
  %s7 = inlined_call_operand.vmem [shape: bf16[512,2], index: 7, kind: input, shape index: {}]
  %s8 = inlined_call_operand.vmem [shape: f32[1,2], index: 8, kind: input, shape index: {}]
  %s9 = inlined_call_operand.vmem [shape: f32[8,2], index: 9, kind: output, shape index: {}]
  %s10 = sld [smem:[#allocation0]]
  $region46: #{detector_forward_impl.1} parent=0
    _
  %s12 = ssub.s32 1, %s10
  %s13 = scalar_select 0, %s12, %s10
  // Predicated region
  $region2: #{detector_forward_impl.1} parent=0 // pred_check
    _
  $region3: #{detector_forward_impl.1} parent=0 // pred_check_branch
    %15 = sbr.rel (0) target = $region5
  $region4: #{detector_forward_impl.1} parent=0 // pred_region
    _
  $region5: #{detector_forward_impl.1} parent=0 // pred_fallthru
    _
  // Predicated region
  $region6: #{detector_forward_impl.1} parent=0 // pred_check
    _
  $region7: #{detector_forward_impl.1} parent=0 // pred_check_branch
    %17 = sbr.rel (0) target = $region9
  $region8: #{detector_forward_impl.1} parent=0 // pred_region
    _
  $region9: #{detector_forward_impl.1} parent=0 // pred_fallthru
    _
  // Predicated region
  $region10: #{detector_forward_impl.1} parent=0 // pred_check
    _
  $region11: #{detector_forward_impl.1} parent=0 // pred_check_branch
    %19 = sbr.rel (0) target = $region13
  $region12: #{detector_forward_impl.1} parent=0 // pred_region
    _
  $region13: #{detector_forward_impl.1} parent=0 // pred_fallthru
    _
  // Predicated region
  $region14: #{detector_forward_impl.1} parent=0 // pred_check
    _
  $region15: #{detector_forward_impl.1} parent=0 // pred_check_branch
    %21 = sbr.rel (0) target = $region17
  $region16: #{detector_forward_impl.1} parent=0 // pred_region
    _
  $region17: #{detector_forward_impl.1} parent=0 // pred_fallthru
    _
  // Predicated region
  $region18: #{detector_forward_impl.1} parent=0 // pred_check
    _
  $region19: #{detector_forward_impl.1} parent=0 // pred_check_branch
    %23 = sbr.rel (0) target = $region21
  $region20: #{detector_forward_impl.1} parent=0 // pred_region
    _
  $region21: #{detector_forward_impl.1} parent=0 // pred_fallthru
    _
  // Predicated region
  $region22: #{detector_forward_impl.1} parent=0 // pred_check
    _
  $region23: #{detector_forward_impl.1} parent=0 // pred_check_branch
    %25 = sbr.rel (0) target = $region25
  $region24: #{detector_forward_impl.1} parent=0 // pred_region
    _
  $region25: #{detector_forward_impl.1} parent=0 // pred_fallthru
    _
  // Predicated region
  $region26: #{detector_forward_impl.1} parent=0 // pred_check
    _
  $region27: #{detector_forward_impl.1} parent=0 // pred_check_branch
    %27 = sbr.rel (0) target = $region29
  $region28: #{detector_forward_impl.1} parent=0 // pred_region
    _
  $region29: #{detector_forward_impl.1} parent=0 // pred_fallthru
    _
  // Predicated region
  $region30: #{detector_forward_impl.1} parent=0 // pred_check
    _
  $region31: #{detector_forward_impl.1} parent=0 // pred_check_branch
    %29 = sbr.rel (0) target = $region33
  $region32: #{detector_forward_impl.1} parent=0 // pred_region
    _
  $region33: #{detector_forward_impl.1} parent=0 // pred_fallthru
    _
  // Predicated region
  $region34: #{detector_forward_impl.1} parent=0 // pred_check
    _
  $region35: #{detector_forward_impl.1} parent=0 // pred_check_branch
    %31 = sbr.rel (0) target = $region37
  $region36: #{detector_forward_impl.1} parent=0 // pred_region
    _
  $region37: #{detector_forward_impl.1} parent=0 // pred_fallthru
    _
  %vm33 = vcmask 155648
  %34 = vst.msk [vmem:[#allocation2] sm:$0x1] %vm33, 0.0
  %35 = vst.msk [vmem:[#allocation2 + $0x18] sm:$0x1] %vm33, 0.0
  %36 = vst.msk [vmem:[#allocation2 + $0x30] sm:$0x1] %vm33, 0.0
  %37 = vst.msk [vmem:[#allocation2 + $0x48] sm:$0x1] %vm33, 0.0
  %38 = vst.msk [vmem:[#allocation2 + $0x60] sm:$0x1] %vm33, 0.0
  %39 = vst.msk [vmem:[#allocation2 + $0x78] sm:$0x1] %vm33, 0.0
  %40 = vst.msk [vmem:[#allocation2 + $0x90] sm:$0x1] %vm33, 0.0
  %41 = vst.msk [vmem:[#allocation2 + $0xa8] sm:$0x1] %vm33, 0.0
  %42 = vst.msk [vmem:[#allocation2 + $0x11] sm:$0x1] %vm33, 0.0
  %43 = vst.msk [vmem:[#allocation2 + $0x29] sm:$0x1] %vm33, 0.0
  %44 = vst.msk [vmem:[#allocation2 + $0x41] sm:$0x1] %vm33, 0.0
  %45 = vst.msk [vmem:[#allocation2 + $0x59] sm:$0x1] %vm33, 0.0
  %46 = vst.msk [vmem:[#allocation2 + $0x71] sm:$0x1] %vm33, 0.0
  %47 = vst.msk [vmem:[#allocation2 + $0x89] sm:$0x1] %vm33, 0.0
  %48 = vst.msk [vmem:[#allocation2 + $0xa1] sm:$0x1] %vm33, 0.0
  %49 = vst.msk [vmem:[#allocation2 + $0xb9] sm:$0x1] %vm33, 0.0
  %v50 = vld [vmem:[%s0] sm:$0xff]
  %v51 = vld [vmem:[%s0 + $0x8] sm:$0xff]
  %v52 = vld [vmem:[%s0 + $0x10] sm:$0xff]
  %v53 = vld [vmem:[%s0 + $0x18] sm:$0xff]
  %v54 = vld [vmem:[%s0 + $0x20] sm:$0xff]
  %v55 = vld [vmem:[%s0 + $0x28] sm:$0xff]
  %v56 = vld [vmem:[%s0 + $0x30] sm:$0xff]
  %v57 = vld [vmem:[%s0 + $0x38] sm:$0xff]
  %v58 = vld [vmem:[%s0 + $0x40] sm:$0xff]
  %v59 = vld [vmem:[%s0 + $0x48] sm:$0xff]
  %v60 = vld [vmem:[%s0 + $0x50] sm:$0xff]
  %v61 = vld [vmem:[%s0 + $0x58] sm:$0xff]
  %v62 = vld [vmem:[%s0 + $0x60] sm:$0xff]
  %v63 = vld [vmem:[%s0 + $0x68] sm:$0xff]
  %v64 = vld [vmem:[%s0 + $0x70] sm:$0xff]
  %v65 = vld [vmem:[%s0 + $0x78] sm:$0xff]
  %vm66 = vcmask 162816
  %67 = vst.msk [vmem:[#allocation2 + $0x1] sm:$0xff] %vm66, %v50
  %68 = vst.msk [vmem:[#allocation2 + $0x9] sm:$0xff] %vm66, %v51
  %69 = vst.msk [vmem:[#allocation2 + $0x19] sm:$0xff] %vm66, %v52
  %70 = vst.msk [vmem:[#allocation2 + $0x21] sm:$0xff] %vm66, %v53
  %71 = vst.msk [vmem:[#allocation2 + $0x31] sm:$0xff] %vm66, %v54
  %72 = vst.msk [vmem:[#allocation2 + $0x39] sm:$0xff] %vm66, %v55
  %73 = vst.msk [vmem:[#allocation2 + $0x49] sm:$0xff] %vm66, %v56
  %74 = vst.msk [vmem:[#allocation2 + $0x51] sm:$0xff] %vm66, %v57
  %75 = vst.msk [vmem:[#allocation2 + $0x61] sm:$0xff] %vm66, %v58
  %76 = vst.msk [vmem:[#allocation2 + $0x69] sm:$0xff] %vm66, %v59
  %77 = vst.msk [vmem:[#allocation2 + $0x79] sm:$0xff] %vm66, %v60
  %78 = vst.msk [vmem:[#allocation2 + $0x81] sm:$0xff] %vm66, %v61
  %79 = vst.msk [vmem:[#allocation2 + $0x91] sm:$0xff] %vm66, %v62
  %80 = vst.msk [vmem:[#allocation2 + $0x99] sm:$0xff] %vm66, %v63
  %81 = vst.msk [vmem:[#allocation2 + $0xa9] sm:$0xff] %vm66, %v64
  %82 = vst.msk [vmem:[#allocation2 + $0xb1] sm:$0xff] %vm66, %v65
  %v83 = vld [vmem:[#allocation2] sm:$0xff]
  %v84 = vld [vmem:[#allocation2 + $0x8] sm:$0xff]
  %v85 = vld [vmem:[#allocation2 + $0x18] sm:$0xff]
  %v86 = vld [vmem:[#allocation2 + $0x20] sm:$0xff]
  %v87 = vld [vmem:[#allocation2 + $0x30] sm:$0xff]
  %v88 = vld [vmem:[#allocation2 + $0x38] sm:$0xff]
  %v89 = vld [vmem:[#allocation2 + $0x48] sm:$0xff]
  %v90 = vld [vmem:[#allocation2 + $0x50] sm:$0xff]
  %v91 = vld [vmem:[#allocation2 + $0x60] sm:$0xff]
  %v92 = vld [vmem:[#allocation2 + $0x68] sm:$0xff]
  %v93 = vld [vmem:[#allocation2 + $0x78] sm:$0xff]
  %v94 = vld [vmem:[#allocation2 + $0x80] sm:$0xff]
  %v95 = vld [vmem:[#allocation2 + $0x90] sm:$0xff]
  %v96 = vld [vmem:[#allocation2 + $0x98] sm:$0xff]
  %v97 = vld [vmem:[#allocation2 + $0xa8] sm:$0xff]
  %v98 = vld [vmem:[#allocation2 + $0xb0] sm:$0xff]
  %v99 = vpack.c.bf16 %v84, %v83
  %v100 = vpack.c.bf16 %v86, %v85
  %v101 = vpack.c.bf16 %v88, %v87
  %v102 = vpack.c.bf16 %v90, %v89
  %v103 = vpack.c.bf16 %v92, %v91
  %v104 = vpack.c.bf16 %v94, %v93
  %v105 = vpack.c.bf16 %v96, %v95
  %v106 = vpack.c.bf16 %v98, %v97
  %v107 = vld [vmem:[%s1] sm:$0xff]
  %v108 = vld [vmem:[%s1 + $0x8] sm:$0xff]
  %v109 = vld [vmem:[%s1 + $0x10] sm:$0x33]
  %v110 = vld [vmem:[#allocation2 + $0x1] sm:$0xff]
  %v111 = vld [vmem:[#allocation2 + $0x9] sm:$0xff]
  %v112 = vld [vmem:[#allocation2 + $0x19] sm:$0xff]
  %v113 = vld [vmem:[#allocation2 + $0x21] sm:$0xff]
  %v114 = vld [vmem:[#allocation2 + $0x31] sm:$0xff]
  %v115 = vld [vmem:[#allocation2 + $0x39] sm:$0xff]
  %v116 = vld [vmem:[#allocation2 + $0x49] sm:$0xff]
  %v117 = vld [vmem:[#allocation2 + $0x51] sm:$0xff]
  %v118 = vld [vmem:[#allocation2 + $0x61] sm:$0xff]
  %v119 = vld [vmem:[#allocation2 + $0x69] sm:$0xff]
  %v120 = vld [vmem:[#allocation2 + $0x79] sm:$0xff]
  %v121 = vld [vmem:[#allocation2 + $0x81] sm:$0xff]
  %v122 = vld [vmem:[#allocation2 + $0x91] sm:$0xff]
  %v123 = vld [vmem:[#allocation2 + $0x99] sm:$0xff]
  %v124 = vld [vmem:[#allocation2 + $0xa9] sm:$0xff]
  %v125 = vld [vmem:[#allocation2 + $0xb1] sm:$0xff]
  %v126 = vpack.c.bf16 %v111, %v110
  %v127 = vpack.c.bf16 %v113, %v112
  %v128 = vpack.c.bf16 %v115, %v114
  %v129 = vpack.c.bf16 %v117, %v116
  %v130 = vpack.c.bf16 %v119, %v118
  %v131 = vpack.c.bf16 %v121, %v120
  %v132 = vpack.c.bf16 %v123, %v122
  %v133 = vpack.c.bf16 %v125, %v124
  %s134 = scalar_lea.vmem %s1, 24
  %v135 = vld [vmem:[%s134] sm:$0xff]
  %v136 = vld [vmem:[%s134 + $0x8] sm:$0xff]
  %v137 = vld [vmem:[%s134 + $0x10] sm:$0x33]
  %v141 = vunpack.c.l.b16 %v135
  %v142 = vunpack.c.h.b16 %v135
  %v143 = vunpack.c.l.b16 %v136
  %v144 = vunpack.c.h.b16 %v136
  %v145 = vunpack.c.l.b16 %v137
  %v146 = vunpack.c.h.b16 %v137
  %v147 = vpack.c.b16 %v143, %v141
  %v148 = vpack.c.b16 %v144, %v142
  %v149 = vpack.c.b16 %v145, %v145
  %v150 = vpack.c.b16 %v146, %v146
  %v154 = vsel %vm66, %v126, 0
  %v157 = vsel %vm66, %v127, 0
  %v160 = vsel %vm66, %v128, 0
  %v163 = vsel %vm66, %v129, 0
  %v166 = vsel %vm66, %v130, 0
  %v169 = vsel %vm66, %v131, 0
  %v172 = vsel %vm66, %v132, 0
  %v175 = vsel %vm66, %v133, 0
  %vm177 = vcmask 1041408
  %v179 = vsel %vm177, %v149, 0
  %v182 = vsel %vm177, %v150, 0
  %184 = vmatprep.subr.bf16.mxu0 %v148
  %185 = vmatpush1.bf16.msra.mxu0 %v147
  %186 = vmatprep.subr.bf16.mxu0 %v182
  %187 = vmatpush1.bf16.msra.mxu0 %v179
  %188 = vmatprep.subr.bf16.mxu0 0
  %189 = vmatpush1.bf16.msra.mxu0 0
  %190 = vmatprep.subr.bf16.mxu0 0
  %191 = vmatpush1.bf16.msra.mxu0 0
  %192 = vmatprep.subr.bf16.mxu0 0
  %193 = vmatpush1.bf16.msra.mxu0 0
  %194 = vmatprep.subr.bf16.mxu0 0
  %195 = vmatpush1.bf16.msra.mxu0 0
  %196 = vmatprep.subr.bf16.mxu0 0
  %197 = vmatpush1.bf16.msra.mxu0 0
  %198 = vmatprep.subr.bf16.mxu0 0
  %199 = vmatpush1.bf16.msra.mxu0 0
  %200 = vmatprep.subr.bf16.mxu0 0
  %201 = vmatpush1.bf16.msra.mxu0 0
  %202 = vmatprep.subr.bf16.mxu0 0
  %203 = vmatpush1.bf16.msra.mxu0 0
  %204 = vmatprep.subr.bf16.mxu0 0
  %205 = vmatpush1.bf16.msra.mxu0 0
  %206 = vmatprep.subr.bf16.mxu0 0
  %207 = vmatpush1.bf16.msra.mxu0 0
  %208 = vmatprep.subr.bf16.mxu0 0
  %209 = vmatpush1.bf16.msra.mxu0 0
  %210 = vmatprep.subr.bf16.mxu0 0
  %211 = vmatpush1.bf16.msra.mxu0 0
  %212 = vmatprep.subr.bf16.mxu0 0
  %213 = vmatpush1.bf16.msra.mxu0 0
  %214 = vmatprep.subr.bf16.mxu0 0
  %215 = vmatpush1.bf16.msra.mxu0 0
  %216 = vmatprep.mubr.bf16.mxu0 0
  %217 = vmatmul.mubr.bf16.gmra.mrb[0].mxu0 %v154
  %v218 = vpop.f32.mrb[0].mxu0
  %v219 = vadd.f32 0.0, %v218
  %v220 = vpop.f32.mrb[0].mxu0
  %v221 = vadd.f32 0.0, %v220
  %v222 = vpop.f32.mrb[0].mxu0
  %v223 = vadd.f32 0.0, %v222
  %v224 = vpop.f32.mrb[0].mxu0
  %v225 = vadd.f32 0.0, %v224
  %226 = vmatprep.mubr.bf16.mxu0 0
  %227 = vmatmul.mubr.bf16.gmra.mrb[0].mxu0 %v157
  %v228 = vpop.f32.mrb[0].mxu0
  %v229 = vadd.f32 0.0, %v228
  %v230 = vpop.f32.mrb[0].mxu0
  %v231 = vadd.f32 0.0, %v230
  %v232 = vpop.f32.mrb[0].mxu0
  %v233 = vadd.f32 0.0, %v232
  %v234 = vpop.f32.mrb[0].mxu0
  %v235 = vadd.f32 0.0, %v234
  %236 = vmatprep.mubr.bf16.mxu0 0
  %237 = vmatmul.mubr.bf16.gmra.mrb[0].mxu0 %v160
  %v238 = vpop.f32.mrb[0].mxu0
  %v239 = vadd.f32 0.0, %v238
  %v240 = vpop.f32.mrb[0].mxu0
  %v241 = vadd.f32 0.0, %v240
  %v242 = vpop.f32.mrb[0].mxu0
  %v243 = vadd.f32 0.0, %v242
  %v244 = vpop.f32.mrb[0].mxu0
  %v245 = vadd.f32 0.0, %v244
  %246 = vmatprep.mubr.bf16.mxu0 0
  %247 = vmatmul.mubr.bf16.gmra.mrb[0].mxu0 %v163
  %v248 = vpop.f32.mrb[0].mxu0
  %v249 = vadd.f32 0.0, %v248
  %v250 = vpop.f32.mrb[0].mxu0
  %v251 = vadd.f32 0.0, %v250
  %v252 = vpop.f32.mrb[0].mxu0
  %v253 = vadd.f32 0.0, %v252
  %v254 = vpop.f32.mrb[0].mxu0
  %v255 = vadd.f32 0.0, %v254
  %256 = vmatprep.mubr.bf16.mxu0 0
  %257 = vmatmul.mubr.bf16.gmra.mrb[0].mxu0 %v166
  %v258 = vpop.f32.mrb[0].mxu0
  %v259 = vadd.f32 0.0, %v258
  %v260 = vpop.f32.mrb[0].mxu0
  %v261 = vadd.f32 0.0, %v260
  %v262 = vpop.f32.mrb[0].mxu0
  %v263 = vadd.f32 0.0, %v262
  %v264 = vpop.f32.mrb[0].mxu0
  %v265 = vadd.f32 0.0, %v264
  %266 = vmatprep.mubr.bf16.mxu0 0
  %267 = vmatmul.mubr.bf16.gmra.mrb[0].mxu0 %v169
  %v268 = vpop.f32.mrb[0].mxu0
  %v269 = vadd.f32 0.0, %v268
  %v270 = vpop.f32.mrb[0].mxu0
  %v271 = vadd.f32 0.0, %v270
  %v272 = vpop.f32.mrb[0].mxu0
  %v273 = vadd.f32 0.0, %v272
  %v274 = vpop.f32.mrb[0].mxu0
  %v275 = vadd.f32 0.0, %v274
  %276 = vmatprep.mubr.bf16.mxu0 0
  %277 = vmatmul.mubr.bf16.gmra.mrb[0].mxu0 %v172
  %v278 = vpop.f32.mrb[0].mxu0
  %v279 = vadd.f32 0.0, %v278
  %v280 = vpop.f32.mrb[0].mxu0
  %v281 = vadd.f32 0.0, %v280
  %v282 = vpop.f32.mrb[0].mxu0
  %v283 = vadd.f32 0.0, %v282
  %v284 = vpop.f32.mrb[0].mxu0
  %v285 = vadd.f32 0.0, %v284
  %286 = vmatprep.mubr.bf16.mxu0 0
  %287 = vmatmul.mubr.bf16.gmra.mrb[0].mxu0 %v175
  %v288 = vpop.f32.mrb[0].mxu0
  %v289 = vadd.f32 0.0, %v288
  %v290 = vpop.f32.mrb[0].mxu0
  %v291 = vadd.f32 0.0, %v290
  %v292 = vpop.f32.mrb[0].mxu0
  %v293 = vadd.f32 0.0, %v292
  %v294 = vpop.f32.mrb[0].mxu0
  %v295 = vadd.f32 0.0, %v294
  %296 = vdwg.mxu0
  %v300 = vunpack.c.l.b16 %v107
  %v301 = vunpack.c.h.b16 %v107
  %v302 = vunpack.c.l.b16 %v108
  %v303 = vunpack.c.h.b16 %v108
  %v304 = vunpack.c.l.b16 %v109
  %v305 = vunpack.c.h.b16 %v109
  %v306 = vpack.c.b16 %v302, %v300
  %v307 = vpack.c.b16 %v303, %v301
  %v308 = vpack.c.b16 %v304, %v304
  %v309 = vpack.c.b16 %v305, %v305
  %v313 = vsel %vm66, %v99, 0
  %v316 = vsel %vm66, %v100, 0
  %v319 = vsel %vm66, %v101, 0
  %v322 = vsel %vm66, %v102, 0
  %v325 = vsel %vm66, %v103, 0
  %v328 = vsel %vm66, %v104, 0
  %v331 = vsel %vm66, %v105, 0
  %v334 = vsel %vm66, %v106, 0
  %v337 = vsel %vm177, %v308, 0
  %v340 = vsel %vm177, %v309, 0
  %342 = vmatprep.subr.bf16.mxu0 %v307
  %343 = vmatpush1.bf16.msra.mxu0 %v306
  %344 = vmatprep.subr.bf16.mxu0 %v340
  %345 = vmatpush1.bf16.msra.mxu0 %v337
  %346 = vmatprep.subr.bf16.mxu0 0
  %347 = vmatpush1.bf16.msra.mxu0 0
  %348 = vmatprep.subr.bf16.mxu0 0
  %349 = vmatpush1.bf16.msra.mxu0 0
  %350 = vmatprep.subr.bf16.mxu0 0
  %351 = vmatpush1.bf16.msra.mxu0 0
  %352 = vmatprep.subr.bf16.mxu0 0
  %353 = vmatpush1.bf16.msra.mxu0 0
  %354 = vmatprep.subr.bf16.mxu0 0
  %355 = vmatpush1.bf16.msra.mxu0 0
  %356 = vmatprep.subr.bf16.mxu0 0
  %357 = vmatpush1.bf16.msra.mxu0 0
  %358 = vmatprep.subr.bf16.mxu0 0
  %359 = vmatpush1.bf16.msra.mxu0 0
  %360 = vmatprep.subr.bf16.mxu0 0
  %361 = vmatpush1.bf16.msra.mxu0 0
  %362 = vmatprep.subr.bf16.mxu0 0
  %363 = vmatpush1.bf16.msra.mxu0 0
  %364 = vmatprep.subr.bf16.mxu0 0
  %365 = vmatpush1.bf16.msra.mxu0 0
  %366 = vmatprep.subr.bf16.mxu0 0
  %367 = vmatpush1.bf16.msra.mxu0 0
  %368 = vmatprep.subr.bf16.mxu0 0
  %369 = vmatpush1.bf16.msra.mxu0 0
  %370 = vmatprep.subr.bf16.mxu0 0
  %371 = vmatpush1.bf16.msra.mxu0 0
  %372 = vmatprep.subr.bf16.mxu0 0
  %373 = vmatpush1.bf16.msra.mxu0 0
  %374 = vmatprep.mubr.bf16.mxu0 0
  %375 = vmatmul.mubr.bf16.gmra.mrb[0].mxu0 %v313
  %v376 = vpop.f32.mrb[0].mxu0
  %v377 = vadd.f32 %v219, %v376
  %v378 = vpop.f32.mrb[0].mxu0
  %v379 = vadd.f32 %v221, %v378
  %v380 = vpop.f32.mrb[0].mxu0
  %v381 = vadd.f32 %v223, %v380
  %v382 = vpop.f32.mrb[0].mxu0
  %v383 = vadd.f32 %v225, %v382
  %384 = vmatprep.mubr.bf16.mxu0 0
  %385 = vmatmul.mubr.bf16.gmra.mrb[0].mxu0 %v316
  %v386 = vpop.f32.mrb[0].mxu0
  %v387 = vadd.f32 %v229, %v386
  %v388 = vpop.f32.mrb[0].mxu0
  %v389 = vadd.f32 %v231, %v388
  %v390 = vpop.f32.mrb[0].mxu0
  %v391 = vadd.f32 %v233, %v390
  %v392 = vpop.f32.mrb[0].mxu0
  %v393 = vadd.f32 %v235, %v392
  %394 = vmatprep.mubr.bf16.mxu0 0
  %395 = vmatmul.mubr.bf16.gmra.mrb[0].mxu0 %v319
  %v396 = vpop.f32.mrb[0].mxu0
  %v397 = vadd.f32 %v239, %v396
  %v398 = vpop.f32.mrb[0].mxu0
  %v399 = vadd.f32 %v241, %v398
  %v400 = vpop.f32.mrb[0].mxu0
  %v401 = vadd.f32 %v243, %v400
  %v402 = vpop.f32.mrb[0].mxu0
  %v403 = vadd.f32 %v245, %v402
  %404 = vmatprep.mubr.bf16.mxu0 0
  %405 = vmatmul.mubr.bf16.gmra.mrb[0].mxu0 %v322
  %v406 = vpop.f32.mrb[0].mxu0
  %v407 = vadd.f32 %v249, %v406
  %v408 = vpop.f32.mrb[0].mxu0
  %v409 = vadd.f32 %v251, %v408
  %v410 = vpop.f32.mrb[0].mxu0
  %v411 = vadd.f32 %v253, %v410
  %v412 = vpop.f32.mrb[0].mxu0
  %v413 = vadd.f32 %v255, %v412
  %414 = vmatprep.mubr.bf16.mxu0 0
  %415 = vmatmul.mubr.bf16.gmra.mrb[0].mxu0 %v325
  %v416 = vpop.f32.mrb[0].mxu0
  %v417 = vadd.f32 %v259, %v416
  %v418 = vpop.f32.mrb[0].mxu0
  %v419 = vadd.f32 %v261, %v418
  %v420 = vpop.f32.mrb[0].mxu0
  %v421 = vadd.f32 %v263, %v420
  %v422 = vpop.f32.mrb[0].mxu0
  %v423 = vadd.f32 %v265, %v422
  %424 = vmatprep.mubr.bf16.mxu0 0
  %425 = vmatmul.mubr.bf16.gmra.mrb[0].mxu0 %v328
  %v426 = vpop.f32.mrb[0].mxu0
  %v427 = vadd.f32 %v269, %v426
  %v428 = vpop.f32.mrb[0].mxu0
  %v429 = vadd.f32 %v271, %v428
  %v430 = vpop.f32.mrb[0].mxu0
  %v431 = vadd.f32 %v273, %v430
  %v432 = vpop.f32.mrb[0].mxu0
  %v433 = vadd.f32 %v275, %v432
  %434 = vmatprep.mubr.bf16.mxu0 0
  %435 = vmatmul.mubr.bf16.gmra.mrb[0].mxu0 %v331
  %v436 = vpop.f32.mrb[0].mxu0
  %v437 = vadd.f32 %v279, %v436
  %v438 = vpop.f32.mrb[0].mxu0
  %v439 = vadd.f32 %v281, %v438
  %v440 = vpop.f32.mrb[0].mxu0
  %v441 = vadd.f32 %v283, %v440
  %v442 = vpop.f32.mrb[0].mxu0
  %v443 = vadd.f32 %v285, %v442
  %444 = vmatprep.mubr.bf16.mxu0 0
  %445 = vmatmul.mubr.bf16.gmra.mrb[0].mxu0 %v334
  %v446 = vpop.f32.mrb[0].mxu0
  %v447 = vadd.f32 %v289, %v446
  %v448 = vpop.f32.mrb[0].mxu0
  %v449 = vadd.f32 %v291, %v448
  %v450 = vpop.f32.mrb[0].mxu0
  %v451 = vadd.f32 %v293, %v450
  %v452 = vpop.f32.mrb[0].mxu0
  %v453 = vadd.f32 %v295, %v452
  %454 = vdwg.mxu0
  %v455 = vld [vmem:[#allocation2 + $0x2] sm:$0xff]
  %v456 = vld [vmem:[#allocation2 + $0xa] sm:$0xff]
  %v457 = vld [vmem:[#allocation2 + $0x1a] sm:$0xff]
  %v458 = vld [vmem:[#allocation2 + $0x22] sm:$0xff]
  %v459 = vld [vmem:[#allocation2 + $0x32] sm:$0xff]
  %v460 = vld [vmem:[#allocation2 + $0x3a] sm:$0xff]
  %v461 = vld [vmem:[#allocation2 + $0x4a] sm:$0xff]
  %v462 = vld [vmem:[#allocation2 + $0x52] sm:$0xff]
  %v463 = vld [vmem:[#allocation2 + $0x62] sm:$0xff]
  %v464 = vld [vmem:[#allocation2 + $0x6a] sm:$0xff]
  %v465 = vld [vmem:[#allocation2 + $0x7a] sm:$0xff]
  %v466 = vld [vmem:[#allocation2 + $0x82] sm:$0xff]
  %v467 = vld [vmem:[#allocation2 + $0x92] sm:$0xff]
  %v468 = vld [vmem:[#allocation2 + $0x9a] sm:$0xff]
  %v469 = vld [vmem:[#allocation2 + $0xaa] sm:$0xff]
  %v470 = vld [vmem:[#allocation2 + $0xb2] sm:$0xff]
  %v471 = vpack.c.bf16 %v456, %v455
  %v472 = vpack.c.bf16 %v458, %v457
  %v473 = vpack.c.bf16 %v460, %v459
  %v474 = vpack.c.bf16 %v462, %v461
  %v475 = vpack.c.bf16 %v464, %v463
  %v476 = vpack.c.bf16 %v466, %v465
  %v477 = vpack.c.bf16 %v468, %v467
  %v478 = vpack.c.bf16 %v470, %v469
  %s479 = scalar_lea.vmem %s1, 48
  %v480 = vld [vmem:[%s479] sm:$0xff]
  %v481 = vld [vmem:[%s479 + $0x8] sm:$0xff]
  %v482 = vld [vmem:[%s479 + $0x10] sm:$0x33]
  %v486 = vunpack.c.l.b16 %v480
  %v487 = vunpack.c.h.b16 %v480
  %v488 = vunpack.c.l.b16 %v481
  %v489 = vunpack.c.h.b16 %v481
  %v490 = vunpack.c.l.b16 %v482
  %v491 = vunpack.c.h.b16 %v482
  %v492 = vpack.c.b16 %v488, %v486
  %v493 = vpack.c.b16 %v489, %v487
  %v494 = vpack.c.b16 %v490, %v490
  %v495 = vpack.c.b16 %v491, %v491
  %v499 = vsel %vm66, %v471, 0
  %v502 = vsel %vm66, %v472, 0
  %v505 = vsel %vm66, %v473, 0
  %v508 = vsel %vm66, %v474, 0
  %v511 = vsel %vm66, %v475, 0
  %v514 = vsel %vm66, %v476, 0
  %v517 = vsel %vm66, %v477, 0
  %v520 = vsel %vm66, %v478, 0
  %v523 = vsel %vm177, %v494, 0
  %v526 = vsel %vm177, %v495, 0
  %528 = vmatprep.subr.bf16.mxu0 %v493
  %529 = vmatpush1.bf16.msra.mxu0 %v492
  %530 = vmatprep.subr.bf16.mxu0 %v526
  %531 = vmatpush1.bf16.msra.mxu0 %v523
  %532 = vmatprep.subr.bf16.mxu0 0
  %533 = vmatpush1.bf16.msra.mxu0 0
  %534 = vmatprep.subr.bf16.mxu0 0
  %535 = vmatpush1.bf16.msra.mxu0 0
  %536 = vmatprep.subr.bf16.mxu0 0
  %537 = vmatpush1.bf16.msra.mxu0 0
  %538 = vmatprep.subr.bf16.mxu0 0
  %539 = vmatpush1.bf16.msra.mxu0 0
  %540 = vmatprep.subr.bf16.mxu0 0
  %541 = vmatpush1.bf16.msra.mxu0 0
  %542 = vmatprep.subr.bf16.mxu0 0
  %543 = vmatpush1.bf16.msra.mxu0 0
  %544 = vmatprep.subr.bf16.mxu0 0
  %545 = vmatpush1.bf16.msra.mxu0 0
  %546 = vmatprep.subr.bf16.mxu0 0
  %547 = vmatpush1.bf16.msra.mxu0 0
  %548 = vmatprep.subr.bf16.mxu0 0
  %549 = vmatpush1.bf16.msra.mxu0 0
  %550 = vmatprep.subr.bf16.mxu0 0
  %551 = vmatpush1.bf16.msra.mxu0 0
  %552 = vmatprep.subr.bf16.mxu0 0
  %553 = vmatpush1.bf16.msra.mxu0 0
  %554 = vmatprep.subr.bf16.mxu0 0
  %555 = vmatpush1.bf16.msra.mxu0 0
  %556 = vmatprep.subr.bf16.mxu0 0
  %557 = vmatpush1.bf16.msra.mxu0 0
  %558 = vmatprep.subr.bf16.mxu0 0
  %559 = vmatpush1.bf16.msra.mxu0 0
  %560 = vmatprep.mubr.bf16.mxu0 0
  %561 = vmatmul.mubr.bf16.gmra.mrb[0].mxu0 %v499
  %v562 = vpop.f32.mrb[0].mxu0
  %v563 = vadd.f32 0.0, %v562
  %v564 = vpop.f32.mrb[0].mxu0
  %v565 = vadd.f32 0.0, %v564
  %v566 = vpop.f32.mrb[0].mxu0
  %v567 = vadd.f32 0.0, %v566
  %v568 = vpop.f32.mrb[0].mxu0
  %v569 = vadd.f32 0.0, %v568
  %570 = vmatprep.mubr.bf16.mxu0 0
  %571 = vmatmul.mubr.bf16.gmra.mrb[0].mxu0 %v502
  %v572 = vpop.f32.mrb[0].mxu0
  %v573 = vadd.f32 0.0, %v572
  %v574 = vpop.f32.mrb[0].mxu0
  %v575 = vadd.f32 0.0, %v574
  %v576 = vpop.f32.mrb[0].mxu0
  %v577 = vadd.f32 0.0, %v576
  %v578 = vpop.f32.mrb[0].mxu0
  %v579 = vadd.f32 0.0, %v578
  %580 = vmatprep.mubr.bf16.mxu0 0
  %581 = vmatmul.mubr.bf16.gmra.mrb[0].mxu0 %v505
  %v582 = vpop.f32.mrb[0].mxu0
  %v583 = vadd.f32 0.0, %v582
  %v584 = vpop.f32.mrb[0].mxu0
  %v585 = vadd.f32 0.0, %v584
  %v586 = vpop.f32.mrb[0].mxu0
  %v587 = vadd.f32 0.0, %v586
  %v588 = vpop.f32.mrb[0].mxu0
  %v589 = vadd.f32 0.0, %v588
  %590 = vmatprep.mubr.bf16.mxu0 0
  %591 = vmatmul.mubr.bf16.gmra.mrb[0].mxu0 %v508
  %v592 = vpop.f32.mrb[0].mxu0
  %v593 = vadd.f32 0.0, %v592
  %v594 = vpop.f32.mrb[0].mxu0
  %v595 = vadd.f32 0.0, %v594
  %v596 = vpop.f32.mrb[0].mxu0
  %v597 = vadd.f32 0.0, %v596
  %v598 = vpop.f32.mrb[0].mxu0
  %v599 = vadd.f32 0.0, %v598
  %600 = vmatprep.mubr.bf16.mxu0 0
  %601 = vmatmul.mubr.bf16.gmra.mrb[0].mxu0 %v511
  %v602 = vpop.f32.mrb[0].mxu0
  %v603 = vadd.f32 0.0, %v602
  %v604 = vpop.f32.mrb[0].mxu0
  %v605 = vadd.f32 0.0, %v604
  %v606 = vpop.f32.mrb[0].mxu0
  %v607 = vadd.f32 0.0, %v606
  %v608 = vpop.f32.mrb[0].mxu0
  %v609 = vadd.f32 0.0, %v608
  %610 = vmatprep.mubr.bf16.mxu0 0
  %611 = vmatmul.mubr.bf16.gmra.mrb[0].mxu0 %v514
  %v612 = vpop.f32.mrb[0].mxu0
  %v613 = vadd.f32 0.0, %v612
  %v614 = vpop.f32.mrb[0].mxu0
  %v615 = vadd.f32 0.0, %v614
  %v616 = vpop.f32.mrb[0].mxu0
  %v617 = vadd.f32 0.0, %v616
  %v618 = vpop.f32.mrb[0].mxu0
  %v619 = vadd.f32 0.0, %v618
  %620 = vmatprep.mubr.bf16.mxu0 0
  %621 = vmatmul.mubr.bf16.gmra.mrb[0].mxu0 %v517
  %v622 = vpop.f32.mrb[0].mxu0
  %v623 = vadd.f32 0.0, %v622
  %v624 = vpop.f32.mrb[0].mxu0
  %v625 = vadd.f32 0.0, %v624
  %v626 = vpop.f32.mrb[0].mxu0
  %v627 = vadd.f32 0.0, %v626
  %v628 = vpop.f32.mrb[0].mxu0
  %v629 = vadd.f32 0.0, %v628
  %630 = vmatprep.mubr.bf16.mxu0 0
  %631 = vmatmul.mubr.bf16.gmra.mrb[0].mxu0 %v520
  %v632 = vpop.f32.mrb[0].mxu0
  %v633 = vadd.f32 0.0, %v632
  %v634 = vpop.f32.mrb[0].mxu0
  %v635 = vadd.f32 0.0, %v634
  %v636 = vpop.f32.mrb[0].mxu0
  %v637 = vadd.f32 0.0, %v636
  %v638 = vpop.f32.mrb[0].mxu0
  %v639 = vadd.f32 0.0, %v638
  %640 = vdwg.mxu0
  %v641 = vadd.f32 %v377, %v563
  %v642 = vadd.f32 %v379, %v565
  %v643 = vadd.f32 %v381, %v567
  %v644 = vadd.f32 %v383, %v569
  %v645 = vadd.f32 %v387, %v573
  %v646 = vadd.f32 %v389, %v575
  %v647 = vadd.f32 %v391, %v577
  %v648 = vadd.f32 %v393, %v579
  %v649 = vadd.f32 %v397, %v583
  %v650 = vadd.f32 %v399, %v585
  %v651 = vadd.f32 %v401, %v587
  %v652 = vadd.f32 %v403, %v589
  %v653 = vadd.f32 %v407, %v593
  %v654 = vadd.f32 %v409, %v595
  %v655 = vadd.f32 %v411, %v597
  %v656 = vadd.f32 %v413, %v599
  %v657 = vadd.f32 %v417, %v603
  %v658 = vadd.f32 %v419, %v605
  %v659 = vadd.f32 %v421, %v607
  %v660 = vadd.f32 %v423, %v609
  %v661 = vadd.f32 %v427, %v613
  %v662 = vadd.f32 %v429, %v615
  %v663 = vadd.f32 %v431, %v617
  %v664 = vadd.f32 %v433, %v619
  %v665 = vadd.f32 %v437, %v623
  %v666 = vadd.f32 %v439, %v625
  %v667 = vadd.f32 %v441, %v627
  %v668 = vadd.f32 %v443, %v629
  %v669 = vadd.f32 %v447, %v633
  %v670 = vadd.f32 %v449, %v635
  %v671 = vadd.f32 %v451, %v637
  %v672 = vadd.f32 %v453, %v639
  %v673 = vld [vmem:[%s2] sm:$0x3]
  %v675 = vlaneseq
  %v676 = vshrl.u32 %v675, 7
  %v677 = vsub.s32 0, %v676
  %v678 = vrot.slane %v673, %v677
  %v679 = vlaneseq
  %v680 = vshrl.u32 %v679, 7
  %v681 = vsub.s32 1, %v680
  %v682 = vrot.slane %v673, %v681
  %v685 = vadd.f32 %v641, %v678
  %v686 = vadd.f32 %v642, %v682
  %v687 = vadd.f32 %v643, %v678
  %v688 = vadd.f32 %v644, %v682
  %v689 = vadd.f32 %v645, %v678
  %v690 = vadd.f32 %v646, %v682
  %v691 = vadd.f32 %v647, %v678
  %v692 = vadd.f32 %v648, %v682
  %v693 = vadd.f32 %v649, %v678
  %v694 = vadd.f32 %v650, %v682
  %v695 = vadd.f32 %v651, %v678
  %v696 = vadd.f32 %v652, %v682
  %v697 = vadd.f32 %v653, %v678
  %v698 = vadd.f32 %v654, %v682
  %v699 = vadd.f32 %v655, %v678
  %v700 = vadd.f32 %v656, %v682
  %v701 = vadd.f32 %v657, %v678
  %v702 = vadd.f32 %v658, %v682
  %v703 = vadd.f32 %v659, %v678
  %v704 = vadd.f32 %v660, %v682
  %v705 = vadd.f32 %v661, %v678
  %v706 = vadd.f32 %v662, %v682
  %v707 = vadd.f32 %v663, %v678
  %v708 = vadd.f32 %v664, %v682
  %v709 = vadd.f32 %v665, %v678
  %v710 = vadd.f32 %v666, %v682
  %v711 = vadd.f32 %v667, %v678
  %v712 = vadd.f32 %v668, %v682
  %v713 = vadd.f32 %v669, %v678
  %v714 = vadd.f32 %v670, %v682
  %v715 = vadd.f32 %v671, %v678
  %v716 = vadd.f32 %v672, %v682
  %v717 = vmax.f32 %v685, 0.0
  %v718 = vmax.f32 %v686, 0.0
  %v719 = vmax.f32 %v687, 0.0
  %v720 = vmax.f32 %v688, 0.0
  %v721 = vmax.f32 %v689, 0.0
  %v722 = vmax.f32 %v690, 0.0
  %v723 = vmax.f32 %v691, 0.0
  %v724 = vmax.f32 %v692, 0.0
  %v725 = vmax.f32 %v693, 0.0
  %v726 = vmax.f32 %v694, 0.0
  %v727 = vmax.f32 %v695, 0.0
  %v728 = vmax.f32 %v696, 0.0
  %v729 = vmax.f32 %v697, 0.0
  %v730 = vmax.f32 %v698, 0.0
  %v731 = vmax.f32 %v699, 0.0
  %v732 = vmax.f32 %v700, 0.0
  %v733 = vmax.f32 %v701, 0.0
  %v734 = vmax.f32 %v702, 0.0
  %v735 = vmax.f32 %v703, 0.0
  %v736 = vmax.f32 %v704, 0.0
  %v737 = vmax.f32 %v705, 0.0
  %v738 = vmax.f32 %v706, 0.0
  %v739 = vmax.f32 %v707, 0.0
  %v740 = vmax.f32 %v708, 0.0
  %v741 = vmax.f32 %v709, 0.0
  %v742 = vmax.f32 %v710, 0.0
  %v743 = vmax.f32 %v711, 0.0
  %v744 = vmax.f32 %v712, 0.0
  %v745 = vmax.f32 %v713, 0.0
  %v746 = vmax.f32 %v714, 0.0
  %v747 = vmax.f32 %v715, 0.0
  %v748 = vmax.f32 %v716, 0.0
  %v749 = vpack.c.bf16 %v719, %v717
  %v750 = vpack.c.bf16 %v720, %v718
  %v751 = vpack.c.bf16 %v723, %v721
  %v752 = vpack.c.bf16 %v724, %v722
  %v753 = vpack.c.bf16 %v727, %v725
  %v754 = vpack.c.bf16 %v728, %v726
  %v755 = vpack.c.bf16 %v731, %v729
  %v756 = vpack.c.bf16 %v732, %v730
  %v757 = vpack.c.bf16 %v735, %v733
  %v758 = vpack.c.bf16 %v736, %v734
  %v759 = vpack.c.bf16 %v739, %v737
  %v760 = vpack.c.bf16 %v740, %v738
  %v761 = vpack.c.bf16 %v743, %v741
  %v762 = vpack.c.bf16 %v744, %v742
  %v763 = vpack.c.bf16 %v747, %v745
  %v764 = vpack.c.bf16 %v748, %v746
  %v765 = vld [vmem:[%s3] sm:$0xff]
  %v766 = vld [vmem:[%s3 + $0x8] sm:$0xff]
  %v767 = vld [vmem:[%s3 + $0x10] sm:$0xf]
  %v768 = vld [vmem:[%s3 + $0x14] sm:$0xff]
  %v769 = vld [vmem:[%s3 + $0x1c] sm:$0xff]
  %v770 = vld [vmem:[%s3 + $0x24] sm:$0xf]
  %v771 = vld [vmem:[%s3 + $0x28] sm:$0xff]
  %v772 = vld [vmem:[%s3 + $0x30] sm:$0xff]
  %v773 = vld [vmem:[%s3 + $0x38] sm:$0xf]
  %v774 = vld [vmem:[%s3 + $0x3c] sm:$0xff]
  %v775 = vld [vmem:[%s3 + $0x44] sm:$0xff]
  %v776 = vld [vmem:[%s3 + $0x4c] sm:$0xf]
  %v777 = vld [vmem:[%s3 + $0x50] sm:$0xff]
  %v778 = vld [vmem:[%s3 + $0x58] sm:$0xff]
  %v779 = vld [vmem:[%s3 + $0x60] sm:$0xf]
  %v780 = vld [vmem:[%s3 + $0x64] sm:$0xff]
  %v781 = vld [vmem:[%s3 + $0x6c] sm:$0xff]
  %v782 = vld [vmem:[%s3 + $0x74] sm:$0xf]
  %v783 = vld [vmem:[%s3 + $0x78] sm:$0xff]
  %v784 = vld [vmem:[%s3 + $0x80] sm:$0xff]
  %v785 = vld [vmem:[%s3 + $0x88] sm:$0xf]
  %v786 = vld [vmem:[%s3 + $0x8c] sm:$0xff]
  %v787 = vld [vmem:[%s3 + $0x94] sm:$0xff]
  %v788 = vld [vmem:[%s3 + $0x9c] sm:$0xf]
  %v789 = vld [vmem:[%s3 + $0xa0] sm:$0xff]
  %v790 = vld [vmem:[%s3 + $0xa8] sm:$0xff]
  %v791 = vld [vmem:[%s3 + $0xb0] sm:$0xf]
  %v792 = vld [vmem:[%s3 + $0xb4] sm:$0xff]
  %v793 = vld [vmem:[%s3 + $0xbc] sm:$0xff]
  %v794 = vld [vmem:[%s3 + $0xc4] sm:$0xf]
  %v795 = vld [vmem:[%s3 + $0xc8] sm:$0xff]
  %v796 = vld [vmem:[%s3 + $0xd0] sm:$0xff]
  %v797 = vld [vmem:[%s3 + $0xd8] sm:$0xf]
  %v798 = vld [vmem:[%s3 + $0xdc] sm:$0xff]
  %v799 = vld [vmem:[%s3 + $0xe4] sm:$0xff]
  %v800 = vld [vmem:[%s3 + $0xec] sm:$0xf]
  %v801 = vld [vmem:[%s3 + $0xf0] sm:$0xff]
  %v802 = vld [vmem:[%s3 + $0xf8] sm:$0xff]
  %v803 = vld [vmem:[%s3 + $0x100] sm:$0xf]
  %v804 = vld [vmem:[%s3 + $0x104] sm:$0xff]
  %v805 = vld [vmem:[%s3 + $0x10c] sm:$0xff]
  %v806 = vld [vmem:[%s3 + $0x114] sm:$0xf]
  %v807 = vld [vmem:[%s3 + $0x118] sm:$0xff]
  %v808 = vld [vmem:[%s3 + $0x120] sm:$0xff]
  %v809 = vld [vmem:[%s3 + $0x128] sm:$0xf]
  %v810 = vld [vmem:[%s3 + $0x12c] sm:$0xff]
  %v811 = vld [vmem:[%s3 + $0x134] sm:$0xff]
  %v812 = vld [vmem:[%s3 + $0x13c] sm:$0xf]
  %v813 = vld [vmem:[%s3 + $0x140] sm:$0xff]
  %v814 = vld [vmem:[%s3 + $0x148] sm:$0xff]
  %v815 = vld [vmem:[%s3 + $0x150] sm:$0xf]
  %v816 = vld [vmem:[%s3 + $0x154] sm:$0xff]
  %v817 = vld [vmem:[%s3 + $0x15c] sm:$0xff]
  %v818 = vld [vmem:[%s3 + $0x164] sm:$0xf]
  %v819 = vld [vmem:[%s3 + $0x168] sm:$0xff]
  %v820 = vld [vmem:[%s3 + $0x170] sm:$0xff]
  %v821 = vld [vmem:[%s3 + $0x178] sm:$0xf]
  %v822 = vld [vmem:[%s3 + $0x17c] sm:$0xff]
  %v823 = vld [vmem:[%s3 + $0x184] sm:$0xff]
  %v824 = vld [vmem:[%s3 + $0x18c] sm:$0xf]
  %v885 = vunpack.c.l.b16 %v765
  %v886 = vunpack.c.h.b16 %v765
  %v887 = vunpack.c.l.b16 %v766
  %v888 = vunpack.c.h.b16 %v766
  %v889 = vunpack.c.l.b16 %v767
  %v890 = vunpack.c.l.b16 %v768
  %v891 = vunpack.c.h.b16 %v768
  %v892 = vunpack.c.l.b16 %v769
  %v893 = vunpack.c.h.b16 %v769
  %v894 = vunpack.c.l.b16 %v770
  %v895 = vunpack.c.l.b16 %v771
  %v896 = vunpack.c.h.b16 %v771
  %v897 = vunpack.c.l.b16 %v772
  %v898 = vunpack.c.h.b16 %v772
  %v899 = vunpack.c.l.b16 %v773
  %v900 = vunpack.c.l.b16 %v774
  %v901 = vunpack.c.h.b16 %v774
  %v902 = vunpack.c.l.b16 %v775
  %v903 = vunpack.c.h.b16 %v775
  %v904 = vunpack.c.l.b16 %v776
  %v905 = vunpack.c.l.b16 %v777
  %v906 = vunpack.c.h.b16 %v777
  %v907 = vunpack.c.l.b16 %v778
  %v908 = vunpack.c.h.b16 %v778
  %v909 = vunpack.c.l.b16 %v779
  %v910 = vunpack.c.l.b16 %v780
  %v911 = vunpack.c.h.b16 %v780
  %v912 = vunpack.c.l.b16 %v781
  %v913 = vunpack.c.h.b16 %v781
  %v914 = vunpack.c.l.b16 %v782
  %v915 = vunpack.c.l.b16 %v783
  %v916 = vunpack.c.h.b16 %v783
  %v917 = vunpack.c.l.b16 %v784
  %v918 = vunpack.c.h.b16 %v784
  %v919 = vunpack.c.l.b16 %v785
  %v920 = vunpack.c.l.b16 %v786
  %v921 = vunpack.c.h.b16 %v786
  %v922 = vunpack.c.l.b16 %v787
  %v923 = vunpack.c.h.b16 %v787
  %v924 = vunpack.c.l.b16 %v788
  %v925 = vunpack.c.l.b16 %v789
  %v926 = vunpack.c.h.b16 %v789
  %v927 = vunpack.c.l.b16 %v790
  %v928 = vunpack.c.h.b16 %v790
  %v929 = vunpack.c.l.b16 %v791
  %v930 = vunpack.c.l.b16 %v792
  %v931 = vunpack.c.h.b16 %v792
  %v932 = vunpack.c.l.b16 %v793
  %v933 = vunpack.c.h.b16 %v793
  %v934 = vunpack.c.l.b16 %v794
  %v935 = vunpack.c.l.b16 %v795
  %v936 = vunpack.c.h.b16 %v795
  %v937 = vunpack.c.l.b16 %v796
  %v938 = vunpack.c.h.b16 %v796
  %v939 = vunpack.c.l.b16 %v797
  %v940 = vunpack.c.l.b16 %v798
  %v941 = vunpack.c.h.b16 %v798
  %v942 = vunpack.c.l.b16 %v799
  %v943 = vunpack.c.h.b16 %v799
  %v944 = vunpack.c.l.b16 %v800
  %v945 = vunpack.c.l.b16 %v801
  %v946 = vunpack.c.h.b16 %v801
  %v947 = vunpack.c.l.b16 %v802
  %v948 = vunpack.c.h.b16 %v802
  %v949 = vunpack.c.l.b16 %v803
  %v950 = vunpack.c.l.b16 %v804
  %v951 = vunpack.c.h.b16 %v804
  %v952 = vunpack.c.l.b16 %v805
  %v953 = vunpack.c.h.b16 %v805
  %v954 = vunpack.c.l.b16 %v806
  %v955 = vunpack.c.l.b16 %v807
  %v956 = vunpack.c.h.b16 %v807
  %v957 = vunpack.c.l.b16 %v808
  %v958 = vunpack.c.h.b16 %v808
  %v959 = vunpack.c.l.b16 %v809
  %v960 = vunpack.c.l.b16 %v810
  %v961 = vunpack.c.h.b16 %v810
  %v962 = vunpack.c.l.b16 %v811
  %v963 = vunpack.c.h.b16 %v811
  %v964 = vunpack.c.l.b16 %v812
  %v965 = vunpack.c.l.b16 %v813
  %v966 = vunpack.c.h.b16 %v813
  %v967 = vunpack.c.l.b16 %v814
  %v968 = vunpack.c.h.b16 %v814
  %v969 = vunpack.c.l.b16 %v815
  %v970 = vunpack.c.l.b16 %v816
  %v971 = vunpack.c.h.b16 %v816
  %v972 = vunpack.c.l.b16 %v817
  %v973 = vunpack.c.h.b16 %v817
  %v974 = vunpack.c.l.b16 %v818
  %v975 = vunpack.c.l.b16 %v819
  %v976 = vunpack.c.h.b16 %v819
  %v977 = vunpack.c.l.b16 %v820
  %v978 = vunpack.c.h.b16 %v820
  %v979 = vunpack.c.l.b16 %v821
  %v980 = vunpack.c.l.b16 %v822
  %v981 = vunpack.c.h.b16 %v822
  %v982 = vunpack.c.l.b16 %v823
  %v983 = vunpack.c.h.b16 %v823
  %v984 = vunpack.c.l.b16 %v824
  %v985 = vpack.c.b16 %v890, %v885
  %v986 = vpack.c.b16 %v891, %v886
  %v987 = vpack.c.b16 %v892, %v887
  %v988 = vpack.c.b16 %v893, %v888
  %v989 = vpack.c.b16 %v894, %v889
  %v990 = vpack.c.b16 %v900, %v895
  %v991 = vpack.c.b16 %v901, %v896
  %v992 = vpack.c.b16 %v902, %v897
  %v993 = vpack.c.b16 %v903, %v898
  %v994 = vpack.c.b16 %v904, %v899
  %v995 = vpack.c.b16 %v910, %v905
  %v996 = vpack.c.b16 %v911, %v906
  %v997 = vpack.c.b16 %v912, %v907
  %v998 = vpack.c.b16 %v913, %v908
  %v999 = vpack.c.b16 %v914, %v909
  %v1000 = vpack.c.b16 %v920, %v915
  %v1001 = vpack.c.b16 %v921, %v916
  %v1002 = vpack.c.b16 %v922, %v917
  %v1003 = vpack.c.b16 %v923, %v918
  %v1004 = vpack.c.b16 %v924, %v919
  %v1005 = vpack.c.b16 %v930, %v925
  %v1006 = vpack.c.b16 %v931, %v926
  %v1007 = vpack.c.b16 %v932, %v927
  %v1008 = vpack.c.b16 %v933, %v928
  %v1009 = vpack.c.b16 %v934, %v929
  %v1010 = vpack.c.b16 %v940, %v935
  %v1011 = vpack.c.b16 %v941, %v936
  %v1012 = vpack.c.b16 %v942, %v937
  %v1013 = vpack.c.b16 %v943, %v938
  %v1014 = vpack.c.b16 %v944, %v939
  %v1015 = vpack.c.b16 %v950, %v945
  %v1016 = vpack.c.b16 %v951, %v946
  %v1017 = vpack.c.b16 %v952, %v947
  %v1018 = vpack.c.b16 %v953, %v948
  %v1019 = vpack.c.b16 %v954, %v949
  %v1020 = vpack.c.b16 %v960, %v955
  %v1021 = vpack.c.b16 %v961, %v956
  %v1022 = vpack.c.b16 %v962, %v957
  %v1023 = vpack.c.b16 %v963, %v958
  %v1024 = vpack.c.b16 %v964, %v959
  %v1025 = vpack.c.b16 %v970, %v965
  %v1026 = vpack.c.b16 %v971, %v966
  %v1027 = vpack.c.b16 %v972, %v967
  %v1028 = vpack.c.b16 %v973, %v968
  %v1029 = vpack.c.b16 %v974, %v969
  %v1030 = vpack.c.b16 %v980, %v975
  %v1031 = vpack.c.b16 %v981, %v976
  %v1032 = vpack.c.b16 %v982, %v977
  %v1033 = vpack.c.b16 %v983, %v978
  %v1034 = vpack.c.b16 %v984, %v979
  %vm1085 = vcmask 261120
  %v1087 = vsel %vm1085, %v750, 0
  %v1090 = vsel %vm1085, %v752, 0
  %v1093 = vsel %vm1085, %v754, 0
  %v1096 = vsel %vm1085, %v756, 0
  %v1099 = vsel %vm1085, %v758, 0
  %v1102 = vsel %vm1085, %v760, 0
  %v1105 = vsel %vm1085, %v762, 0
  %v1108 = vsel %vm1085, %v764, 0
  %1110 = vmatprep.subr.bf16.mxu0 %v986
  %1111 = vmatpush1.bf16.msra.mxu0 %v985
  %1112 = vmatprep.subr.bf16.mxu0 %v991
  %1113 = vmatpush1.bf16.msra.mxu0 %v990
  %1114 = vmatprep.subr.bf16.mxu0 %v996
  %1115 = vmatpush1.bf16.msra.mxu0 %v995
  %1116 = vmatprep.subr.bf16.mxu0 %v1001
  %1117 = vmatpush1.bf16.msra.mxu0 %v1000
  %1118 = vmatprep.subr.bf16.mxu0 %v1006
  %1119 = vmatpush1.bf16.msra.mxu0 %v1005
  %1120 = vmatprep.subr.bf16.mxu0 %v1011
  %1121 = vmatpush1.bf16.msra.mxu0 %v1010
  %1122 = vmatprep.subr.bf16.mxu0 %v1016
  %1123 = vmatpush1.bf16.msra.mxu0 %v1015
  %1124 = vmatprep.subr.bf16.mxu0 %v1021
  %1125 = vmatpush1.bf16.msra.mxu0 %v1020
  %1126 = vmatprep.subr.bf16.mxu0 %v1026
  %1127 = vmatpush1.bf16.msra.mxu0 %v1025
  %1128 = vmatprep.subr.bf16.mxu0 %v1031
  %1129 = vmatpush1.bf16.msra.mxu0 %v1030
  %1130 = vmatprep.subr.bf16.mxu0 0
  %1131 = vmatpush1.bf16.msra.mxu0 0
  %1132 = vmatprep.subr.bf16.mxu0 0
  %1133 = vmatpush1.bf16.msra.mxu0 0
  %1134 = vmatprep.subr.bf16.mxu0 0
  %1135 = vmatpush1.bf16.msra.mxu0 0
  %1136 = vmatprep.subr.bf16.mxu0 0
  %1137 = vmatpush1.bf16.msra.mxu0 0
  %1138 = vmatprep.subr.bf16.mxu0 0
  %1139 = vmatpush1.bf16.msra.mxu0 0
  %1140 = vmatprep.subr.bf16.mxu0 0
  %1141 = vmatpush1.bf16.msra.mxu0 0
  %1142 = vmatprep.mubr.bf16.mxu0 %v1087
  %1143 = vmatmul.mubr.bf16.gmra.mrb[0].mxu0 %v749
  %v1144 = vpop.f32.mrb[0].mxu0
  %v1145 = vadd.f32 0.0, %v1144
  %v1146 = vpop.f32.mrb[0].mxu0
  %v1147 = vadd.f32 0.0, %v1146
  %v1148 = vpop.f32.mrb[0].mxu0
  %v1149 = vadd.f32 0.0, %v1148
  %v1150 = vpop.f32.mrb[0].mxu0
  %v1151 = vadd.f32 0.0, %v1150
  %1152 = vmatprep.mubr.bf16.mxu0 %v1090
  %1153 = vmatmul.mubr.bf16.gmra.mrb[0].mxu0 %v751
  %v1154 = vpop.f32.mrb[0].mxu0
  %v1155 = vadd.f32 0.0, %v1154
  %v1156 = vpop.f32.mrb[0].mxu0
  %v1157 = vadd.f32 0.0, %v1156
  %v1158 = vpop.f32.mrb[0].mxu0
  %v1159 = vadd.f32 0.0, %v1158
  %v1160 = vpop.f32.mrb[0].mxu0
  %v1161 = vadd.f32 0.0, %v1160
  %1162 = vmatprep.mubr.bf16.mxu0 %v1093
  %1163 = vmatmul.mubr.bf16.gmra.mrb[0].mxu0 %v753
  %v1164 = vpop.f32.mrb[0].mxu0
  %v1165 = vadd.f32 0.0, %v1164
  %v1166 = vpop.f32.mrb[0].mxu0
  %v1167 = vadd.f32 0.0, %v1166
  %v1168 = vpop.f32.mrb[0].mxu0
  %v1169 = vadd.f32 0.0, %v1168
  %v1170 = vpop.f32.mrb[0].mxu0
  %v1171 = vadd.f32 0.0, %v1170
  %1172 = vmatprep.mubr.bf16.mxu0 %v1096
  %1173 = vmatmul.mubr.bf16.gmra.mrb[0].mxu0 %v755
  %v1174 = vpop.f32.mrb[0].mxu0
  %v1175 = vadd.f32 0.0, %v1174
  %v1176 = vpop.f32.mrb[0].mxu0
  %v1177 = vadd.f32 0.0, %v1176
  %v1178 = vpop.f32.mrb[0].mxu0
  %v1179 = vadd.f32 0.0, %v1178
  %v1180 = vpop.f32.mrb[0].mxu0
  %v1181 = vadd.f32 0.0, %v1180
  %1182 = vmatprep.mubr.bf16.mxu0 %v1099
  %1183 = vmatmul.mubr.bf16.gmra.mrb[0].mxu0 %v757
  %v1184 = vpop.f32.mrb[0].mxu0
  %v1185 = vadd.f32 0.0, %v1184
  %v1186 = vpop.f32.mrb[0].mxu0
  %v1187 = vadd.f32 0.0, %v1186
  %v1188 = vpop.f32.mrb[0].mxu0
  %v1189 = vadd.f32 0.0, %v1188
  %v1190 = vpop.f32.mrb[0].mxu0
  %v1191 = vadd.f32 0.0, %v1190
  %1192 = vmatprep.mubr.bf16.mxu0 %v1102
  %1193 = vmatmul.mubr.bf16.gmra.mrb[0].mxu0 %v759
  %v1194 = vpop.f32.mrb[0].mxu0
  %v1195 = vadd.f32 0.0, %v1194
  %v1196 = vpop.f32.mrb[0].mxu0
  %v1197 = vadd.f32 0.0, %v1196
  %v1198 = vpop.f32.mrb[0].mxu0
  %v1199 = vadd.f32 0.0, %v1198
  %v1200 = vpop.f32.mrb[0].mxu0
  %v1201 = vadd.f32 0.0, %v1200
  %1202 = vmatprep.mubr.bf16.mxu0 %v1105
  %1203 = vmatmul.mubr.bf16.gmra.mrb[0].mxu0 %v761
  %v1204 = vpop.f32.mrb[0].mxu0
  %v1205 = vadd.f32 0.0, %v1204
  %v1206 = vpop.f32.mrb[0].mxu0
  %v1207 = vadd.f32 0.0, %v1206
  %v1208 = vpop.f32.mrb[0].mxu0
  %v1209 = vadd.f32 0.0, %v1208
  %v1210 = vpop.f32.mrb[0].mxu0
  %v1211 = vadd.f32 0.0, %v1210
  %1212 = vmatprep.mubr.bf16.mxu0 %v1108
  %1213 = vmatmul.mubr.bf16.gmra.mrb[0].mxu0 %v763
  %v1214 = vpop.f32.mrb[0].mxu0
  %v1215 = vadd.f32 0.0, %v1214
  %v1216 = vpop.f32.mrb[0].mxu0
  %v1217 = vadd.f32 0.0, %v1216
  %v1218 = vpop.f32.mrb[0].mxu0
  %v1219 = vadd.f32 0.0, %v1218
  %v1220 = vpop.f32.mrb[0].mxu0
  %v1221 = vadd.f32 0.0, %v1220
  %1222 = vdwg.mxu0
  %1223 = vmatprep.subr.bf16.mxu0 %v988
  %1224 = vmatpush1.bf16.msra.mxu0 %v987
  %1225 = vmatprep.subr.bf16.mxu0 %v993
  %1226 = vmatpush1.bf16.msra.mxu0 %v992
  %1227 = vmatprep.subr.bf16.mxu0 %v998
  %1228 = vmatpush1.bf16.msra.mxu0 %v997
  %1229 = vmatprep.subr.bf16.mxu0 %v1003
  %1230 = vmatpush1.bf16.msra.mxu0 %v1002
  %1231 = vmatprep.subr.bf16.mxu0 %v1008
  %1232 = vmatpush1.bf16.msra.mxu0 %v1007
  %1233 = vmatprep.subr.bf16.mxu0 %v1013
  %1234 = vmatpush1.bf16.msra.mxu0 %v1012
  %1235 = vmatprep.subr.bf16.mxu0 %v1018
  %1236 = vmatpush1.bf16.msra.mxu0 %v1017
  %1237 = vmatprep.subr.bf16.mxu0 %v1023
  %1238 = vmatpush1.bf16.msra.mxu0 %v1022
  %1239 = vmatprep.subr.bf16.mxu0 %v1028
  %1240 = vmatpush1.bf16.msra.mxu0 %v1027
  %1241 = vmatprep.subr.bf16.mxu0 %v1033
  %1242 = vmatpush1.bf16.msra.mxu0 %v1032
  %1243 = vmatprep.subr.bf16.mxu0 0
  %1244 = vmatpush1.bf16.msra.mxu0 0
  %1245 = vmatprep.subr.bf16.mxu0 0
  %1246 = vmatpush1.bf16.msra.mxu0 0
  %1247 = vmatprep.subr.bf16.mxu0 0
  %1248 = vmatpush1.bf16.msra.mxu0 0
  %1249 = vmatprep.subr.bf16.mxu0 0
  %1250 = vmatpush1.bf16.msra.mxu0 0
  %1251 = vmatprep.subr.bf16.mxu0 0
  %1252 = vmatpush1.bf16.msra.mxu0 0
  %1253 = vmatprep.subr.bf16.mxu0 0
  %1254 = vmatpush1.bf16.msra.mxu0 0
  %1255 = vmatprep.mubr.bf16.mxu0 %v1087
  %1256 = vmatmul.mubr.bf16.gmra.mrb[0].mxu0 %v749
  %v1257 = vpop.f32.mrb[0].mxu0
  %v1258 = vadd.f32 0.0, %v1257
  %v1259 = vpop.f32.mrb[0].mxu0
  %v1260 = vadd.f32 0.0, %v1259
  %v1261 = vpop.f32.mrb[0].mxu0
  %v1262 = vadd.f32 0.0, %v1261
  %v1263 = vpop.f32.mrb[0].mxu0
  %v1264 = vadd.f32 0.0, %v1263
  %1265 = vmatprep.mubr.bf16.mxu0 %v1090
  %1266 = vmatmul.mubr.bf16.gmra.mrb[0].mxu0 %v751
  %v1267 = vpop.f32.mrb[0].mxu0
  %v1268 = vadd.f32 0.0, %v1267
  %v1269 = vpop.f32.mrb[0].mxu0
  %v1270 = vadd.f32 0.0, %v1269
  %v1271 = vpop.f32.mrb[0].mxu0
  %v1272 = vadd.f32 0.0, %v1271
  %v1273 = vpop.f32.mrb[0].mxu0
  %v1274 = vadd.f32 0.0, %v1273
  %1275 = vmatprep.mubr.bf16.mxu0 %v1093
  %1276 = vmatmul.mubr.bf16.gmra.mrb[0].mxu0 %v753
  %v1277 = vpop.f32.mrb[0].mxu0
  %v1278 = vadd.f32 0.0, %v1277
  %v1279 = vpop.f32.mrb[0].mxu0
  %v1280 = vadd.f32 0.0, %v1279
  %v1281 = vpop.f32.mrb[0].mxu0
  %v1282 = vadd.f32 0.0, %v1281
  %v1283 = vpop.f32.mrb[0].mxu0
  %v1284 = vadd.f32 0.0, %v1283
  %1285 = vmatprep.mubr.bf16.mxu0 %v1096
  %1286 = vmatmul.mubr.bf16.gmra.mrb[0].mxu0 %v755
  %v1287 = vpop.f32.mrb[0].mxu0
  %v1288 = vadd.f32 0.0, %v1287
  %v1289 = vpop.f32.mrb[0].mxu0
  %v1290 = vadd.f32 0.0, %v1289
  %v1291 = vpop.f32.mrb[0].mxu0
  %v1292 = vadd.f32 0.0, %v1291
  %v1293 = vpop.f32.mrb[0].mxu0
  %v1294 = vadd.f32 0.0, %v1293
  %1295 = vmatprep.mubr.bf16.mxu0 %v1099
  %1296 = vmatmul.mubr.bf16.gmra.mrb[0].mxu0 %v757
  %v1297 = vpop.f32.mrb[0].mxu0
  %v1298 = vadd.f32 0.0, %v1297
  %v1299 = vpop.f32.mrb[0].mxu0
  %v1300 = vadd.f32 0.0, %v1299
  %v1301 = vpop.f32.mrb[0].mxu0
  %v1302 = vadd.f32 0.0, %v1301
  %v1303 = vpop.f32.mrb[0].mxu0
  %v1304 = vadd.f32 0.0, %v1303
  %1305 = vmatprep.mubr.bf16.mxu0 %v1102
  %1306 = vmatmul.mubr.bf16.gmra.mrb[0].mxu0 %v759
  %v1307 = vpop.f32.mrb[0].mxu0
  %v1308 = vadd.f32 0.0, %v1307
  %v1309 = vpop.f32.mrb[0].mxu0
  %v1310 = vadd.f32 0.0, %v1309
  %v1311 = vpop.f32.mrb[0].mxu0
  %v1312 = vadd.f32 0.0, %v1311
  %v1313 = vpop.f32.mrb[0].mxu0
  %v1314 = vadd.f32 0.0, %v1313
  %1315 = vmatprep.mubr.bf16.mxu0 %v1105
  %1316 = vmatmul.mubr.bf16.gmra.mrb[0].mxu0 %v761
  %v1317 = vpop.f32.mrb[0].mxu0
  %v1318 = vadd.f32 0.0, %v1317
  %v1319 = vpop.f32.mrb[0].mxu0
  %v1320 = vadd.f32 0.0, %v1319
  %v1321 = vpop.f32.mrb[0].mxu0
  %v1322 = vadd.f32 0.0, %v1321
  %v1323 = vpop.f32.mrb[0].mxu0
  %v1324 = vadd.f32 0.0, %v1323
  %1325 = vmatprep.mubr.bf16.mxu0 %v1108
  %1326 = vmatmul.mubr.bf16.gmra.mrb[0].mxu0 %v763
  %v1327 = vpop.f32.mrb[0].mxu0
  %v1328 = vadd.f32 0.0, %v1327
  %v1329 = vpop.f32.mrb[0].mxu0
  %v1330 = vadd.f32 0.0, %v1329
  %v1331 = vpop.f32.mrb[0].mxu0
  %v1332 = vadd.f32 0.0, %v1331
  %v1333 = vpop.f32.mrb[0].mxu0
  %v1334 = vadd.f32 0.0, %v1333
  %1335 = vdwg.mxu0
  %1336 = vmatprep.subr.bf16.mxu0 0
  %1337 = vmatpush1.bf16.msra.mxu0 %v989
  %1338 = vmatprep.subr.bf16.mxu0 0
  %1339 = vmatpush1.bf16.msra.mxu0 %v994
  %1340 = vmatprep.subr.bf16.mxu0 0
  %1341 = vmatpush1.bf16.msra.mxu0 %v999
  %1342 = vmatprep.subr.bf16.mxu0 0
  %1343 = vmatpush1.bf16.msra.mxu0 %v1004
  %1344 = vmatprep.subr.bf16.mxu0 0
  %1345 = vmatpush1.bf16.msra.mxu0 %v1009
  %1346 = vmatprep.subr.bf16.mxu0 0
  %1347 = vmatpush1.bf16.msra.mxu0 %v1014
  %1348 = vmatprep.subr.bf16.mxu0 0
  %1349 = vmatpush1.bf16.msra.mxu0 %v1019
  %1350 = vmatprep.subr.bf16.mxu0 0
  %1351 = vmatpush1.bf16.msra.mxu0 %v1024
  %1352 = vmatprep.subr.bf16.mxu0 0
  %1353 = vmatpush1.bf16.msra.mxu0 %v1029
  %1354 = vmatprep.subr.bf16.mxu0 0
  %1355 = vmatpush1.bf16.msra.mxu0 %v1034
  %1356 = vmatprep.subr.bf16.mxu0 0
  %1357 = vmatpush1.bf16.msra.mxu0 0
  %1358 = vmatprep.subr.bf16.mxu0 0
  %1359 = vmatpush1.bf16.msra.mxu0 0
  %1360 = vmatprep.subr.bf16.mxu0 0
  %1361 = vmatpush1.bf16.msra.mxu0 0
  %1362 = vmatprep.subr.bf16.mxu0 0
  %1363 = vmatpush1.bf16.msra.mxu0 0
  %1364 = vmatprep.subr.bf16.mxu0 0
  %1365 = vmatpush1.bf16.msra.mxu0 0
  %1366 = vmatprep.subr.bf16.mxu0 0
  %1367 = vmatpush1.bf16.msra.mxu0 0
  %1368 = vmatprep.mubr.bf16.mxu0 %v1087
  %1369 = vmatmul.mubr.bf16.gmra.mrb[0].mxu0 %v749
  %v1370 = vpop.f32.mrb[0].mxu0
  %v1371 = vadd.f32 0.0, %v1370
  %v1372 = vpop.f32.mrb[0].mxu0
  %v1373 = vpop.f32.mrb[0].mxu0
  %v1374 = vadd.f32 0.0, %v1373
  %v1375 = vpop.f32.mrb[0].mxu0
  %1376 = vmatprep.mubr.bf16.mxu0 %v1090
  %1377 = vmatmul.mubr.bf16.gmra.mrb[0].mxu0 %v751
  %v1378 = vpop.f32.mrb[0].mxu0
  %v1379 = vadd.f32 0.0, %v1378
  %v1380 = vpop.f32.mrb[0].mxu0
  %v1381 = vpop.f32.mrb[0].mxu0
  %v1382 = vadd.f32 0.0, %v1381
  %v1383 = vpop.f32.mrb[0].mxu0
  %1384 = vmatprep.mubr.bf16.mxu0 %v1093
  %1385 = vmatmul.mubr.bf16.gmra.mrb[0].mxu0 %v753
  %v1386 = vpop.f32.mrb[0].mxu0
  %v1387 = vadd.f32 0.0, %v1386
  %v1388 = vpop.f32.mrb[0].mxu0
  %v1389 = vpop.f32.mrb[0].mxu0
  %v1390 = vadd.f32 0.0, %v1389
  %v1391 = vpop.f32.mrb[0].mxu0
  %1392 = vmatprep.mubr.bf16.mxu0 %v1096
  %1393 = vmatmul.mubr.bf16.gmra.mrb[0].mxu0 %v755
  %v1394 = vpop.f32.mrb[0].mxu0
  %v1395 = vadd.f32 0.0, %v1394
  %v1396 = vpop.f32.mrb[0].mxu0
  %v1397 = vpop.f32.mrb[0].mxu0
  %v1398 = vadd.f32 0.0, %v1397
  %v1399 = vpop.f32.mrb[0].mxu0
  %1400 = vmatprep.mubr.bf16.mxu0 %v1099
  %1401 = vmatmul.mubr.bf16.gmra.mrb[0].mxu0 %v757
  %v1402 = vpop.f32.mrb[0].mxu0
  %v1403 = vadd.f32 0.0, %v1402
  %v1404 = vpop.f32.mrb[0].mxu0
  %v1405 = vpop.f32.mrb[0].mxu0
  %v1406 = vadd.f32 0.0, %v1405
  %v1407 = vpop.f32.mrb[0].mxu0
  %1408 = vmatprep.mubr.bf16.mxu0 %v1102
  %1409 = vmatmul.mubr.bf16.gmra.mrb[0].mxu0 %v759
  %v1410 = vpop.f32.mrb[0].mxu0
  %v1411 = vadd.f32 0.0, %v1410
  %v1412 = vpop.f32.mrb[0].mxu0
  %v1413 = vpop.f32.mrb[0].mxu0
  %v1414 = vadd.f32 0.0, %v1413
  %v1415 = vpop.f32.mrb[0].mxu0
  %1416 = vmatprep.mubr.bf16.mxu0 %v1105
  %1417 = vmatmul.mubr.bf16.gmra.mrb[0].mxu0 %v761
  %v1418 = vpop.f32.mrb[0].mxu0
  %v1419 = vadd.f32 0.0, %v1418
  %v1420 = vpop.f32.mrb[0].mxu0
  %v1421 = vpop.f32.mrb[0].mxu0
  %v1422 = vadd.f32 0.0, %v1421
  %v1423 = vpop.f32.mrb[0].mxu0
  %1424 = vmatprep.mubr.bf16.mxu0 %v1108
  %1425 = vmatmul.mubr.bf16.gmra.mrb[0].mxu0 %v763
  %v1426 = vpop.f32.mrb[0].mxu0
  %v1427 = vadd.f32 0.0, %v1426
  %v1428 = vpop.f32.mrb[0].mxu0
  %v1429 = vpop.f32.mrb[0].mxu0
  %v1430 = vadd.f32 0.0, %v1429
  %v1431 = vpop.f32.mrb[0].mxu0
  %1432 = vdwg.mxu0
  %v1433 = vld [vmem:[%s4] sm:$0xff]
  %v1434 = vld [vmem:[%s4 + $0x8] sm:$0xff]
  %v1435 = vld [vmem:[%s4 + $0x10] sm:$0xff]
  %v1436 = vld [vmem:[%s4 + $0x18] sm:$0xff]
  %v1437 = vld [vmem:[%s4 + $0x20] sm:$0xff]
  %v1438 = vld [vmem:[%s4 + $0x28] sm:$0xff]
  %v1439 = vld [vmem:[%s4 + $0x30] sm:$0xff]
  %v1440 = vld [vmem:[%s4 + $0x38] sm:$0xff]
  %v1441 = vld [vmem:[%s4 + $0x40] sm:$0xff]
  %v1442 = vld [vmem:[%s4 + $0x48] sm:$0xff]
  %v1443 = vmul.f32 %v1145, %v1433
  %v1444 = vmul.f32 %v1147, %v1434
  %v1445 = vmul.f32 %v1258, %v1435
  %v1446 = vmul.f32 %v1260, %v1436
  %v1447 = vmul.f32 %v1371, %v1437
  %v1448 = vmul.f32 %v1149, %v1438
  %v1449 = vmul.f32 %v1151, %v1439
  %v1450 = vmul.f32 %v1262, %v1440
  %v1451 = vmul.f32 %v1264, %v1441
  %v1452 = vmul.f32 %v1374, %v1442
  %v1453 = vmul.f32 %v1155, %v1433
  %v1454 = vmul.f32 %v1157, %v1434
  %v1455 = vmul.f32 %v1268, %v1435
  %v1456 = vmul.f32 %v1270, %v1436
  %v1457 = vmul.f32 %v1379, %v1437
  %v1458 = vmul.f32 %v1159, %v1438
  %v1459 = vmul.f32 %v1161, %v1439
  %v1460 = vmul.f32 %v1272, %v1440
  %v1461 = vmul.f32 %v1274, %v1441
  %v1462 = vmul.f32 %v1382, %v1442
  %v1463 = vmul.f32 %v1165, %v1433
  %v1464 = vmul.f32 %v1167, %v1434
  %v1465 = vmul.f32 %v1278, %v1435
  %v1466 = vmul.f32 %v1280, %v1436
  %v1467 = vmul.f32 %v1387, %v1437
  %v1468 = vmul.f32 %v1169, %v1438
  %v1469 = vmul.f32 %v1171, %v1439
  %v1470 = vmul.f32 %v1282, %v1440
  %v1471 = vmul.f32 %v1284, %v1441
  %v1472 = vmul.f32 %v1390, %v1442
  %v1473 = vmul.f32 %v1175, %v1433
  %v1474 = vmul.f32 %v1177, %v1434
  %v1475 = vmul.f32 %v1288, %v1435
  %v1476 = vmul.f32 %v1290, %v1436
  %v1477 = vmul.f32 %v1395, %v1437
  %v1478 = vmul.f32 %v1179, %v1438
  %v1479 = vmul.f32 %v1181, %v1439
  %v1480 = vmul.f32 %v1292, %v1440
  %v1481 = vmul.f32 %v1294, %v1441
  %v1482 = vmul.f32 %v1398, %v1442
  %v1483 = vmul.f32 %v1185, %v1433
  %v1484 = vmul.f32 %v1187, %v1434
  %v1485 = vmul.f32 %v1298, %v1435
  %v1486 = vmul.f32 %v1300, %v1436
  %v1487 = vmul.f32 %v1403, %v1437
  %v1488 = vmul.f32 %v1189, %v1438
  %v1489 = vmul.f32 %v1191, %v1439
  %v1490 = vmul.f32 %v1302, %v1440
  %v1491 = vmul.f32 %v1304, %v1441
  %v1492 = vmul.f32 %v1406, %v1442
  %v1493 = vmul.f32 %v1195, %v1433
  %v1494 = vmul.f32 %v1197, %v1434
  %v1495 = vmul.f32 %v1308, %v1435
  %v1496 = vmul.f32 %v1310, %v1436
  %v1497 = vmul.f32 %v1411, %v1437
  %v1498 = vmul.f32 %v1199, %v1438
  %v1499 = vmul.f32 %v1201, %v1439
  %v1500 = vmul.f32 %v1312, %v1440
  %v1501 = vmul.f32 %v1314, %v1441
  %v1502 = vmul.f32 %v1414, %v1442
  %v1503 = vmul.f32 %v1205, %v1433
  %v1504 = vmul.f32 %v1207, %v1434
  %v1505 = vmul.f32 %v1318, %v1435
  %v1506 = vmul.f32 %v1320, %v1436
  %v1507 = vmul.f32 %v1419, %v1437
  %v1508 = vmul.f32 %v1209, %v1438
  %v1509 = vmul.f32 %v1211, %v1439
  %v1510 = vmul.f32 %v1322, %v1440
  %v1511 = vmul.f32 %v1324, %v1441
  %v1512 = vmul.f32 %v1422, %v1442
  %v1513 = vmul.f32 %v1215, %v1433
  %v1514 = vmul.f32 %v1217, %v1434
  %v1515 = vmul.f32 %v1328, %v1435
  %v1516 = vmul.f32 %v1330, %v1436
  %v1517 = vmul.f32 %v1427, %v1437
  %v1518 = vmul.f32 %v1219, %v1438
  %v1519 = vmul.f32 %v1221, %v1439
  %v1520 = vmul.f32 %v1332, %v1440
  %v1521 = vmul.f32 %v1334, %v1441
  %v1522 = vmul.f32 %v1430, %v1442
  %v1523 = vadd.f32 %v1443, %v1448
  %v1524 = vrot.slane %v1523, 4
  %v1525 = vadd.f32 %v1523, %v1524
  %v1526 = vrot.slane %v1525, 2
  %v1527 = vadd.f32 %v1525, %v1526
  %v1528 = vrot.slane %v1527, 1
  %v1529 = vadd.f32 %v1527, %v1528
  %v1530 = vadd.f32 %v1444, %v1449
  %v1531 = vrot.slane %v1530, 4
  %v1532 = vadd.f32 %v1530, %v1531
  %v1533 = vrot.slane %v1532, 2
  %v1534 = vadd.f32 %v1532, %v1533
  %v1535 = vrot.slane %v1534, 1
  %v1536 = vadd.f32 %v1534, %v1535
  %v1537 = vadd.f32 %v1445, %v1450
  %v1538 = vrot.slane %v1537, 4
  %v1539 = vadd.f32 %v1537, %v1538
  %v1540 = vrot.slane %v1539, 2
  %v1541 = vadd.f32 %v1539, %v1540
  %v1542 = vrot.slane %v1541, 1
  %v1543 = vadd.f32 %v1541, %v1542
  %v1544 = vadd.f32 %v1446, %v1451
  %v1545 = vrot.slane %v1544, 4
  %v1546 = vadd.f32 %v1544, %v1545
  %v1547 = vrot.slane %v1546, 2
  %v1548 = vadd.f32 %v1546, %v1547
  %v1549 = vrot.slane %v1548, 1
  %v1550 = vadd.f32 %v1548, %v1549
  %v1551 = vadd.f32 %v1447, %v1452
  %v1552 = vrot.slane %v1551, 4
  %v1553 = vadd.f32 %v1551, %v1552
  %v1554 = vrot.slane %v1553, 2
  %v1555 = vadd.f32 %v1553, %v1554
  %v1556 = vrot.slane %v1555, 1
  %v1557 = vadd.f32 %v1555, %v1556
  %v1558 = vadd.f32 %v1453, %v1458
  %v1559 = vrot.slane %v1558, 4
  %v1560 = vadd.f32 %v1558, %v1559
  %v1561 = vrot.slane %v1560, 2
  %v1562 = vadd.f32 %v1560, %v1561
  %v1563 = vrot.slane %v1562, 1
  %v1564 = vadd.f32 %v1562, %v1563
  %v1565 = vadd.f32 %v1454, %v1459
  %v1566 = vrot.slane %v1565, 4
  %v1567 = vadd.f32 %v1565, %v1566
  %v1568 = vrot.slane %v1567, 2
  %v1569 = vadd.f32 %v1567, %v1568
  %v1570 = vrot.slane %v1569, 1
  %v1571 = vadd.f32 %v1569, %v1570
  %v1572 = vadd.f32 %v1455, %v1460
  %v1573 = vrot.slane %v1572, 4
  %v1574 = vadd.f32 %v1572, %v1573
  %v1575 = vrot.slane %v1574, 2
  %v1576 = vadd.f32 %v1574, %v1575
  %v1577 = vrot.slane %v1576, 1
  %v1578 = vadd.f32 %v1576, %v1577
  %v1579 = vadd.f32 %v1456, %v1461
  %v1580 = vrot.slane %v1579, 4
  %v1581 = vadd.f32 %v1579, %v1580
  %v1582 = vrot.slane %v1581, 2
  %v1583 = vadd.f32 %v1581, %v1582
  %v1584 = vrot.slane %v1583, 1
  %v1585 = vadd.f32 %v1583, %v1584
  %v1586 = vadd.f32 %v1457, %v1462
  %v1587 = vrot.slane %v1586, 4
  %v1588 = vadd.f32 %v1586, %v1587
  %v1589 = vrot.slane %v1588, 2
  %v1590 = vadd.f32 %v1588, %v1589
  %v1591 = vrot.slane %v1590, 1
  %v1592 = vadd.f32 %v1590, %v1591
  %v1593 = vadd.f32 %v1463, %v1468
  %v1594 = vrot.slane %v1593, 4
  %v1595 = vadd.f32 %v1593, %v1594
  %v1596 = vrot.slane %v1595, 2
  %v1597 = vadd.f32 %v1595, %v1596
  %v1598 = vrot.slane %v1597, 1
  %v1599 = vadd.f32 %v1597, %v1598
  %v1600 = vadd.f32 %v1464, %v1469
  %v1601 = vrot.slane %v1600, 4
  %v1602 = vadd.f32 %v1600, %v1601
  %v1603 = vrot.slane %v1602, 2
  %v1604 = vadd.f32 %v1602, %v1603
  %v1605 = vrot.slane %v1604, 1
  %v1606 = vadd.f32 %v1604, %v1605
  %v1607 = vadd.f32 %v1465, %v1470
  %v1608 = vrot.slane %v1607, 4
  %v1609 = vadd.f32 %v1607, %v1608
  %v1610 = vrot.slane %v1609, 2
  %v1611 = vadd.f32 %v1609, %v1610
  %v1612 = vrot.slane %v1611, 1
  %v1613 = vadd.f32 %v1611, %v1612
  %v1614 = vadd.f32 %v1466, %v1471
  %v1615 = vrot.slane %v1614, 4
  %v1616 = vadd.f32 %v1614, %v1615
  %v1617 = vrot.slane %v1616, 2
  %v1618 = vadd.f32 %v1616, %v1617
  %v1619 = vrot.slane %v1618, 1
  %v1620 = vadd.f32 %v1618, %v1619
  %v1621 = vadd.f32 %v1467, %v1472
  %v1622 = vrot.slane %v1621, 4
  %v1623 = vadd.f32 %v1621, %v1622
  %v1624 = vrot.slane %v1623, 2
  %v1625 = vadd.f32 %v1623, %v1624
  %v1626 = vrot.slane %v1625, 1
  %v1627 = vadd.f32 %v1625, %v1626
  %v1628 = vadd.f32 %v1473, %v1478
  %v1629 = vrot.slane %v1628, 4
  %v1630 = vadd.f32 %v1628, %v1629
  %v1631 = vrot.slane %v1630, 2
  %v1632 = vadd.f32 %v1630, %v1631
  %v1633 = vrot.slane %v1632, 1
  %v1634 = vadd.f32 %v1632, %v1633
  %v1635 = vadd.f32 %v1474, %v1479
  %v1636 = vrot.slane %v1635, 4
  %v1637 = vadd.f32 %v1635, %v1636
  %v1638 = vrot.slane %v1637, 2
  %v1639 = vadd.f32 %v1637, %v1638
  %v1640 = vrot.slane %v1639, 1
  %v1641 = vadd.f32 %v1639, %v1640
  %v1642 = vadd.f32 %v1475, %v1480
  %v1643 = vrot.slane %v1642, 4
  %v1644 = vadd.f32 %v1642, %v1643
  %v1645 = vrot.slane %v1644, 2
  %v1646 = vadd.f32 %v1644, %v1645
  %v1647 = vrot.slane %v1646, 1
  %v1648 = vadd.f32 %v1646, %v1647
  %v1649 = vadd.f32 %v1476, %v1481
  %v1650 = vrot.slane %v1649, 4
  %v1651 = vadd.f32 %v1649, %v1650
  %v1652 = vrot.slane %v1651, 2
  %v1653 = vadd.f32 %v1651, %v1652
  %v1654 = vrot.slane %v1653, 1
  %v1655 = vadd.f32 %v1653, %v1654
  %v1656 = vadd.f32 %v1477, %v1482
  %v1657 = vrot.slane %v1656, 4
  %v1658 = vadd.f32 %v1656, %v1657
  %v1659 = vrot.slane %v1658, 2
  %v1660 = vadd.f32 %v1658, %v1659
  %v1661 = vrot.slane %v1660, 1
  %v1662 = vadd.f32 %v1660, %v1661
  %v1663 = vadd.f32 %v1483, %v1488
  %v1664 = vrot.slane %v1663, 4
  %v1665 = vadd.f32 %v1663, %v1664
  %v1666 = vrot.slane %v1665, 2
  %v1667 = vadd.f32 %v1665, %v1666
  %v1668 = vrot.slane %v1667, 1
  %v1669 = vadd.f32 %v1667, %v1668
  %v1670 = vadd.f32 %v1484, %v1489
  %v1671 = vrot.slane %v1670, 4
  %v1672 = vadd.f32 %v1670, %v1671
  %v1673 = vrot.slane %v1672, 2
  %v1674 = vadd.f32 %v1672, %v1673
  %v1675 = vrot.slane %v1674, 1
  %v1676 = vadd.f32 %v1674, %v1675
  %v1677 = vadd.f32 %v1485, %v1490
  %v1678 = vrot.slane %v1677, 4
  %v1679 = vadd.f32 %v1677, %v1678
  %v1680 = vrot.slane %v1679, 2
  %v1681 = vadd.f32 %v1679, %v1680
  %v1682 = vrot.slane %v1681, 1
  %v1683 = vadd.f32 %v1681, %v1682
  %v1684 = vadd.f32 %v1486, %v1491
  %v1685 = vrot.slane %v1684, 4
  %v1686 = vadd.f32 %v1684, %v1685
  %v1687 = vrot.slane %v1686, 2
  %v1688 = vadd.f32 %v1686, %v1687
  %v1689 = vrot.slane %v1688, 1
  %v1690 = vadd.f32 %v1688, %v1689
  %v1691 = vadd.f32 %v1487, %v1492
  %v1692 = vrot.slane %v1691, 4
  %v1693 = vadd.f32 %v1691, %v1692
  %v1694 = vrot.slane %v1693, 2
  %v1695 = vadd.f32 %v1693, %v1694
  %v1696 = vrot.slane %v1695, 1
  %v1697 = vadd.f32 %v1695, %v1696
  %v1698 = vadd.f32 %v1493, %v1498
  %v1699 = vrot.slane %v1698, 4
  %v1700 = vadd.f32 %v1698, %v1699
  %v1701 = vrot.slane %v1700, 2
  %v1702 = vadd.f32 %v1700, %v1701
  %v1703 = vrot.slane %v1702, 1
  %v1704 = vadd.f32 %v1702, %v1703
  %v1705 = vadd.f32 %v1494, %v1499
  %v1706 = vrot.slane %v1705, 4
  %v1707 = vadd.f32 %v1705, %v1706
  %v1708 = vrot.slane %v1707, 2
  %v1709 = vadd.f32 %v1707, %v1708
  %v1710 = vrot.slane %v1709, 1
  %v1711 = vadd.f32 %v1709, %v1710
  %v1712 = vadd.f32 %v1495, %v1500
  %v1713 = vrot.slane %v1712, 4
  %v1714 = vadd.f32 %v1712, %v1713
  %v1715 = vrot.slane %v1714, 2
  %v1716 = vadd.f32 %v1714, %v1715
  %v1717 = vrot.slane %v1716, 1
  %v1718 = vadd.f32 %v1716, %v1717
  %v1719 = vadd.f32 %v1496, %v1501
  %v1720 = vrot.slane %v1719, 4
  %v1721 = vadd.f32 %v1719, %v1720
  %v1722 = vrot.slane %v1721, 2
  %v1723 = vadd.f32 %v1721, %v1722
  %v1724 = vrot.slane %v1723, 1
  %v1725 = vadd.f32 %v1723, %v1724
  %v1726 = vadd.f32 %v1497, %v1502
  %v1727 = vrot.slane %v1726, 4
  %v1728 = vadd.f32 %v1726, %v1727
  %v1729 = vrot.slane %v1728, 2
  %v1730 = vadd.f32 %v1728, %v1729
  %v1731 = vrot.slane %v1730, 1
  %v1732 = vadd.f32 %v1730, %v1731
  %v1733 = vadd.f32 %v1503, %v1508
  %v1734 = vrot.slane %v1733, 4
  %v1735 = vadd.f32 %v1733, %v1734
  %v1736 = vrot.slane %v1735, 2
  %v1737 = vadd.f32 %v1735, %v1736
  %v1738 = vrot.slane %v1737, 1
  %v1739 = vadd.f32 %v1737, %v1738
  %v1740 = vadd.f32 %v1504, %v1509
  %v1741 = vrot.slane %v1740, 4
  %v1742 = vadd.f32 %v1740, %v1741
  %v1743 = vrot.slane %v1742, 2
  %v1744 = vadd.f32 %v1742, %v1743
  %v1745 = vrot.slane %v1744, 1
  %v1746 = vadd.f32 %v1744, %v1745
  %v1747 = vadd.f32 %v1505, %v1510
  %v1748 = vrot.slane %v1747, 4
  %v1749 = vadd.f32 %v1747, %v1748
  %v1750 = vrot.slane %v1749, 2
  %v1751 = vadd.f32 %v1749, %v1750
  %v1752 = vrot.slane %v1751, 1
  %v1753 = vadd.f32 %v1751, %v1752
  %v1754 = vadd.f32 %v1506, %v1511
  %v1755 = vrot.slane %v1754, 4
  %v1756 = vadd.f32 %v1754, %v1755
  %v1757 = vrot.slane %v1756, 2
  %v1758 = vadd.f32 %v1756, %v1757
  %v1759 = vrot.slane %v1758, 1
  %v1760 = vadd.f32 %v1758, %v1759
  %v1761 = vadd.f32 %v1507, %v1512
  %v1762 = vrot.slane %v1761, 4
  %v1763 = vadd.f32 %v1761, %v1762
  %v1764 = vrot.slane %v1763, 2
  %v1765 = vadd.f32 %v1763, %v1764
  %v1766 = vrot.slane %v1765, 1
  %v1767 = vadd.f32 %v1765, %v1766
  %v1768 = vadd.f32 %v1513, %v1518
  %v1769 = vrot.slane %v1768, 4
  %v1770 = vadd.f32 %v1768, %v1769
  %v1771 = vrot.slane %v1770, 2
  %v1772 = vadd.f32 %v1770, %v1771
  %v1773 = vrot.slane %v1772, 1
  %v1774 = vadd.f32 %v1772, %v1773
  %v1775 = vadd.f32 %v1514, %v1519
  %v1776 = vrot.slane %v1775, 4
  %v1777 = vadd.f32 %v1775, %v1776
  %v1778 = vrot.slane %v1777, 2
  %v1779 = vadd.f32 %v1777, %v1778
  %v1780 = vrot.slane %v1779, 1
  %v1781 = vadd.f32 %v1779, %v1780
  %v1782 = vadd.f32 %v1515, %v1520
  %v1783 = vrot.slane %v1782, 4
  %v1784 = vadd.f32 %v1782, %v1783
  %v1785 = vrot.slane %v1784, 2
  %v1786 = vadd.f32 %v1784, %v1785
  %v1787 = vrot.slane %v1786, 1
  %v1788 = vadd.f32 %v1786, %v1787
  %v1789 = vadd.f32 %v1516, %v1521
  %v1790 = vrot.slane %v1789, 4
  %v1791 = vadd.f32 %v1789, %v1790
  %v1792 = vrot.slane %v1791, 2
  %v1793 = vadd.f32 %v1791, %v1792
  %v1794 = vrot.slane %v1793, 1
  %v1795 = vadd.f32 %v1793, %v1794
  %v1796 = vadd.f32 %v1517, %v1522
  %v1797 = vrot.slane %v1796, 4
  %v1798 = vadd.f32 %v1796, %v1797
  %v1799 = vrot.slane %v1798, 2
  %v1800 = vadd.f32 %v1798, %v1799
  %v1801 = vrot.slane %v1800, 1
  %v1802 = vadd.f32 %v1800, %v1801
  %v1803 = vpack.c.bf16 %v1529, %v1529
  %v1804 = vpack.c.bf16 %v1536, %v1536
  %v1805 = vpack.c.bf16 %v1543, %v1543
  %v1806 = vpack.c.bf16 %v1550, %v1550
  %v1807 = vpack.c.bf16 %v1557, %v1557
  %v1808 = vpack.c.bf16 %v1564, %v1564
  %v1809 = vpack.c.bf16 %v1571, %v1571
  %v1810 = vpack.c.bf16 %v1578, %v1578
  %v1811 = vpack.c.bf16 %v1585, %v1585
  %v1812 = vpack.c.bf16 %v1592, %v1592
  %v1813 = vpack.c.bf16 %v1599, %v1599
  %v1814 = vpack.c.bf16 %v1606, %v1606
  %v1815 = vpack.c.bf16 %v1613, %v1613
  %v1816 = vpack.c.bf16 %v1620, %v1620
  %v1817 = vpack.c.bf16 %v1627, %v1627
  %v1818 = vpack.c.bf16 %v1634, %v1634
  %v1819 = vpack.c.bf16 %v1641, %v1641
  %v1820 = vpack.c.bf16 %v1648, %v1648
  %v1821 = vpack.c.bf16 %v1655, %v1655
  %v1822 = vpack.c.bf16 %v1662, %v1662
  %v1823 = vpack.c.bf16 %v1669, %v1669
  %v1824 = vpack.c.bf16 %v1676, %v1676
  %v1825 = vpack.c.bf16 %v1683, %v1683
  %v1826 = vpack.c.bf16 %v1690, %v1690
  %v1827 = vpack.c.bf16 %v1697, %v1697
  %v1828 = vpack.c.bf16 %v1704, %v1704
  %v1829 = vpack.c.bf16 %v1711, %v1711
  %v1830 = vpack.c.bf16 %v1718, %v1718
  %v1831 = vpack.c.bf16 %v1725, %v1725
  %v1832 = vpack.c.bf16 %v1732, %v1732
  %v1833 = vpack.c.bf16 %v1739, %v1739
  %v1834 = vpack.c.bf16 %v1746, %v1746
  %v1835 = vpack.c.bf16 %v1753, %v1753
  %v1836 = vpack.c.bf16 %v1760, %v1760
  %v1837 = vpack.c.bf16 %v1767, %v1767
  %v1838 = vpack.c.bf16 %v1774, %v1774
  %v1839 = vpack.c.bf16 %v1781, %v1781
  %v1840 = vpack.c.bf16 %v1788, %v1788
  %v1841 = vpack.c.bf16 %v1795, %v1795
  %v1842 = vpack.c.bf16 %v1802, %v1802
  %v1843 = vld [vmem:[%s5] sm:$0xff]
  %v1844 = vld [vmem:[%s5 + $0x8] sm:$0xff]
  %v1845 = vld [vmem:[%s5 + $0x10] sm:$0xff]
  %v1846 = vld [vmem:[%s5 + $0x18] sm:$0xff]
  %v1847 = vld [vmem:[%s5 + $0x20] sm:$0xff]
  %v1848 = vld [vmem:[%s5 + $0x28] sm:$0xff]
  %v1849 = vld [vmem:[%s5 + $0x30] sm:$0xff]
  %v1850 = vld [vmem:[%s5 + $0x38] sm:$0xff]
  %v1851 = vld [vmem:[%s5 + $0x40] sm:$0xff]
  %v1852 = vld [vmem:[%s5 + $0x48] sm:$0xff]
  %v1853 = vld [vmem:[%s5 + $0x50] sm:$0xff]
  %v1854 = vld [vmem:[%s5 + $0x58] sm:$0xff]
  %v1855 = vld [vmem:[%s5 + $0x60] sm:$0xff]
  %v1856 = vld [vmem:[%s5 + $0x68] sm:$0xff]
  %v1857 = vld [vmem:[%s5 + $0x70] sm:$0xff]
  %v1858 = vld [vmem:[%s5 + $0x78] sm:$0xff]
  %v1859 = vld [vmem:[%s5 + $0x80] sm:$0xff]
  %v1860 = vld [vmem:[%s5 + $0x88] sm:$0xff]
  %v1861 = vld [vmem:[%s5 + $0x90] sm:$0xff]
  %v1862 = vld [vmem:[%s5 + $0x98] sm:$0xff]
  %v1863 = vld [vmem:[%s5 + $0xa0] sm:$0xff]
  %v1864 = vld [vmem:[%s5 + $0xa8] sm:$0xff]
  %v1865 = vld [vmem:[%s5 + $0xb0] sm:$0xff]
  %v1866 = vld [vmem:[%s5 + $0xb8] sm:$0xff]
  %v1867 = vld [vmem:[%s5 + $0xc0] sm:$0xff]
  %v1868 = vld [vmem:[%s5 + $0xc8] sm:$0xff]
  %v1869 = vld [vmem:[%s5 + $0xd0] sm:$0xff]
  %v1870 = vld [vmem:[%s5 + $0xd8] sm:$0xff]
  %v1871 = vld [vmem:[%s5 + $0xe0] sm:$0xff]
  %v1872 = vld [vmem:[%s5 + $0xe8] sm:$0xff]
  %v1873 = vld [vmem:[%s5 + $0xf0] sm:$0xff]
  %v1874 = vld [vmem:[%s5 + $0xf8] sm:$0xff]
  %v1875 = vld [vmem:[%s5 + $0x100] sm:$0xff]
  %v1876 = vld [vmem:[%s5 + $0x108] sm:$0xff]
  %v1877 = vld [vmem:[%s5 + $0x110] sm:$0xff]
  %v1878 = vld [vmem:[%s5 + $0x118] sm:$0xff]
  %v1879 = vld [vmem:[%s5 + $0x120] sm:$0xff]
  %v1880 = vld [vmem:[%s5 + $0x128] sm:$0xff]
  %v1881 = vld [vmem:[%s5 + $0x130] sm:$0xff]
  %v1882 = vld [vmem:[%s5 + $0x138] sm:$0xff]
  %v1883 = vld [vmem:[%s5 + $0x140] sm:$0xff]
  %v1884 = vld [vmem:[%s5 + $0x148] sm:$0xff]
  %v1885 = vld [vmem:[%s5 + $0x150] sm:$0xff]
  %v1886 = vld [vmem:[%s5 + $0x158] sm:$0xff]
  %v1887 = vld [vmem:[%s5 + $0x160] sm:$0xff]
  %v1888 = vld [vmem:[%s5 + $0x168] sm:$0xff]
  %v1889 = vld [vmem:[%s5 + $0x170] sm:$0xff]
  %v1890 = vld [vmem:[%s5 + $0x178] sm:$0xff]
  %v1891 = vld [vmem:[%s5 + $0x180] sm:$0xff]
  %v1892 = vld [vmem:[%s5 + $0x188] sm:$0xff]
  %v1893 = vld [vmem:[%s5 + $0x190] sm:$0xff]
  %v1894 = vld [vmem:[%s5 + $0x198] sm:$0xff]
  %v1895 = vld [vmem:[%s5 + $0x1a0] sm:$0xff]
  %v1896 = vld [vmem:[%s5 + $0x1a8] sm:$0xff]
  %v1897 = vld [vmem:[%s5 + $0x1b0] sm:$0xff]
  %v1898 = vld [vmem:[%s5 + $0x1b8] sm:$0xff]
  %v1899 = vld [vmem:[%s5 + $0x1c0] sm:$0xff]
  %v1900 = vld [vmem:[%s5 + $0x1c8] sm:$0xff]
  %v1901 = vld [vmem:[%s5 + $0x1d0] sm:$0xff]
  %v1902 = vld [vmem:[%s5 + $0x1d8] sm:$0xff]
  %v1903 = vld [vmem:[%s5 + $0x1e0] sm:$0xff]
  %v1904 = vld [vmem:[%s5 + $0x1e8] sm:$0xff]
  %v1905 = vld [vmem:[%s5 + $0x1f0] sm:$0xff]
  %v1906 = vld [vmem:[%s5 + $0x1f8] sm:$0xff]
  %v1907 = vld [vmem:[%s5 + $0x200] sm:$0xff]
  %v1908 = vld [vmem:[%s5 + $0x208] sm:$0xff]
  %v1909 = vld [vmem:[%s5 + $0x210] sm:$0xff]
  %v1910 = vld [vmem:[%s5 + $0x218] sm:$0xff]
  %v1911 = vld [vmem:[%s5 + $0x220] sm:$0xff]
  %v1912 = vld [vmem:[%s5 + $0x228] sm:$0xff]
  %v1913 = vld [vmem:[%s5 + $0x230] sm:$0xff]
  %v1914 = vld [vmem:[%s5 + $0x238] sm:$0xff]
  %v1915 = vld [vmem:[%s5 + $0x240] sm:$0xff]
  %v1916 = vld [vmem:[%s5 + $0x248] sm:$0xff]
  %v1917 = vld [vmem:[%s5 + $0x250] sm:$0xff]
  %v1918 = vld [vmem:[%s5 + $0x258] sm:$0xff]
  %v1919 = vld [vmem:[%s5 + $0x260] sm:$0xff]
  %v1920 = vld [vmem:[%s5 + $0x268] sm:$0xff]
  %v1921 = vld [vmem:[%s5 + $0x270] sm:$0xff]
  %v1922 = vld [vmem:[%s5 + $0x278] sm:$0xff]
  %v1923 = vld [vmem:[%s5 + $0x280] sm:$0xff]
  %v1924 = vld [vmem:[%s5 + $0x288] sm:$0xff]
  %v1925 = vld [vmem:[%s5 + $0x290] sm:$0xff]
  %v1926 = vld [vmem:[%s5 + $0x298] sm:$0xff]
  %v1927 = vld [vmem:[%s5 + $0x2a0] sm:$0xff]
  %v1928 = vld [vmem:[%s5 + $0x2a8] sm:$0xff]
  %v1929 = vld [vmem:[%s5 + $0x2b0] sm:$0xff]
  %v1930 = vld [vmem:[%s5 + $0x2b8] sm:$0xff]
  %v1931 = vld [vmem:[%s5 + $0x2c0] sm:$0xff]
  %v1932 = vld [vmem:[%s5 + $0x2c8] sm:$0xff]
  %v1933 = vld [vmem:[%s5 + $0x2d0] sm:$0xff]
  %v1934 = vld [vmem:[%s5 + $0x2d8] sm:$0xff]
  %v1935 = vld [vmem:[%s5 + $0x2e0] sm:$0xff]
  %v1936 = vld [vmem:[%s5 + $0x2e8] sm:$0xff]
  %v1937 = vld [vmem:[%s5 + $0x2f0] sm:$0xff]
  %v1938 = vld [vmem:[%s5 + $0x2f8] sm:$0xff]
  %v1939 = vld [vmem:[%s5 + $0x300] sm:$0xff]
  %v1940 = vld [vmem:[%s5 + $0x308] sm:$0xff]
  %v1941 = vld [vmem:[%s5 + $0x310] sm:$0xff]
  %v1942 = vld [vmem:[%s5 + $0x318] sm:$0xff]
  %v1943 = vld [vmem:[%s5 + $0x320] sm:$0xff]
  %v1944 = vld [vmem:[%s5 + $0x328] sm:$0xff]
  %v1945 = vld [vmem:[%s5 + $0x330] sm:$0xff]
  %v1946 = vld [vmem:[%s5 + $0x338] sm:$0xff]
  %v1947 = vld [vmem:[%s5 + $0x340] sm:$0xff]
  %v1948 = vld [vmem:[%s5 + $0x348] sm:$0xff]
  %v1949 = vld [vmem:[%s5 + $0x350] sm:$0xff]
  %v1950 = vld [vmem:[%s5 + $0x358] sm:$0xff]
  %v1951 = vld [vmem:[%s5 + $0x360] sm:$0xff]
  %v1952 = vld [vmem:[%s5 + $0x368] sm:$0xff]
  %v1953 = vld [vmem:[%s5 + $0x370] sm:$0xff]
  %v1954 = vld [vmem:[%s5 + $0x378] sm:$0xff]
  %v1955 = vld [vmem:[%s5 + $0x380] sm:$0xff]
  %v1956 = vld [vmem:[%s5 + $0x388] sm:$0xff]
  %v1957 = vld [vmem:[%s5 + $0x390] sm:$0xff]
  %v1958 = vld [vmem:[%s5 + $0x398] sm:$0xff]
  %v1959 = vld [vmem:[%s5 + $0x3a0] sm:$0xff]
  %v1960 = vld [vmem:[%s5 + $0x3a8] sm:$0xff]
  %v1961 = vld [vmem:[%s5 + $0x3b0] sm:$0xff]
  %v1962 = vld [vmem:[%s5 + $0x3b8] sm:$0xff]
  %v1963 = vld [vmem:[%s5 + $0x3c0] sm:$0xff]
  %v1964 = vld [vmem:[%s5 + $0x3c8] sm:$0xff]
  %v1965 = vld [vmem:[%s5 + $0x3d0] sm:$0xff]
  %v1966 = vld [vmem:[%s5 + $0x3d8] sm:$0xff]
  %v1967 = vld [vmem:[%s5 + $0x3e0] sm:$0xff]
  %v1968 = vld [vmem:[%s5 + $0x3e8] sm:$0xff]
  %v1969 = vld [vmem:[%s5 + $0x3f0] sm:$0xff]
  %v1970 = vld [vmem:[%s5 + $0x3f8] sm:$0xff]
  %v1971 = vld [vmem:[%s5 + $0x400] sm:$0xff]
  %v1972 = vld [vmem:[%s5 + $0x408] sm:$0xff]
  %v1973 = vld [vmem:[%s5 + $0x410] sm:$0xff]
  %v1974 = vld [vmem:[%s5 + $0x418] sm:$0xff]
  %v1975 = vld [vmem:[%s5 + $0x420] sm:$0xff]
  %v1976 = vld [vmem:[%s5 + $0x428] sm:$0xff]
  %v1977 = vld [vmem:[%s5 + $0x430] sm:$0xff]
  %v1978 = vld [vmem:[%s5 + $0x438] sm:$0xff]
  %v1979 = vld [vmem:[%s5 + $0x440] sm:$0xff]
  %v1980 = vld [vmem:[%s5 + $0x448] sm:$0xff]
  %v1981 = vld [vmem:[%s5 + $0x450] sm:$0xff]
  %v1982 = vld [vmem:[%s5 + $0x458] sm:$0xff]
  %v1983 = vld [vmem:[%s5 + $0x460] sm:$0xff]
  %v1984 = vld [vmem:[%s5 + $0x468] sm:$0xff]
  %v1985 = vld [vmem:[%s5 + $0x470] sm:$0xff]
  %v1986 = vld [vmem:[%s5 + $0x478] sm:$0xff]
  %v1987 = vld [vmem:[%s5 + $0x480] sm:$0xff]
  %v1988 = vld [vmem:[%s5 + $0x488] sm:$0xff]
  %v1989 = vld [vmem:[%s5 + $0x490] sm:$0xff]
  %v1990 = vld [vmem:[%s5 + $0x498] sm:$0xff]
  %v1991 = vld [vmem:[%s5 + $0x4a0] sm:$0xff]
  %v1992 = vld [vmem:[%s5 + $0x4a8] sm:$0xff]
  %v1993 = vld [vmem:[%s5 + $0x4b0] sm:$0xff]
  %v1994 = vld [vmem:[%s5 + $0x4b8] sm:$0xff]
  %v1995 = vld [vmem:[%s5 + $0x4c0] sm:$0xff]
  %v1996 = vld [vmem:[%s5 + $0x4c8] sm:$0xff]
  %v1997 = vld [vmem:[%s5 + $0x4d0] sm:$0xff]
  %v1998 = vld [vmem:[%s5 + $0x4d8] sm:$0xff]
  %v1999 = vld [vmem:[%s5 + $0x4e0] sm:$0xff]
  %v2000 = vld [vmem:[%s5 + $0x4e8] sm:$0xff]
  %v2001 = vld [vmem:[%s5 + $0x4f0] sm:$0xff]
  %v2002 = vld [vmem:[%s5 + $0x4f8] sm:$0xff]
  %v2003 = vld [vmem:[%s6] sm:$0xf]
  %v2005 = vlaneseq
  %v2006 = vshrl.u32 %v2005, 7
  %v2007 = vsub.s32 0, %v2006
  %v2008 = vrot.slane %v2003, %v2007
  %v2009 = vlaneseq
  %v2010 = vshrl.u32 %v2009, 7
  %v2011 = vsub.s32 1, %v2010
  %v2012 = vrot.slane %v2003, %v2011
  %v2013 = vlaneseq
  %v2014 = vshrl.u32 %v2013, 7
  %v2015 = vsub.s32 2, %v2014
  %v2016 = vrot.slane %v2003, %v2015
  %v2017 = vlaneseq
  %v2018 = vshrl.u32 %v2017, 7
  %v2019 = vsub.s32 3, %v2018
  %v2020 = vrot.slane %v2003, %v2019
  %v2065 = vunpack.c.l.b16 %v1803
  %v2066 = vunpack.c.l.b16 %v1804
  %v2067 = vunpack.c.l.b16 %v1805
  %v2068 = vunpack.c.l.b16 %v1806
  %v2069 = vunpack.c.l.b16 %v1807
  %v2070 = vunpack.c.l.b16 %v1808
  %v2071 = vunpack.c.l.b16 %v1809
  %v2072 = vunpack.c.l.b16 %v1810
  %v2073 = vunpack.c.l.b16 %v1811
  %v2074 = vunpack.c.l.b16 %v1812
  %v2075 = vunpack.c.l.b16 %v1813
  %v2076 = vunpack.c.l.b16 %v1814
  %v2077 = vunpack.c.l.b16 %v1815
  %v2078 = vunpack.c.l.b16 %v1816
  %v2079 = vunpack.c.l.b16 %v1817
  %v2080 = vunpack.c.l.b16 %v1818
  %v2081 = vunpack.c.l.b16 %v1819
  %v2082 = vunpack.c.l.b16 %v1820
  %v2083 = vunpack.c.l.b16 %v1821
  %v2084 = vunpack.c.l.b16 %v1822
  %v2085 = vunpack.c.l.b16 %v1823
  %v2086 = vunpack.c.l.b16 %v1824
  %v2087 = vunpack.c.l.b16 %v1825
  %v2088 = vunpack.c.l.b16 %v1826
  %v2089 = vunpack.c.l.b16 %v1827
  %v2090 = vunpack.c.l.b16 %v1828
  %v2091 = vunpack.c.l.b16 %v1829
  %v2092 = vunpack.c.l.b16 %v1830
  %v2093 = vunpack.c.l.b16 %v1831
  %v2094 = vunpack.c.l.b16 %v1832
  %v2095 = vunpack.c.l.b16 %v1833
  %v2096 = vunpack.c.l.b16 %v1834
  %v2097 = vunpack.c.l.b16 %v1835
  %v2098 = vunpack.c.l.b16 %v1836
  %v2099 = vunpack.c.l.b16 %v1837
  %v2100 = vunpack.c.l.b16 %v1838
  %v2101 = vunpack.c.l.b16 %v1839
  %v2102 = vunpack.c.l.b16 %v1840
  %v2103 = vunpack.c.l.b16 %v1841
  %v2104 = vunpack.c.l.b16 %v1842
  %vm2105 = vcmask 1041409
  %v2106 = vsel %vm2105, %v2070, %v2065
  %vm2107 = vcmask 1042434
  %v2108 = vsel %vm2107, %v2075, %v2106
  %vm2109 = vcmask 1043459
  %v2110 = vsel %vm2109, %v2080, %v2108
  %vm2111 = vcmask 1044484
  %v2112 = vsel %vm2111, %v2085, %v2110
  %vm2113 = vcmask 1045509
  %v2114 = vsel %vm2113, %v2090, %v2112
  %vm2115 = vcmask 1046534
  %v2116 = vsel %vm2115, %v2095, %v2114
  %vm2117 = vcmask 1047559
  %v2118 = vsel %vm2117, %v2100, %v2116
  %v2119 = vsel %vm2105, %v2071, %v2066
  %v2120 = vsel %vm2107, %v2076, %v2119
  %v2121 = vsel %vm2109, %v2081, %v2120
  %v2122 = vsel %vm2111, %v2086, %v2121
  %v2123 = vsel %vm2113, %v2091, %v2122
  %v2124 = vsel %vm2115, %v2096, %v2123
  %v2125 = vsel %vm2117, %v2101, %v2124
  %v2126 = vsel %vm2105, %v2072, %v2067
  %v2127 = vsel %vm2107, %v2077, %v2126
  %v2128 = vsel %vm2109, %v2082, %v2127
  %v2129 = vsel %vm2111, %v2087, %v2128
  %v2130 = vsel %vm2113, %v2092, %v2129
  %v2131 = vsel %vm2115, %v2097, %v2130
  %v2132 = vsel %vm2117, %v2102, %v2131
  %v2133 = vsel %vm2105, %v2073, %v2068
  %v2134 = vsel %vm2107, %v2078, %v2133
  %v2135 = vsel %vm2109, %v2083, %v2134
  %v2136 = vsel %vm2111, %v2088, %v2135
  %v2137 = vsel %vm2113, %v2093, %v2136
  %v2138 = vsel %vm2115, %v2098, %v2137
  %v2139 = vsel %vm2117, %v2103, %v2138
  %v2140 = vsel %vm2105, %v2074, %v2069
  %v2141 = vsel %vm2107, %v2079, %v2140
  %v2142 = vsel %vm2109, %v2084, %v2141
  %v2143 = vsel %vm2111, %v2089, %v2142
  %v2144 = vsel %vm2113, %v2094, %v2143
  %v2145 = vsel %vm2115, %v2099, %v2144
  %v2146 = vsel %vm2117, %v2104, %v2145
  %v2147 = vpack.c.b16 %v2118, %v2118
  %v2148 = vpack.c.b16 %v2125, %v2125
  %v2149 = vpack.c.b16 %v2132, %v2132
  %v2150 = vpack.c.b16 %v2139, %v2139
  %v2151 = vpack.c.b16 %v2146, %v2146
  %v2317 = vunpack.c.l.b16 %v1843
  %v2318 = vunpack.c.h.b16 %v1843
  %v2319 = vunpack.c.l.b16 %v1844
  %v2320 = vunpack.c.h.b16 %v1844
  %v2321 = vunpack.c.l.b16 %v1845
  %v2322 = vunpack.c.h.b16 %v1845
  %v2323 = vunpack.c.l.b16 %v1846
  %v2324 = vunpack.c.h.b16 %v1846
  %v2325 = vunpack.c.l.b16 %v1847
  %v2326 = vunpack.c.h.b16 %v1847
  %v2327 = vunpack.c.l.b16 %v1848
  %v2328 = vunpack.c.h.b16 %v1848
  %v2329 = vunpack.c.l.b16 %v1849
  %v2330 = vunpack.c.h.b16 %v1849
  %v2331 = vunpack.c.l.b16 %v1850
  %v2332 = vunpack.c.h.b16 %v1850
  %v2333 = vunpack.c.l.b16 %v1851
  %v2334 = vunpack.c.h.b16 %v1851
  %v2335 = vunpack.c.l.b16 %v1852
  %v2336 = vunpack.c.h.b16 %v1852
  %v2337 = vunpack.c.l.b16 %v1853
  %v2338 = vunpack.c.h.b16 %v1853
  %v2339 = vunpack.c.l.b16 %v1854
  %v2340 = vunpack.c.h.b16 %v1854
  %v2341 = vunpack.c.l.b16 %v1855
  %v2342 = vunpack.c.h.b16 %v1855
  %v2343 = vunpack.c.l.b16 %v1856
  %v2344 = vunpack.c.h.b16 %v1856
  %v2345 = vunpack.c.l.b16 %v1857
  %v2346 = vunpack.c.h.b16 %v1857
  %v2347 = vunpack.c.l.b16 %v1858
  %v2348 = vunpack.c.h.b16 %v1858
  %v2349 = vunpack.c.l.b16 %v1859
  %v2350 = vunpack.c.h.b16 %v1859
  %v2351 = vunpack.c.l.b16 %v1860
  %v2352 = vunpack.c.h.b16 %v1860
  %v2353 = vunpack.c.l.b16 %v1861
  %v2354 = vunpack.c.h.b16 %v1861
  %v2355 = vunpack.c.l.b16 %v1862
  %v2356 = vunpack.c.h.b16 %v1862
  %v2357 = vunpack.c.l.b16 %v1863
  %v2358 = vunpack.c.h.b16 %v1863
  %v2359 = vunpack.c.l.b16 %v1864
  %v2360 = vunpack.c.h.b16 %v1864
  %v2361 = vunpack.c.l.b16 %v1865
  %v2362 = vunpack.c.h.b16 %v1865
  %v2363 = vunpack.c.l.b16 %v1866
  %v2364 = vunpack.c.h.b16 %v1866
  %v2365 = vunpack.c.l.b16 %v1867
  %v2366 = vunpack.c.h.b16 %v1867
  %v2367 = vunpack.c.l.b16 %v1868
  %v2368 = vunpack.c.h.b16 %v1868
  %v2369 = vunpack.c.l.b16 %v1869
  %v2370 = vunpack.c.h.b16 %v1869
  %v2371 = vunpack.c.l.b16 %v1870
  %v2372 = vunpack.c.h.b16 %v1870
  %v2373 = vunpack.c.l.b16 %v1871
  %v2374 = vunpack.c.h.b16 %v1871
  %v2375 = vunpack.c.l.b16 %v1872
  %v2376 = vunpack.c.h.b16 %v1872
  %v2377 = vunpack.c.l.b16 %v1873
  %v2378 = vunpack.c.h.b16 %v1873
  %v2379 = vunpack.c.l.b16 %v1874
  %v2380 = vunpack.c.h.b16 %v1874
  %v2381 = vunpack.c.l.b16 %v1875
  %v2382 = vunpack.c.h.b16 %v1875
  %v2383 = vunpack.c.l.b16 %v1876
  %v2384 = vunpack.c.h.b16 %v1876
  %v2385 = vunpack.c.l.b16 %v1877
  %v2386 = vunpack.c.h.b16 %v1877
  %v2387 = vunpack.c.l.b16 %v1878
  %v2388 = vunpack.c.h.b16 %v1878
  %v2389 = vunpack.c.l.b16 %v1879
  %v2390 = vunpack.c.h.b16 %v1879
  %v2391 = vunpack.c.l.b16 %v1880
  %v2392 = vunpack.c.h.b16 %v1880
  %v2393 = vunpack.c.l.b16 %v1881
  %v2394 = vunpack.c.h.b16 %v1881
  %v2395 = vunpack.c.l.b16 %v1882
  %v2396 = vunpack.c.h.b16 %v1882
  %v2397 = vunpack.c.l.b16 %v1883
  %v2398 = vunpack.c.h.b16 %v1883
  %v2399 = vunpack.c.l.b16 %v1884
  %v2400 = vunpack.c.h.b16 %v1884
  %v2401 = vunpack.c.l.b16 %v1885
  %v2402 = vunpack.c.h.b16 %v1885
  %v2403 = vunpack.c.l.b16 %v1886
  %v2404 = vunpack.c.h.b16 %v1886
  %v2405 = vunpack.c.l.b16 %v1887
  %v2406 = vunpack.c.h.b16 %v1887
  %v2407 = vunpack.c.l.b16 %v1888
  %v2408 = vunpack.c.h.b16 %v1888
  %v2409 = vunpack.c.l.b16 %v1889
  %v2410 = vunpack.c.h.b16 %v1889
  %v2411 = vunpack.c.l.b16 %v1890
  %v2412 = vunpack.c.h.b16 %v1890
  %v2413 = vunpack.c.l.b16 %v1891
  %v2414 = vunpack.c.h.b16 %v1891
  %v2415 = vunpack.c.l.b16 %v1892
  %v2416 = vunpack.c.h.b16 %v1892
  %v2417 = vunpack.c.l.b16 %v1893
  %v2418 = vunpack.c.h.b16 %v1893
  %v2419 = vunpack.c.l.b16 %v1894
  %v2420 = vunpack.c.h.b16 %v1894
  %v2421 = vunpack.c.l.b16 %v1895
  %v2422 = vunpack.c.h.b16 %v1895
  %v2423 = vunpack.c.l.b16 %v1896
  %v2424 = vunpack.c.h.b16 %v1896
  %v2425 = vunpack.c.l.b16 %v1897
  %v2426 = vunpack.c.h.b16 %v1897
  %v2427 = vunpack.c.l.b16 %v1898
  %v2428 = vunpack.c.h.b16 %v1898
  %v2429 = vunpack.c.l.b16 %v1899
  %v2430 = vunpack.c.h.b16 %v1899
  %v2431 = vunpack.c.l.b16 %v1900
  %v2432 = vunpack.c.h.b16 %v1900
  %v2433 = vunpack.c.l.b16 %v1901
  %v2434 = vunpack.c.h.b16 %v1901
  %v2435 = vunpack.c.l.b16 %v1902
  %v2436 = vunpack.c.h.b16 %v1902
  %v2437 = vunpack.c.l.b16 %v1903
  %v2438 = vunpack.c.h.b16 %v1903
  %v2439 = vunpack.c.l.b16 %v1904
  %v2440 = vunpack.c.h.b16 %v1904
  %v2441 = vunpack.c.l.b16 %v1905
  %v2442 = vunpack.c.h.b16 %v1905
  %v2443 = vunpack.c.l.b16 %v1906
  %v2444 = vunpack.c.h.b16 %v1906
  %v2445 = vunpack.c.l.b16 %v1907
  %v2446 = vunpack.c.h.b16 %v1907
  %v2447 = vunpack.c.l.b16 %v1908
  %v2448 = vunpack.c.h.b16 %v1908
  %v2449 = vunpack.c.l.b16 %v1909
  %v2450 = vunpack.c.h.b16 %v1909
  %v2451 = vunpack.c.l.b16 %v1910
  %v2452 = vunpack.c.h.b16 %v1910
  %v2453 = vunpack.c.l.b16 %v1911
  %v2454 = vunpack.c.h.b16 %v1911
  %v2455 = vunpack.c.l.b16 %v1912
  %v2456 = vunpack.c.h.b16 %v1912
  %v2457 = vunpack.c.l.b16 %v1913
  %v2458 = vunpack.c.h.b16 %v1913
  %v2459 = vunpack.c.l.b16 %v1914
  %v2460 = vunpack.c.h.b16 %v1914
  %v2461 = vunpack.c.l.b16 %v1915
  %v2462 = vunpack.c.h.b16 %v1915
  %v2463 = vunpack.c.l.b16 %v1916
  %v2464 = vunpack.c.h.b16 %v1916
  %v2465 = vunpack.c.l.b16 %v1917
  %v2466 = vunpack.c.h.b16 %v1917
  %v2467 = vunpack.c.l.b16 %v1918
  %v2468 = vunpack.c.h.b16 %v1918
  %v2469 = vunpack.c.l.b16 %v1919
  %v2470 = vunpack.c.h.b16 %v1919
  %v2471 = vunpack.c.l.b16 %v1920
  %v2472 = vunpack.c.h.b16 %v1920
  %v2473 = vunpack.c.l.b16 %v1921
  %v2474 = vunpack.c.h.b16 %v1921
  %v2475 = vunpack.c.l.b16 %v1922
  %v2476 = vunpack.c.h.b16 %v1922
  %v2477 = vunpack.c.l.b16 %v1923
  %v2478 = vunpack.c.h.b16 %v1923
  %v2479 = vunpack.c.l.b16 %v1924
  %v2480 = vunpack.c.h.b16 %v1924
  %v2481 = vunpack.c.l.b16 %v1925
  %v2482 = vunpack.c.h.b16 %v1925
  %v2483 = vunpack.c.l.b16 %v1926
  %v2484 = vunpack.c.h.b16 %v1926
  %v2485 = vunpack.c.l.b16 %v1927
  %v2486 = vunpack.c.h.b16 %v1927
  %v2487 = vunpack.c.l.b16 %v1928
  %v2488 = vunpack.c.h.b16 %v1928
  %v2489 = vunpack.c.l.b16 %v1929
  %v2490 = vunpack.c.h.b16 %v1929
  %v2491 = vunpack.c.l.b16 %v1930
  %v2492 = vunpack.c.h.b16 %v1930
  %v2493 = vunpack.c.l.b16 %v1931
  %v2494 = vunpack.c.h.b16 %v1931
  %v2495 = vunpack.c.l.b16 %v1932
  %v2496 = vunpack.c.h.b16 %v1932
  %v2497 = vunpack.c.l.b16 %v1933
  %v2498 = vunpack.c.h.b16 %v1933
  %v2499 = vunpack.c.l.b16 %v1934
  %v2500 = vunpack.c.h.b16 %v1934
  %v2501 = vunpack.c.l.b16 %v1935
  %v2502 = vunpack.c.h.b16 %v1935
  %v2503 = vunpack.c.l.b16 %v1936
  %v2504 = vunpack.c.h.b16 %v1936
  %v2505 = vunpack.c.l.b16 %v1937
  %v2506 = vunpack.c.h.b16 %v1937
  %v2507 = vunpack.c.l.b16 %v1938
  %v2508 = vunpack.c.h.b16 %v1938
  %v2509 = vunpack.c.l.b16 %v1939
  %v2510 = vunpack.c.h.b16 %v1939
  %v2511 = vunpack.c.l.b16 %v1940
  %v2512 = vunpack.c.h.b16 %v1940
  %v2513 = vunpack.c.l.b16 %v1941
  %v2514 = vunpack.c.h.b16 %v1941
  %v2515 = vunpack.c.l.b16 %v1942
  %v2516 = vunpack.c.h.b16 %v1942
  %v2517 = vunpack.c.l.b16 %v1943
  %v2518 = vunpack.c.h.b16 %v1943
  %v2519 = vunpack.c.l.b16 %v1944
  %v2520 = vunpack.c.h.b16 %v1944
  %v2521 = vunpack.c.l.b16 %v1945
  %v2522 = vunpack.c.h.b16 %v1945
  %v2523 = vunpack.c.l.b16 %v1946
  %v2524 = vunpack.c.h.b16 %v1946
  %v2525 = vunpack.c.l.b16 %v1947
  %v2526 = vunpack.c.h.b16 %v1947
  %v2527 = vunpack.c.l.b16 %v1948
  %v2528 = vunpack.c.h.b16 %v1948
  %v2529 = vunpack.c.l.b16 %v1949
  %v2530 = vunpack.c.h.b16 %v1949
  %v2531 = vunpack.c.l.b16 %v1950
  %v2532 = vunpack.c.h.b16 %v1950
  %v2533 = vunpack.c.l.b16 %v1951
  %v2534 = vunpack.c.h.b16 %v1951
  %v2535 = vunpack.c.l.b16 %v1952
  %v2536 = vunpack.c.h.b16 %v1952
  %v2537 = vunpack.c.l.b16 %v1953
  %v2538 = vunpack.c.h.b16 %v1953
  %v2539 = vunpack.c.l.b16 %v1954
  %v2540 = vunpack.c.h.b16 %v1954
  %v2541 = vunpack.c.l.b16 %v1955
  %v2542 = vunpack.c.h.b16 %v1955
  %v2543 = vunpack.c.l.b16 %v1956
  %v2544 = vunpack.c.h.b16 %v1956
  %v2545 = vunpack.c.l.b16 %v1957
  %v2546 = vunpack.c.h.b16 %v1957
  %v2547 = vunpack.c.l.b16 %v1958
  %v2548 = vunpack.c.h.b16 %v1958
  %v2549 = vunpack.c.l.b16 %v1959
  %v2550 = vunpack.c.h.b16 %v1959
  %v2551 = vunpack.c.l.b16 %v1960
  %v2552 = vunpack.c.h.b16 %v1960
  %v2553 = vunpack.c.l.b16 %v1961
  %v2554 = vunpack.c.h.b16 %v1961
  %v2555 = vunpack.c.l.b16 %v1962
  %v2556 = vunpack.c.h.b16 %v1962
  %v2557 = vunpack.c.l.b16 %v1963
  %v2558 = vunpack.c.h.b16 %v1963
  %v2559 = vunpack.c.l.b16 %v1964
  %v2560 = vunpack.c.h.b16 %v1964
  %v2561 = vunpack.c.l.b16 %v1965
  %v2562 = vunpack.c.h.b16 %v1965
  %v2563 = vunpack.c.l.b16 %v1966
  %v2564 = vunpack.c.h.b16 %v1966
  %v2565 = vunpack.c.l.b16 %v1967
  %v2566 = vunpack.c.h.b16 %v1967
  %v2567 = vunpack.c.l.b16 %v1968
  %v2568 = vunpack.c.h.b16 %v1968
  %v2569 = vunpack.c.l.b16 %v1969
  %v2570 = vunpack.c.h.b16 %v1969
  %v2571 = vunpack.c.l.b16 %v1970
  %v2572 = vunpack.c.h.b16 %v1970
  %v2573 = vunpack.c.l.b16 %v1971
  %v2574 = vunpack.c.h.b16 %v1971
  %v2575 = vunpack.c.l.b16 %v1972
  %v2576 = vunpack.c.h.b16 %v1972
  %v2577 = vunpack.c.l.b16 %v1973
  %v2578 = vunpack.c.h.b16 %v1973
  %v2579 = vunpack.c.l.b16 %v1974
  %v2580 = vunpack.c.h.b16 %v1974
  %v2581 = vunpack.c.l.b16 %v1975
  %v2582 = vunpack.c.h.b16 %v1975
  %v2583 = vunpack.c.l.b16 %v1976
  %v2584 = vunpack.c.h.b16 %v1976
  %v2585 = vunpack.c.l.b16 %v1977
  %v2586 = vunpack.c.h.b16 %v1977
  %v2587 = vunpack.c.l.b16 %v1978
  %v2588 = vunpack.c.h.b16 %v1978
  %v2589 = vunpack.c.l.b16 %v1979
  %v2590 = vunpack.c.h.b16 %v1979
  %v2591 = vunpack.c.l.b16 %v1980
  %v2592 = vunpack.c.h.b16 %v1980
  %v2593 = vunpack.c.l.b16 %v1981
  %v2594 = vunpack.c.h.b16 %v1981
  %v2595 = vunpack.c.l.b16 %v1982
  %v2596 = vunpack.c.h.b16 %v1982
  %v2597 = vunpack.c.l.b16 %v1983
  %v2598 = vunpack.c.h.b16 %v1983
  %v2599 = vunpack.c.l.b16 %v1984
  %v2600 = vunpack.c.h.b16 %v1984
  %v2601 = vunpack.c.l.b16 %v1985
  %v2602 = vunpack.c.h.b16 %v1985
  %v2603 = vunpack.c.l.b16 %v1986
  %v2604 = vunpack.c.h.b16 %v1986
  %v2605 = vunpack.c.l.b16 %v1987
  %v2606 = vunpack.c.h.b16 %v1987
  %v2607 = vunpack.c.l.b16 %v1988
  %v2608 = vunpack.c.h.b16 %v1988
  %v2609 = vunpack.c.l.b16 %v1989
  %v2610 = vunpack.c.h.b16 %v1989
  %v2611 = vunpack.c.l.b16 %v1990
  %v2612 = vunpack.c.h.b16 %v1990
  %v2613 = vunpack.c.l.b16 %v1991
  %v2614 = vunpack.c.h.b16 %v1991
  %v2615 = vunpack.c.l.b16 %v1992
  %v2616 = vunpack.c.h.b16 %v1992
  %v2617 = vunpack.c.l.b16 %v1993
  %v2618 = vunpack.c.h.b16 %v1993
  %v2619 = vunpack.c.l.b16 %v1994
  %v2620 = vunpack.c.h.b16 %v1994
  %v2621 = vunpack.c.l.b16 %v1995
  %v2622 = vunpack.c.h.b16 %v1995
  %v2623 = vunpack.c.l.b16 %v1996
  %v2624 = vunpack.c.h.b16 %v1996
  %v2625 = vunpack.c.l.b16 %v1997
  %v2626 = vunpack.c.h.b16 %v1997
  %v2627 = vunpack.c.l.b16 %v1998
  %v2628 = vunpack.c.h.b16 %v1998
  %v2629 = vunpack.c.l.b16 %v1999
  %v2630 = vunpack.c.h.b16 %v1999
  %v2631 = vunpack.c.l.b16 %v2000
  %v2632 = vunpack.c.h.b16 %v2000
  %v2633 = vunpack.c.l.b16 %v2001
  %v2634 = vunpack.c.h.b16 %v2001
  %v2635 = vunpack.c.l.b16 %v2002
  %v2636 = vunpack.c.h.b16 %v2002
  %v2637 = vpack.c.b16 %v2321, %v2317
  %v2638 = vpack.c.b16 %v2322, %v2318
  %v2639 = vpack.c.b16 %v2323, %v2319
  %v2640 = vpack.c.b16 %v2324, %v2320
  %v2641 = vpack.c.b16 %v2329, %v2325
  %v2642 = vpack.c.b16 %v2330, %v2326
  %v2643 = vpack.c.b16 %v2331, %v2327
  %v2644 = vpack.c.b16 %v2332, %v2328
  %v2645 = vpack.c.b16 %v2337, %v2333
  %v2646 = vpack.c.b16 %v2338, %v2334
  %v2647 = vpack.c.b16 %v2339, %v2335
  %v2648 = vpack.c.b16 %v2340, %v2336
  %v2649 = vpack.c.b16 %v2345, %v2341
  %v2650 = vpack.c.b16 %v2346, %v2342
  %v2651 = vpack.c.b16 %v2347, %v2343
  %v2652 = vpack.c.b16 %v2348, %v2344
  %v2653 = vpack.c.b16 %v2353, %v2349
  %v2654 = vpack.c.b16 %v2354, %v2350
  %v2655 = vpack.c.b16 %v2355, %v2351
  %v2656 = vpack.c.b16 %v2356, %v2352
  %v2657 = vpack.c.b16 %v2361, %v2357
  %v2658 = vpack.c.b16 %v2362, %v2358
  %v2659 = vpack.c.b16 %v2363, %v2359
  %v2660 = vpack.c.b16 %v2364, %v2360
  %v2661 = vpack.c.b16 %v2369, %v2365
  %v2662 = vpack.c.b16 %v2370, %v2366
  %v2663 = vpack.c.b16 %v2371, %v2367
  %v2664 = vpack.c.b16 %v2372, %v2368
  %v2665 = vpack.c.b16 %v2377, %v2373
  %v2666 = vpack.c.b16 %v2378, %v2374
  %v2667 = vpack.c.b16 %v2379, %v2375
  %v2668 = vpack.c.b16 %v2380, %v2376
  %v2669 = vpack.c.b16 %v2385, %v2381
  %v2670 = vpack.c.b16 %v2386, %v2382
  %v2671 = vpack.c.b16 %v2387, %v2383
  %v2672 = vpack.c.b16 %v2388, %v2384
  %v2673 = vpack.c.b16 %v2393, %v2389
  %v2674 = vpack.c.b16 %v2394, %v2390
  %v2675 = vpack.c.b16 %v2395, %v2391
  %v2676 = vpack.c.b16 %v2396, %v2392
  %v2677 = vpack.c.b16 %v2401, %v2397
  %v2678 = vpack.c.b16 %v2402, %v2398
  %v2679 = vpack.c.b16 %v2403, %v2399
  %v2680 = vpack.c.b16 %v2404, %v2400
  %v2681 = vpack.c.b16 %v2409, %v2405
  %v2682 = vpack.c.b16 %v2410, %v2406
  %v2683 = vpack.c.b16 %v2411, %v2407
  %v2684 = vpack.c.b16 %v2412, %v2408
  %v2685 = vpack.c.b16 %v2417, %v2413
  %v2686 = vpack.c.b16 %v2418, %v2414
  %v2687 = vpack.c.b16 %v2419, %v2415
  %v2688 = vpack.c.b16 %v2420, %v2416
  %v2689 = vpack.c.b16 %v2425, %v2421
  %v2690 = vpack.c.b16 %v2426, %v2422
  %v2691 = vpack.c.b16 %v2427, %v2423
  %v2692 = vpack.c.b16 %v2428, %v2424
  %v2693 = vpack.c.b16 %v2433, %v2429
  %v2694 = vpack.c.b16 %v2434, %v2430
  %v2695 = vpack.c.b16 %v2435, %v2431
  %v2696 = vpack.c.b16 %v2436, %v2432
  %v2697 = vpack.c.b16 %v2441, %v2437
  %v2698 = vpack.c.b16 %v2442, %v2438
  %v2699 = vpack.c.b16 %v2443, %v2439
  %v2700 = vpack.c.b16 %v2444, %v2440
  %v2701 = vpack.c.b16 %v2449, %v2445
  %v2702 = vpack.c.b16 %v2450, %v2446
  %v2703 = vpack.c.b16 %v2451, %v2447
  %v2704 = vpack.c.b16 %v2452, %v2448
  %v2705 = vpack.c.b16 %v2457, %v2453
  %v2706 = vpack.c.b16 %v2458, %v2454
  %v2707 = vpack.c.b16 %v2459, %v2455
  %v2708 = vpack.c.b16 %v2460, %v2456
  %v2709 = vpack.c.b16 %v2465, %v2461
  %v2710 = vpack.c.b16 %v2466, %v2462
  %v2711 = vpack.c.b16 %v2467, %v2463
  %v2712 = vpack.c.b16 %v2468, %v2464
  %v2713 = vpack.c.b16 %v2473, %v2469
  %v2714 = vpack.c.b16 %v2474, %v2470
  %v2715 = vpack.c.b16 %v2475, %v2471
  %v2716 = vpack.c.b16 %v2476, %v2472
  %v2717 = vpack.c.b16 %v2481, %v2477
  %v2718 = vpack.c.b16 %v2482, %v2478
  %v2719 = vpack.c.b16 %v2483, %v2479
  %v2720 = vpack.c.b16 %v2484, %v2480
  %v2721 = vpack.c.b16 %v2489, %v2485
  %v2722 = vpack.c.b16 %v2490, %v2486
  %v2723 = vpack.c.b16 %v2491, %v2487
  %v2724 = vpack.c.b16 %v2492, %v2488
  %v2725 = vpack.c.b16 %v2497, %v2493
  %v2726 = vpack.c.b16 %v2498, %v2494
  %v2727 = vpack.c.b16 %v2499, %v2495
  %v2728 = vpack.c.b16 %v2500, %v2496
  %v2729 = vpack.c.b16 %v2505, %v2501
  %v2730 = vpack.c.b16 %v2506, %v2502
  %v2731 = vpack.c.b16 %v2507, %v2503
  %v2732 = vpack.c.b16 %v2508, %v2504
  %v2733 = vpack.c.b16 %v2513, %v2509
  %v2734 = vpack.c.b16 %v2514, %v2510
  %v2735 = vpack.c.b16 %v2515, %v2511
  %v2736 = vpack.c.b16 %v2516, %v2512
  %v2737 = vpack.c.b16 %v2521, %v2517
  %v2738 = vpack.c.b16 %v2522, %v2518
  %v2739 = vpack.c.b16 %v2523, %v2519
  %v2740 = vpack.c.b16 %v2524, %v2520
  %v2741 = vpack.c.b16 %v2529, %v2525
  %v2742 = vpack.c.b16 %v2530, %v2526
  %v2743 = vpack.c.b16 %v2531, %v2527
  %v2744 = vpack.c.b16 %v2532, %v2528
  %v2745 = vpack.c.b16 %v2537, %v2533
  %v2746 = vpack.c.b16 %v2538, %v2534
  %v2747 = vpack.c.b16 %v2539, %v2535
  %v2748 = vpack.c.b16 %v2540, %v2536
  %v2749 = vpack.c.b16 %v2545, %v2541
  %v2750 = vpack.c.b16 %v2546, %v2542
  %v2751 = vpack.c.b16 %v2547, %v2543
  %v2752 = vpack.c.b16 %v2548, %v2544
  %v2753 = vpack.c.b16 %v2553, %v2549
  %v2754 = vpack.c.b16 %v2554, %v2550
  %v2755 = vpack.c.b16 %v2555, %v2551
  %v2756 = vpack.c.b16 %v2556, %v2552
  %v2757 = vpack.c.b16 %v2561, %v2557
  %v2758 = vpack.c.b16 %v2562, %v2558
  %v2759 = vpack.c.b16 %v2563, %v2559
  %v2760 = vpack.c.b16 %v2564, %v2560
  %v2761 = vpack.c.b16 %v2569, %v2565
  %v2762 = vpack.c.b16 %v2570, %v2566
  %v2763 = vpack.c.b16 %v2571, %v2567
  %v2764 = vpack.c.b16 %v2572, %v2568
  %v2765 = vpack.c.b16 %v2577, %v2573
  %v2766 = vpack.c.b16 %v2578, %v2574
  %v2767 = vpack.c.b16 %v2579, %v2575
  %v2768 = vpack.c.b16 %v2580, %v2576
  %v2769 = vpack.c.b16 %v2585, %v2581
  %v2770 = vpack.c.b16 %v2586, %v2582
  %v2771 = vpack.c.b16 %v2587, %v2583
  %v2772 = vpack.c.b16 %v2588, %v2584
  %v2773 = vpack.c.b16 %v2593, %v2589
  %v2774 = vpack.c.b16 %v2594, %v2590
  %v2775 = vpack.c.b16 %v2595, %v2591
  %v2776 = vpack.c.b16 %v2596, %v2592
  %v2777 = vpack.c.b16 %v2601, %v2597
  %v2778 = vpack.c.b16 %v2602, %v2598
  %v2779 = vpack.c.b16 %v2603, %v2599
  %v2780 = vpack.c.b16 %v2604, %v2600
  %v2781 = vpack.c.b16 %v2609, %v2605
  %v2782 = vpack.c.b16 %v2610, %v2606
  %v2783 = vpack.c.b16 %v2611, %v2607
  %v2784 = vpack.c.b16 %v2612, %v2608
  %v2785 = vpack.c.b16 %v2617, %v2613
  %v2786 = vpack.c.b16 %v2618, %v2614
  %v2787 = vpack.c.b16 %v2619, %v2615
  %v2788 = vpack.c.b16 %v2620, %v2616
  %v2789 = vpack.c.b16 %v2625, %v2621
  %v2790 = vpack.c.b16 %v2626, %v2622
  %v2791 = vpack.c.b16 %v2627, %v2623
  %v2792 = vpack.c.b16 %v2628, %v2624
  %v2793 = vpack.c.b16 %v2633, %v2629
  %v2794 = vpack.c.b16 %v2634, %v2630
  %v2795 = vpack.c.b16 %v2635, %v2631
  %v2796 = vpack.c.b16 %v2636, %v2632
  %2957 = vmatprep.subr.bf16.mxu0 %v2638
  %2958 = vmatpush1.bf16.msra.mxu0 %v2637
  %2959 = vmatprep.subr.bf16.mxu0 %v2642
  %2960 = vmatpush1.bf16.msra.mxu0 %v2641
  %2961 = vmatprep.subr.bf16.mxu0 %v2646
  %2962 = vmatpush1.bf16.msra.mxu0 %v2645
  %2963 = vmatprep.subr.bf16.mxu0 %v2650
  %2964 = vmatpush1.bf16.msra.mxu0 %v2649
  %2965 = vmatprep.subr.bf16.mxu0 %v2654
  %2966 = vmatpush1.bf16.msra.mxu0 %v2653
  %2967 = vmatprep.subr.bf16.mxu0 %v2658
  %2968 = vmatpush1.bf16.msra.mxu0 %v2657
  %2969 = vmatprep.subr.bf16.mxu0 %v2662
  %2970 = vmatpush1.bf16.msra.mxu0 %v2661
  %2971 = vmatprep.subr.bf16.mxu0 %v2666
  %2972 = vmatpush1.bf16.msra.mxu0 %v2665
  %2973 = vmatprep.subr.bf16.mxu0 %v2670
  %2974 = vmatpush1.bf16.msra.mxu0 %v2669
  %2975 = vmatprep.subr.bf16.mxu0 %v2674
  %2976 = vmatpush1.bf16.msra.mxu0 %v2673
  %2977 = vmatprep.subr.bf16.mxu0 %v2678
  %2978 = vmatpush1.bf16.msra.mxu0 %v2677
  %2979 = vmatprep.subr.bf16.mxu0 %v2682
  %2980 = vmatpush1.bf16.msra.mxu0 %v2681
  %2981 = vmatprep.subr.bf16.mxu0 %v2686
  %2982 = vmatpush1.bf16.msra.mxu0 %v2685
  %2983 = vmatprep.subr.bf16.mxu0 %v2690
  %2984 = vmatpush1.bf16.msra.mxu0 %v2689
  %2985 = vmatprep.subr.bf16.mxu0 %v2694
  %2986 = vmatpush1.bf16.msra.mxu0 %v2693
  %2987 = vmatprep.subr.bf16.mxu0 %v2698
  %2988 = vmatpush1.bf16.msra.mxu0 %v2697
  %2989 = vmatprep.mubr.bf16.mxu0 %v2148
  %2990 = vmatmul.mubr.bf16.gmra.mrb[0].mxu0 %v2147
  %v2991 = vpop.f32.mrb[0].mxu0
  %v2992 = vadd.f32 %v2008, %v2991
  %v2993 = vpop.f32.mrb[0].mxu0
  %v2994 = vadd.f32 %v2012, %v2993
  %v2995 = vpop.f32.mrb[0].mxu0
  %v2996 = vpop.f32.mrb[0].mxu0
  %2997 = vdwg.mxu0
  %2998 = vmatprep.subr.bf16.mxu0 %v2702
  %2999 = vmatpush1.bf16.msra.mxu0 %v2701
  %3000 = vmatprep.subr.bf16.mxu0 %v2706
  %3001 = vmatpush1.bf16.msra.mxu0 %v2705
  %3002 = vmatprep.subr.bf16.mxu0 %v2710
  %3003 = vmatpush1.bf16.msra.mxu0 %v2709
  %3004 = vmatprep.subr.bf16.mxu0 %v2714
  %3005 = vmatpush1.bf16.msra.mxu0 %v2713
  %3006 = vmatprep.subr.bf16.mxu0 %v2718
  %3007 = vmatpush1.bf16.msra.mxu0 %v2717
  %3008 = vmatprep.subr.bf16.mxu0 %v2722
  %3009 = vmatpush1.bf16.msra.mxu0 %v2721
  %3010 = vmatprep.subr.bf16.mxu0 %v2726
  %3011 = vmatpush1.bf16.msra.mxu0 %v2725
  %3012 = vmatprep.subr.bf16.mxu0 %v2730
  %3013 = vmatpush1.bf16.msra.mxu0 %v2729
  %3014 = vmatprep.subr.bf16.mxu0 %v2734
  %3015 = vmatpush1.bf16.msra.mxu0 %v2733
  %3016 = vmatprep.subr.bf16.mxu0 %v2738
  %3017 = vmatpush1.bf16.msra.mxu0 %v2737
  %3018 = vmatprep.subr.bf16.mxu0 %v2742
  %3019 = vmatpush1.bf16.msra.mxu0 %v2741
  %3020 = vmatprep.subr.bf16.mxu0 %v2746
  %3021 = vmatpush1.bf16.msra.mxu0 %v2745
  %3022 = vmatprep.subr.bf16.mxu0 %v2750
  %3023 = vmatpush1.bf16.msra.mxu0 %v2749
  %3024 = vmatprep.subr.bf16.mxu0 %v2754
  %3025 = vmatpush1.bf16.msra.mxu0 %v2753
  %3026 = vmatprep.subr.bf16.mxu0 %v2758
  %3027 = vmatpush1.bf16.msra.mxu0 %v2757
  %3028 = vmatprep.subr.bf16.mxu0 %v2762
  %3029 = vmatpush1.bf16.msra.mxu0 %v2761
  %3030 = vmatprep.mubr.bf16.mxu0 %v2150
  %3031 = vmatmul.mubr.bf16.gmra.mrb[0].mxu0 %v2149
  %v3032 = vpop.f32.mrb[0].mxu0
  %v3033 = vadd.f32 %v2992, %v3032
  %v3034 = vpop.f32.mrb[0].mxu0
  %v3035 = vadd.f32 %v2994, %v3034
  %v3036 = vpop.f32.mrb[0].mxu0
  %v3037 = vpop.f32.mrb[0].mxu0
  %3038 = vdwg.mxu0
  %3039 = vmatprep.subr.bf16.mxu0 %v2766
  %3040 = vmatpush1.bf16.msra.mxu0 %v2765
  %3041 = vmatprep.subr.bf16.mxu0 %v2770
  %3042 = vmatpush1.bf16.msra.mxu0 %v2769
  %3043 = vmatprep.subr.bf16.mxu0 %v2774
  %3044 = vmatpush1.bf16.msra.mxu0 %v2773
  %3045 = vmatprep.subr.bf16.mxu0 %v2778
  %3046 = vmatpush1.bf16.msra.mxu0 %v2777
  %3047 = vmatprep.subr.bf16.mxu0 %v2782
  %3048 = vmatpush1.bf16.msra.mxu0 %v2781
  %3049 = vmatprep.subr.bf16.mxu0 %v2786
  %3050 = vmatpush1.bf16.msra.mxu0 %v2785
  %3051 = vmatprep.subr.bf16.mxu0 %v2790
  %3052 = vmatpush1.bf16.msra.mxu0 %v2789
  %3053 = vmatprep.subr.bf16.mxu0 %v2794
  %3054 = vmatpush1.bf16.msra.mxu0 %v2793
  %3055 = vmatprep.subr.bf16.mxu0 0
  %3056 = vmatpush1.bf16.msra.mxu0 0
  %3057 = vmatprep.subr.bf16.mxu0 0
  %3058 = vmatpush1.bf16.msra.mxu0 0
  %3059 = vmatprep.subr.bf16.mxu0 0
  %3060 = vmatpush1.bf16.msra.mxu0 0
  %3061 = vmatprep.subr.bf16.mxu0 0
  %3062 = vmatpush1.bf16.msra.mxu0 0
  %3063 = vmatprep.subr.bf16.mxu0 0
  %3064 = vmatpush1.bf16.msra.mxu0 0
  %3065 = vmatprep.subr.bf16.mxu0 0
  %3066 = vmatpush1.bf16.msra.mxu0 0
  %3067 = vmatprep.subr.bf16.mxu0 0
  %3068 = vmatpush1.bf16.msra.mxu0 0
  %3069 = vmatprep.subr.bf16.mxu0 0
  %3070 = vmatpush1.bf16.msra.mxu0 0
  %3071 = vmatprep.mubr.bf16.mxu0 0
  %3072 = vmatmul.mubr.bf16.gmra.mrb[0].mxu0 %v2151
  %v3073 = vpop.f32.mrb[0].mxu0
  %v3074 = vadd.f32 %v3033, %v3073
  %v3075 = vpop.f32.mrb[0].mxu0
  %v3076 = vadd.f32 %v3035, %v3075
  %v3077 = vpop.f32.mrb[0].mxu0
  %v3078 = vpop.f32.mrb[0].mxu0
  %3079 = vdwg.mxu0
  %3080 = vmatprep.subr.bf16.mxu0 %v2640
  %3081 = vmatpush1.bf16.msra.mxu0 %v2639
  %3082 = vmatprep.subr.bf16.mxu0 %v2644
  %3083 = vmatpush1.bf16.msra.mxu0 %v2643
  %3084 = vmatprep.subr.bf16.mxu0 %v2648
  %3085 = vmatpush1.bf16.msra.mxu0 %v2647
  %3086 = vmatprep.subr.bf16.mxu0 %v2652
  %3087 = vmatpush1.bf16.msra.mxu0 %v2651
  %3088 = vmatprep.subr.bf16.mxu0 %v2656
  %3089 = vmatpush1.bf16.msra.mxu0 %v2655
  %3090 = vmatprep.subr.bf16.mxu0 %v2660
  %3091 = vmatpush1.bf16.msra.mxu0 %v2659
  %3092 = vmatprep.subr.bf16.mxu0 %v2664
  %3093 = vmatpush1.bf16.msra.mxu0 %v2663
  %3094 = vmatprep.subr.bf16.mxu0 %v2668
  %3095 = vmatpush1.bf16.msra.mxu0 %v2667
  %3096 = vmatprep.subr.bf16.mxu0 %v2672
  %3097 = vmatpush1.bf16.msra.mxu0 %v2671
  %3098 = vmatprep.subr.bf16.mxu0 %v2676
  %3099 = vmatpush1.bf16.msra.mxu0 %v2675
  %3100 = vmatprep.subr.bf16.mxu0 %v2680
  %3101 = vmatpush1.bf16.msra.mxu0 %v2679
  %3102 = vmatprep.subr.bf16.mxu0 %v2684
  %3103 = vmatpush1.bf16.msra.mxu0 %v2683
  %3104 = vmatprep.subr.bf16.mxu0 %v2688
  %3105 = vmatpush1.bf16.msra.mxu0 %v2687
  %3106 = vmatprep.subr.bf16.mxu0 %v2692
  %3107 = vmatpush1.bf16.msra.mxu0 %v2691
  %3108 = vmatprep.subr.bf16.mxu0 %v2696
  %3109 = vmatpush1.bf16.msra.mxu0 %v2695
  %3110 = vmatprep.subr.bf16.mxu0 %v2700
  %3111 = vmatpush1.bf16.msra.mxu0 %v2699
  %3112 = vmatprep.mubr.bf16.mxu0 %v2148
  %3113 = vmatmul.mubr.bf16.gmra.mrb[0].mxu0 %v2147
  %v3114 = vpop.f32.mrb[0].mxu0
  %v3115 = vadd.f32 %v2016, %v3114
  %v3116 = vpop.f32.mrb[0].mxu0
  %v3117 = vadd.f32 %v2020, %v3116
  %v3118 = vpop.f32.mrb[0].mxu0
  %v3119 = vpop.f32.mrb[0].mxu0
  %3120 = vdwg.mxu0
  %3121 = vmatprep.subr.bf16.mxu0 %v2704
  %3122 = vmatpush1.bf16.msra.mxu0 %v2703
  %3123 = vmatprep.subr.bf16.mxu0 %v2708
  %3124 = vmatpush1.bf16.msra.mxu0 %v2707
  %3125 = vmatprep.subr.bf16.mxu0 %v2712
  %3126 = vmatpush1.bf16.msra.mxu0 %v2711
  %3127 = vmatprep.subr.bf16.mxu0 %v2716
  %3128 = vmatpush1.bf16.msra.mxu0 %v2715
  %3129 = vmatprep.subr.bf16.mxu0 %v2720
  %3130 = vmatpush1.bf16.msra.mxu0 %v2719
  %3131 = vmatprep.subr.bf16.mxu0 %v2724
  %3132 = vmatpush1.bf16.msra.mxu0 %v2723
  %3133 = vmatprep.subr.bf16.mxu0 %v2728
  %3134 = vmatpush1.bf16.msra.mxu0 %v2727
  %3135 = vmatprep.subr.bf16.mxu0 %v2732
  %3136 = vmatpush1.bf16.msra.mxu0 %v2731
  %3137 = vmatprep.subr.bf16.mxu0 %v2736
  %3138 = vmatpush1.bf16.msra.mxu0 %v2735
  %3139 = vmatprep.subr.bf16.mxu0 %v2740
  %3140 = vmatpush1.bf16.msra.mxu0 %v2739
  %3141 = vmatprep.subr.bf16.mxu0 %v2744
  %3142 = vmatpush1.bf16.msra.mxu0 %v2743
  %3143 = vmatprep.subr.bf16.mxu0 %v2748
  %3144 = vmatpush1.bf16.msra.mxu0 %v2747
  %3145 = vmatprep.subr.bf16.mxu0 %v2752
  %3146 = vmatpush1.bf16.msra.mxu0 %v2751
  %3147 = vmatprep.subr.bf16.mxu0 %v2756
  %3148 = vmatpush1.bf16.msra.mxu0 %v2755
  %3149 = vmatprep.subr.bf16.mxu0 %v2760
  %3150 = vmatpush1.bf16.msra.mxu0 %v2759
  %3151 = vmatprep.subr.bf16.mxu0 %v2764
  %3152 = vmatpush1.bf16.msra.mxu0 %v2763
  %3153 = vmatprep.mubr.bf16.mxu0 %v2150
  %3154 = vmatmul.mubr.bf16.gmra.mrb[0].mxu0 %v2149
  %v3155 = vpop.f32.mrb[0].mxu0
  %v3156 = vadd.f32 %v3115, %v3155
  %v3157 = vpop.f32.mrb[0].mxu0
  %v3158 = vadd.f32 %v3117, %v3157
  %v3159 = vpop.f32.mrb[0].mxu0
  %v3160 = vpop.f32.mrb[0].mxu0
  %3161 = vdwg.mxu0
  %3162 = vmatprep.subr.bf16.mxu0 %v2768
  %3163 = vmatpush1.bf16.msra.mxu0 %v2767
  %3164 = vmatprep.subr.bf16.mxu0 %v2772
  %3165 = vmatpush1.bf16.msra.mxu0 %v2771
  %3166 = vmatprep.subr.bf16.mxu0 %v2776
  %3167 = vmatpush1.bf16.msra.mxu0 %v2775
  %3168 = vmatprep.subr.bf16.mxu0 %v2780
  %3169 = vmatpush1.bf16.msra.mxu0 %v2779
  %3170 = vmatprep.subr.bf16.mxu0 %v2784
  %3171 = vmatpush1.bf16.msra.mxu0 %v2783
  %3172 = vmatprep.subr.bf16.mxu0 %v2788
  %3173 = vmatpush1.bf16.msra.mxu0 %v2787
  %3174 = vmatprep.subr.bf16.mxu0 %v2792
  %3175 = vmatpush1.bf16.msra.mxu0 %v2791
  %3176 = vmatprep.subr.bf16.mxu0 %v2796
  %3177 = vmatpush1.bf16.msra.mxu0 %v2795
  %3178 = vmatprep.subr.bf16.mxu0 0
  %3179 = vmatpush1.bf16.msra.mxu0 0
  %3180 = vmatprep.subr.bf16.mxu0 0
  %3181 = vmatpush1.bf16.msra.mxu0 0
  %3182 = vmatprep.subr.bf16.mxu0 0
  %3183 = vmatpush1.bf16.msra.mxu0 0
  %3184 = vmatprep.subr.bf16.mxu0 0
  %3185 = vmatpush1.bf16.msra.mxu0 0
  %3186 = vmatprep.subr.bf16.mxu0 0
  %3187 = vmatpush1.bf16.msra.mxu0 0
  %3188 = vmatprep.subr.bf16.mxu0 0
  %3189 = vmatpush1.bf16.msra.mxu0 0
  %3190 = vmatprep.subr.bf16.mxu0 0
  %3191 = vmatpush1.bf16.msra.mxu0 0
  %3192 = vmatprep.subr.bf16.mxu0 0
  %3193 = vmatpush1.bf16.msra.mxu0 0
  %3194 = vmatprep.mubr.bf16.mxu0 0
  %3195 = vmatmul.mubr.bf16.gmra.mrb[0].mxu0 %v2151
  %v3196 = vpop.f32.mrb[0].mxu0
  %v3197 = vadd.f32 %v3156, %v3196
  %v3198 = vpop.f32.mrb[0].mxu0
  %v3199 = vadd.f32 %v3158, %v3198
  %v3200 = vpop.f32.mrb[0].mxu0
  %v3201 = vpop.f32.mrb[0].mxu0
  %3202 = vdwg.mxu0
  %v3203 = vmax.f32 %v3074, 0.0
  %v3204 = vmax.f32 %v3076, 0.0
  %v3205 = vmax.f32 %v3197, 0.0
  %v3206 = vmax.f32 %v3199, 0.0
  %v3207 = vpack.c.bf16 %v3203, %v3203
  %v3208 = vpack.c.bf16 %v3204, %v3204
  %v3209 = vpack.c.bf16 %v3205, %v3205
  %v3210 = vpack.c.bf16 %v3206, %v3206
  %v3211 = vld [vmem:[%s7] sm:$0xf]
  %v3212 = vld [vmem:[%s7 + $0x4] sm:$0xf]
  %v3213 = vld [vmem:[%s7 + $0x8] sm:$0xf]
  %v3214 = vld [vmem:[%s7 + $0xc] sm:$0xf]
  %v3215 = vld [vmem:[%s7 + $0x10] sm:$0xf]
  %v3216 = vld [vmem:[%s7 + $0x14] sm:$0xf]
  %v3217 = vld [vmem:[%s7 + $0x18] sm:$0xf]
  %v3218 = vld [vmem:[%s7 + $0x1c] sm:$0xf]
  %v3219 = vld [vmem:[%s7 + $0x20] sm:$0xf]
  %v3220 = vld [vmem:[%s7 + $0x24] sm:$0xf]
  %v3221 = vld [vmem:[%s7 + $0x28] sm:$0xf]
  %v3222 = vld [vmem:[%s7 + $0x2c] sm:$0xf]
  %v3223 = vld [vmem:[%s7 + $0x30] sm:$0xf]
  %v3224 = vld [vmem:[%s7 + $0x34] sm:$0xf]
  %v3225 = vld [vmem:[%s7 + $0x38] sm:$0xf]
  %v3226 = vld [vmem:[%s7 + $0x3c] sm:$0xf]
  %v3227 = vld [vmem:[%s7 + $0x40] sm:$0xf]
  %v3228 = vld [vmem:[%s7 + $0x44] sm:$0xf]
  %v3229 = vld [vmem:[%s7 + $0x48] sm:$0xf]
  %v3230 = vld [vmem:[%s7 + $0x4c] sm:$0xf]
  %v3231 = vld [vmem:[%s7 + $0x50] sm:$0xf]
  %v3232 = vld [vmem:[%s7 + $0x54] sm:$0xf]
  %v3233 = vld [vmem:[%s7 + $0x58] sm:$0xf]
  %v3234 = vld [vmem:[%s7 + $0x5c] sm:$0xf]
  %v3235 = vld [vmem:[%s7 + $0x60] sm:$0xf]
  %v3236 = vld [vmem:[%s7 + $0x64] sm:$0xf]
  %v3237 = vld [vmem:[%s7 + $0x68] sm:$0xf]
  %v3238 = vld [vmem:[%s7 + $0x6c] sm:$0xf]
  %v3239 = vld [vmem:[%s7 + $0x70] sm:$0xf]
  %v3240 = vld [vmem:[%s7 + $0x74] sm:$0xf]
  %v3241 = vld [vmem:[%s7 + $0x78] sm:$0xf]
  %v3242 = vld [vmem:[%s7 + $0x7c] sm:$0xf]
  %v3243 = vld [vmem:[%s7 + $0x80] sm:$0xf]
  %v3244 = vld [vmem:[%s7 + $0x84] sm:$0xf]
  %v3245 = vld [vmem:[%s7 + $0x88] sm:$0xf]
  %v3246 = vld [vmem:[%s7 + $0x8c] sm:$0xf]
  %v3247 = vld [vmem:[%s7 + $0x90] sm:$0xf]
  %v3248 = vld [vmem:[%s7 + $0x94] sm:$0xf]
  %v3249 = vld [vmem:[%s7 + $0x98] sm:$0xf]
  %v3250 = vld [vmem:[%s7 + $0x9c] sm:$0xf]
  %v3251 = vld [vmem:[%s7 + $0xa0] sm:$0xf]
  %v3252 = vld [vmem:[%s7 + $0xa4] sm:$0xf]
  %v3253 = vld [vmem:[%s7 + $0xa8] sm:$0xf]
  %v3254 = vld [vmem:[%s7 + $0xac] sm:$0xf]
  %v3255 = vld [vmem:[%s7 + $0xb0] sm:$0xf]
  %v3256 = vld [vmem:[%s7 + $0xb4] sm:$0xf]
  %v3257 = vld [vmem:[%s7 + $0xb8] sm:$0xf]
  %v3258 = vld [vmem:[%s7 + $0xbc] sm:$0xf]
  %v3259 = vld [vmem:[%s7 + $0xc0] sm:$0xf]
  %v3260 = vld [vmem:[%s7 + $0xc4] sm:$0xf]
  %v3261 = vld [vmem:[%s7 + $0xc8] sm:$0xf]
  %v3262 = vld [vmem:[%s7 + $0xcc] sm:$0xf]
  %v3263 = vld [vmem:[%s7 + $0xd0] sm:$0xf]
  %v3264 = vld [vmem:[%s7 + $0xd4] sm:$0xf]
  %v3265 = vld [vmem:[%s7 + $0xd8] sm:$0xf]
  %v3266 = vld [vmem:[%s7 + $0xdc] sm:$0xf]
  %v3267 = vld [vmem:[%s7 + $0xe0] sm:$0xf]
  %v3268 = vld [vmem:[%s7 + $0xe4] sm:$0xf]
  %v3269 = vld [vmem:[%s7 + $0xe8] sm:$0xf]
  %v3270 = vld [vmem:[%s7 + $0xec] sm:$0xf]
  %v3271 = vld [vmem:[%s7 + $0xf0] sm:$0xf]
  %v3272 = vld [vmem:[%s7 + $0xf4] sm:$0xf]
  %v3273 = vld [vmem:[%s7 + $0xf8] sm:$0xf]
  %v3274 = vld [vmem:[%s7 + $0xfc] sm:$0xf]
  %v3275 = vld [vmem:[%s8] sm:$0x1]
  %v3277 = vlaneseq
  %v3278 = vshrl.u32 %v3277, 7
  %v3279 = vsub.s32 0, %v3278
  %v3280 = vrot.slane %v3275, %v3279
  %v3346 = vunpack.c.l.b16 %v3211
  %v3347 = vunpack.c.l.b16 %v3212
  %v3348 = vunpack.c.l.b16 %v3213
  %v3349 = vunpack.c.l.b16 %v3214
  %v3350 = vunpack.c.l.b16 %v3215
  %v3351 = vunpack.c.l.b16 %v3216
  %v3352 = vunpack.c.l.b16 %v3217
  %v3353 = vunpack.c.l.b16 %v3218
  %v3354 = vunpack.c.l.b16 %v3219
  %v3355 = vunpack.c.l.b16 %v3220
  %v3356 = vunpack.c.l.b16 %v3221
  %v3357 = vunpack.c.l.b16 %v3222
  %v3358 = vunpack.c.l.b16 %v3223
  %v3359 = vunpack.c.l.b16 %v3224
  %v3360 = vunpack.c.l.b16 %v3225
  %v3361 = vunpack.c.l.b16 %v3226
  %v3362 = vunpack.c.l.b16 %v3227
  %v3363 = vunpack.c.l.b16 %v3228
  %v3364 = vunpack.c.l.b16 %v3229
  %v3365 = vunpack.c.l.b16 %v3230
  %v3366 = vunpack.c.l.b16 %v3231
  %v3367 = vunpack.c.l.b16 %v3232
  %v3368 = vunpack.c.l.b16 %v3233
  %v3369 = vunpack.c.l.b16 %v3234
  %v3370 = vunpack.c.l.b16 %v3235
  %v3371 = vunpack.c.l.b16 %v3236
  %v3372 = vunpack.c.l.b16 %v3237
  %v3373 = vunpack.c.l.b16 %v3238
  %v3374 = vunpack.c.l.b16 %v3239
  %v3375 = vunpack.c.l.b16 %v3240
  %v3376 = vunpack.c.l.b16 %v3241
  %v3377 = vunpack.c.l.b16 %v3242
  %v3378 = vunpack.c.l.b16 %v3243
  %v3379 = vunpack.c.l.b16 %v3244
  %v3380 = vunpack.c.l.b16 %v3245
  %v3381 = vunpack.c.l.b16 %v3246
  %v3382 = vunpack.c.l.b16 %v3247
  %v3383 = vunpack.c.l.b16 %v3248
  %v3384 = vunpack.c.l.b16 %v3249
  %v3385 = vunpack.c.l.b16 %v3250
  %v3386 = vunpack.c.l.b16 %v3251
  %v3387 = vunpack.c.l.b16 %v3252
  %v3388 = vunpack.c.l.b16 %v3253
  %v3389 = vunpack.c.l.b16 %v3254
  %v3390 = vunpack.c.l.b16 %v3255
  %v3391 = vunpack.c.l.b16 %v3256
  %v3392 = vunpack.c.l.b16 %v3257
  %v3393 = vunpack.c.l.b16 %v3258
  %v3394 = vunpack.c.l.b16 %v3259
  %v3395 = vunpack.c.l.b16 %v3260
  %v3396 = vunpack.c.l.b16 %v3261
  %v3397 = vunpack.c.l.b16 %v3262
  %v3398 = vunpack.c.l.b16 %v3263
  %v3399 = vunpack.c.l.b16 %v3264
  %v3400 = vunpack.c.l.b16 %v3265
  %v3401 = vunpack.c.l.b16 %v3266
  %v3402 = vunpack.c.l.b16 %v3267
  %v3403 = vunpack.c.l.b16 %v3268
  %v3404 = vunpack.c.l.b16 %v3269
  %v3405 = vunpack.c.l.b16 %v3270
  %v3406 = vunpack.c.l.b16 %v3271
  %v3407 = vunpack.c.l.b16 %v3272
  %v3408 = vunpack.c.l.b16 %v3273
  %v3409 = vunpack.c.l.b16 %v3274
  %v3410 = vpack.c.b16 %v3347, %v3346
  %v3411 = vpack.c.b16 %v3349, %v3348
  %v3412 = vpack.c.b16 %v3351, %v3350
  %v3413 = vpack.c.b16 %v3353, %v3352
  %v3414 = vpack.c.b16 %v3355, %v3354
  %v3415 = vpack.c.b16 %v3357, %v3356
  %v3416 = vpack.c.b16 %v3359, %v3358
  %v3417 = vpack.c.b16 %v3361, %v3360
  %v3418 = vpack.c.b16 %v3363, %v3362
  %v3419 = vpack.c.b16 %v3365, %v3364
  %v3420 = vpack.c.b16 %v3367, %v3366
  %v3421 = vpack.c.b16 %v3369, %v3368
  %v3422 = vpack.c.b16 %v3371, %v3370
  %v3423 = vpack.c.b16 %v3373, %v3372
  %v3424 = vpack.c.b16 %v3375, %v3374
  %v3425 = vpack.c.b16 %v3377, %v3376
  %v3426 = vpack.c.b16 %v3379, %v3378
  %v3427 = vpack.c.b16 %v3381, %v3380
  %v3428 = vpack.c.b16 %v3383, %v3382
  %v3429 = vpack.c.b16 %v3385, %v3384
  %v3430 = vpack.c.b16 %v3387, %v3386
  %v3431 = vpack.c.b16 %v3389, %v3388
  %v3432 = vpack.c.b16 %v3391, %v3390
  %v3433 = vpack.c.b16 %v3393, %v3392
  %v3434 = vpack.c.b16 %v3395, %v3394
  %v3435 = vpack.c.b16 %v3397, %v3396
  %v3436 = vpack.c.b16 %v3399, %v3398
  %v3437 = vpack.c.b16 %v3401, %v3400
  %v3438 = vpack.c.b16 %v3403, %v3402
  %v3439 = vpack.c.b16 %v3405, %v3404
  %v3440 = vpack.c.b16 %v3407, %v3406
  %v3441 = vpack.c.b16 %v3409, %v3408
  %3474 = vmatprep.subr.bf16.mxu0 0
  %3475 = vmatpush1.bf16.msra.mxu0 %v3410
  %3476 = vmatprep.subr.bf16.mxu0 0
  %3477 = vmatpush1.bf16.msra.mxu0 %v3411
  %3478 = vmatprep.subr.bf16.mxu0 0
  %3479 = vmatpush1.bf16.msra.mxu0 %v3412
  %3480 = vmatprep.subr.bf16.mxu0 0
  %3481 = vmatpush1.bf16.msra.mxu0 %v3413
  %3482 = vmatprep.subr.bf16.mxu0 0
  %3483 = vmatpush1.bf16.msra.mxu0 %v3414
  %3484 = vmatprep.subr.bf16.mxu0 0
  %3485 = vmatpush1.bf16.msra.mxu0 %v3415
  %3486 = vmatprep.subr.bf16.mxu0 0
  %3487 = vmatpush1.bf16.msra.mxu0 %v3416
  %3488 = vmatprep.subr.bf16.mxu0 0
  %3489 = vmatpush1.bf16.msra.mxu0 %v3417
  %3490 = vmatprep.subr.bf16.mxu0 0
  %3491 = vmatpush1.bf16.msra.mxu0 %v3418
  %3492 = vmatprep.subr.bf16.mxu0 0
  %3493 = vmatpush1.bf16.msra.mxu0 %v3419
  %3494 = vmatprep.subr.bf16.mxu0 0
  %3495 = vmatpush1.bf16.msra.mxu0 %v3420
  %3496 = vmatprep.subr.bf16.mxu0 0
  %3497 = vmatpush1.bf16.msra.mxu0 %v3421
  %3498 = vmatprep.subr.bf16.mxu0 0
  %3499 = vmatpush1.bf16.msra.mxu0 %v3422
  %3500 = vmatprep.subr.bf16.mxu0 0
  %3501 = vmatpush1.bf16.msra.mxu0 %v3423
  %3502 = vmatprep.subr.bf16.mxu0 0
  %3503 = vmatpush1.bf16.msra.mxu0 %v3424
  %3504 = vmatprep.subr.bf16.mxu0 0
  %3505 = vmatpush1.bf16.msra.mxu0 %v3425
  %3506 = vmatprep.mubr.bf16.mxu0 %v3208
  %3507 = vmatmul.mubr.bf16.gmra.mrb[0].mxu0 %v3207
  %v3508 = vpop.f32.mrb[0].mxu0
  %v3509 = vadd.f32 %v3280, %v3508
  %v3510 = vpop.f32.mrb[0].mxu0
  %v3511 = vpop.f32.mrb[0].mxu0
  %v3512 = vpop.f32.mrb[0].mxu0
  %3513 = vdwg.mxu0
  %3514 = vmatprep.subr.bf16.mxu0 0
  %3515 = vmatpush1.bf16.msra.mxu0 %v3426
  %3516 = vmatprep.subr.bf16.mxu0 0
  %3517 = vmatpush1.bf16.msra.mxu0 %v3427
  %3518 = vmatprep.subr.bf16.mxu0 0
  %3519 = vmatpush1.bf16.msra.mxu0 %v3428
  %3520 = vmatprep.subr.bf16.mxu0 0
  %3521 = vmatpush1.bf16.msra.mxu0 %v3429
  %3522 = vmatprep.subr.bf16.mxu0 0
  %3523 = vmatpush1.bf16.msra.mxu0 %v3430
  %3524 = vmatprep.subr.bf16.mxu0 0
  %3525 = vmatpush1.bf16.msra.mxu0 %v3431
  %3526 = vmatprep.subr.bf16.mxu0 0
  %3527 = vmatpush1.bf16.msra.mxu0 %v3432
  %3528 = vmatprep.subr.bf16.mxu0 0
  %3529 = vmatpush1.bf16.msra.mxu0 %v3433
  %3530 = vmatprep.subr.bf16.mxu0 0
  %3531 = vmatpush1.bf16.msra.mxu0 %v3434
  %3532 = vmatprep.subr.bf16.mxu0 0
  %3533 = vmatpush1.bf16.msra.mxu0 %v3435
  %3534 = vmatprep.subr.bf16.mxu0 0
  %3535 = vmatpush1.bf16.msra.mxu0 %v3436
  %3536 = vmatprep.subr.bf16.mxu0 0
  %3537 = vmatpush1.bf16.msra.mxu0 %v3437
  %3538 = vmatprep.subr.bf16.mxu0 0
  %3539 = vmatpush1.bf16.msra.mxu0 %v3438
  %3540 = vmatprep.subr.bf16.mxu0 0
  %3541 = vmatpush1.bf16.msra.mxu0 %v3439
  %3542 = vmatprep.subr.bf16.mxu0 0
  %3543 = vmatpush1.bf16.msra.mxu0 %v3440
  %3544 = vmatprep.subr.bf16.mxu0 0
  %3545 = vmatpush1.bf16.msra.mxu0 %v3441
  %3546 = vmatprep.mubr.bf16.mxu0 %v3210
  %3547 = vmatmul.mubr.bf16.gmra.mrb[0].mxu0 %v3209
  %v3548 = vpop.f32.mrb[0].mxu0
  %v3549 = vadd.f32 %v3509, %v3548
  %v3550 = vpop.f32.mrb[0].mxu0
  %v3551 = vpop.f32.mrb[0].mxu0
  %v3552 = vpop.f32.mrb[0].mxu0
  %3553 = vdwg.mxu0
  %vm3554 = vcmask 15360
  %3555 = vst.msk [vmem:[%s9] sm:$0xff] %vm3554, %v3549
  // Predicated region
  $region38: #{detector_forward_impl.1} parent=0 // pred_check
    _
  $region39: #{detector_forward_impl.1} parent=0 // pred_check_branch
    %3557 = sbr.rel (0) target = $region41
  $region40: #{detector_forward_impl.1} parent=0 // pred_region
    _
  $region41: #{detector_forward_impl.1} parent=0 // pred_fallthru
    _
  // Predicated region
  $region42: #{detector_forward_impl.1} parent=0 // pred_check
    _
  $region43: #{detector_forward_impl.1} parent=0 // pred_check_branch
    %3559 = sbr.rel (0) target = $region45
  $region44: #{detector_forward_impl.1} parent=0 // pred_region
    _
  $region45: #{detector_forward_impl.1} parent=0 // pred_fallthru
    _

</llo_original>
